<compile_context>
chip_gen: v5e
topology: v5e:2x2
jax: 0.10.0
libtpu: 0.0.40
codegen_flags: <defaults>
</compile_context>

<pallas_src>
import jax
import jax.numpy as jnp
from jax import lax
from jax.experimental import pallas as pl
from jax.experimental.pallas import tpu as pltpu


# ----------------------------------------------------------------------------
# Kernel 1: fused (1x1-conv) + BatchNorm(eval, folded, bias folded in) + PReLU
#   y = prelu( (x @ w) * scale + shift )     (bias already folded into shift)
# ----------------------------------------------------------------------------
def _mm_bn_prelu_kernel(x_ref, w_ref, scale_ref, shift_ref, alpha_ref, o_ref):
    y = jnp.dot(x_ref[...], w_ref[...], preferred_element_type=jnp.float32)
    y = y * scale_ref[...] + shift_ref[...]          # folded BN (eval) + bias
    a = alpha_ref[...]                               # (1, 1) PReLU slope
    o_ref[...] = jnp.where(y >= 0.0, y, a * y).astype(o_ref.dtype)


def conv_bn_prelu(x, p, tm=256):
    """x: (M, K) bf16; returns (M, N) bf16.  Tiled + pipelined over M."""
    M, K = x.shape
    N = p["w"].shape[1]
    TM = M if M <= tm else tm
    return pl.pallas_call(
        _mm_bn_prelu_kernel,
        out_shape=jax.ShapeDtypeStruct((M, N), jnp.bfloat16),
        grid=(pl.cdiv(M, TM),),
        in_specs=[
            pl.BlockSpec((TM, K), lambda i: (i, 0)),
            pl.BlockSpec((K, N), lambda i: (0, 0)),
            pl.BlockSpec((1, N), lambda i: (0, 0)),
            pl.BlockSpec((1, N), lambda i: (0, 0)),
            pl.BlockSpec((1, 1), lambda i: (0, 0)),
        ],
        out_specs=pl.BlockSpec((TM, N), lambda i: (i, 0)),
        compiler_params=pltpu.CompilerParams(
            dimension_semantics=("parallel",)),
    )(x, p["w"], p["scale"], p["shift"], p["alpha"])


# ----------------------------------------------------------------------------
# Kernel 2: PSA_s (Polarized Self-Attention, sequential), one sample per step.
# x per sample is (HW, C) bf16.
# ----------------------------------------------------------------------------
def _psa_kernel(x_ref, wvq_ref, wu1_ref, bu1_ref, lng_ref, lnb_ref,
                wu2_ref, bu2_ref, wql_ref, wvl_ref, o_ref):
    c2 = wql_ref.shape[1]
    x_bf = x_ref[0]                              # (HW, C) bf16 -> MXU operand
    x = x_bf.astype(jnp.float32)                 # f32 for elementwise math

    # ---- spatial pool -> channel-attention mask ----
    # q_right is packed as an extra column block of the v_right weight, so one
    # (HW,C)@(C,C/2+128) matmul produces both v and the q logits.
    vq = jnp.dot(x_bf, wvq_ref[...], preferred_element_type=jnp.float32)
    v = vq[:, :c2]                               # (HW, C/2)
    q = vq[:, c2:c2 + 1]                         # (HW, 1)
    q = q - jnp.max(q, axis=0, keepdims=True)
    e = jnp.exp(q)
    attn = e / jnp.sum(e, axis=0, keepdims=True)           # softmax over HW
    # Weighted pooling on the MXU (contract over HW): (1, C/2)
    ctx = lax.dot_general(attn, v, (((0,), (0,)), ((), ())),
                          preferred_element_type=jnp.float32)

    # conv_up: Conv1x1 -> LayerNorm -> ReLU -> Conv1x1 (tiny, kept f32)
    u = jnp.dot(ctx, wu1_ref[...], preferred_element_type=jnp.float32)
    u = u + bu1_ref[...]
    mu = jnp.mean(u, axis=1, keepdims=True)
    var = jnp.mean((u - mu) ** 2, axis=1, keepdims=True)
    u = (u - mu) * lax.rsqrt(var + 1e-5)
    u = u * lng_ref[...] + lnb_ref[...]
    u = jnp.maximum(u, 0.0)
    m = jnp.dot(u, wu2_ref[...], preferred_element_type=jnp.float32)
    m = m + bu2_ref[...]
    mask_ch = jax.nn.sigmoid(m)                  # (1, C)
    y = x * mask_ch                              # channel-attended, f32

    # ---- channel pool -> spatial-attention mask ----
    # mean_hw(conv_q_left(y)) == mean_hw(y) @ wq_l  (1x1 conv is linear)
    y_mean = jnp.mean(y, axis=0, keepdims=True)                     # (1, C)
    g = jnp.dot(y_mean.astype(jnp.bfloat16), wql_ref[...],
                preferred_element_type=jnp.float32)                 # (1, C/2)
    g = jax.nn.softmax(g, axis=1)                                   # over C/2
    theta = jnp.dot(y.astype(jnp.bfloat16), wvl_ref[...],
                    preferred_element_type=jnp.float32)             # (HW, C/2)
    # Weighted pooling on the MXU (contract over C/2): (HW, 1)
    ctx_sp = lax.dot_general(theta, g, (((1,), (1,)), ((), ())),
                             preferred_element_type=jnp.float32)
    mask_sp = jax.nn.sigmoid(ctx_sp)
    o_ref[0] = (y * mask_sp).astype(o_ref.dtype)


def psa_apply(x, p):
    """x: (B, HW, C) bf16; returns (B, HW, C) bf16."""
    B, HW, C = x.shape
    C2 = C // 2
    C8 = C2 // 4

    def wspec(shape):
        return pl.BlockSpec(shape, lambda *_: (0,) * len(shape))

    # TODO(synk): for very small HW, multiple samples per grid step would fill
    # the MXU better; kept one sample per step for clarity/robustness.
    return pl.pallas_call(
        _psa_kernel,
        out_shape=jax.ShapeDtypeStruct((B, HW, C), jnp.bfloat16),
        grid=(B,),
        in_specs=[
            pl.BlockSpec((1, HW, C), lambda b: (b, 0, 0)),
            wspec((C, C2 + 128)),   # [conv_v_right | conv_q_right (col C2)]
            wspec((C2, C8)),        # conv_up[0] weight
            wspec((1, C8)),         # conv_up[0] bias
            wspec((1, C8)),         # LayerNorm gamma
            wspec((1, C8)),         # LayerNorm beta
            wspec((C8, C)),         # conv_up[3] weight
            wspec((1, C)),          # conv_up[3] bias
            wspec((C, C2)),         # conv_q_left
            wspec((C, C2)),         # conv_v_left
        ],
        out_specs=pl.BlockSpec((1, HW, C), lambda b: (b, 0, 0)),
        compiler_params=pltpu.CompilerParams(
            dimension_semantics=("parallel",)),
    )(x, p["wvq"], p["wu1"], p["bu1"], p["ln_g"], p["ln_b"],
      p["wu2"], p["bu2"], p["wq_l"], p["wv_l"])


# ----------------------------------------------------------------------------
# Kernel 3: fused head per sample-block:
#   conv2 + BN2 + PReLU  ->  AdaptiveAvgPool2d((1,1)) (as a small MXU matmul)
#   ->  Linear(1024,768)+BN1d+PReLU  ->  Linear(768,512)+BN1d+PReLU
# ----------------------------------------------------------------------------
def _head_kernel(y_ref, p_ref, w2_ref, s2_ref, t2_ref, a2_ref,
                 wf1_ref, s3_ref, t3_ref, a3_ref,
                 wf2_ref, s4_ref, t4_ref, a4_ref, o_ref):
    # conv2 + bn2 + PReLU on all pixels of the block (never written to HBM)
    z = jnp.dot(y_ref[...], w2_ref[...], preferred_element_type=jnp.float32)
    z = z * s2_ref[...] + t2_ref[...]
    z = jnp.where(z >= 0.0, z, a2_ref[...] * z)            # (Bt*HW, C)

    # per-sample global average pool via block-diagonal averaging matrix (MXU)
    zbar = jnp.dot(p_ref[...], z, preferred_element_type=jnp.float32)  # (Bt, C)

    # fc1 + bn + PReLU
    h = jnp.dot(zbar.astype(jnp.bfloat16), wf1_ref[...],
                preferred_element_type=jnp.float32)
    h = h * s3_ref[...] + t3_ref[...]
    h = jnp.where(h >= 0.0, h, a3_ref[...] * h)

    # fc2 + bn + PReLU
    f = jnp.dot(h.astype(jnp.bfloat16), wf2_ref[...],
                preferred_element_type=jnp.float32)
    f = f * s4_ref[...] + t4_ref[...]
    f = jnp.where(f >= 0.0, f, a4_ref[...] * f)
    o_ref[...] = f.astype(o_ref.dtype)


def _pick_bt(B, hw, max_rows=512):
    """Samples per head grid step; Bt*HW rows fed to the MXU per step."""
    if B * hw <= max_rows:
        return B
    for bt in range(min(B, max(1, max_rows // hw)), 0, -1):
        if B % bt == 0 and bt % 8 == 0:      # keeps all block shapes legal
            return bt
    return B                                  # fallback: single (full) block


def head_apply(y2d, hw, params):
    """y2d: (B*HW, C) bf16; returns (B, feature_dim) f32."""
    M, C = y2d.shape
    B = M // hw
    F1 = params["fc1"]["w"].shape[1]
    F2 = params["fc2"]["w"].shape[1]
    bt = _pick_bt(B, hw)

    # Block-diagonal averaging matrix for one block of bt samples.
    rows = jnp.arange(bt)[:, None]
    cols = jnp.arange(bt * hw)[None, :]
    P = jnp.where(cols // hw == rows, 1.0 / hw, 0.0).astype(jnp.float32)

    return pl.pallas_call(
        _head_kernel,
        out_shape=jax.ShapeDtypeStruct((B, F2), jnp.float32),
        grid=(B // bt,),
        in_specs=[
            pl.BlockSpec((bt * hw, C), lambda i: (i, 0)),
            pl.BlockSpec((bt, bt * hw), lambda i: (0, 0)),
            pl.BlockSpec((C, C), lambda i: (0, 0)),
            pl.BlockSpec((1, C), lambda i: (0, 0)),
            pl.BlockSpec((1, C), lambda i: (0, 0)),
            pl.BlockSpec((1, 1), lambda i: (0, 0)),
            pl.BlockSpec((C, F1), lambda i: (0, 0)),
            pl.BlockSpec((1, F1), lambda i: (0, 0)),
            pl.BlockSpec((1, F1), lambda i: (0, 0)),
            pl.BlockSpec((1, 1), lambda i: (0, 0)),
            pl.BlockSpec((F1, F2), lambda i: (0, 0)),
            pl.BlockSpec((1, F2), lambda i: (0, 0)),
            pl.BlockSpec((1, F2), lambda i: (0, 0)),
            pl.BlockSpec((1, 1), lambda i: (0, 0)),
        ],
        out_specs=pl.BlockSpec((bt, F2), lambda i: (i, 0)),
        compiler_params=pltpu.CompilerParams(
            dimension_semantics=("parallel",)),
    )(y2d, P,
      params["conv2"]["w"], params["conv2"]["scale"], params["conv2"]["shift"],
      params["conv2"]["alpha"],
      params["fc1"]["w"], params["fc1"]["scale"], params["fc1"]["shift"],
      params["fc1"]["alpha"],
      params["fc2"]["w"], params["fc2"]["scale"], params["fc2"]["shift"],
      params["fc2"]["alpha"])


# ----------------------------------------------------------------------------
# Full forward (inference path of PSANArcFaceModel, after the backbone).
# ----------------------------------------------------------------------------
def psan_forward(x_feat, params):
    """x_feat: (B, H, W, 1024) backbone (SwinV2) feature map, NHWC."""
    B, H, W, C = x_feat.shape
    HW = H * W
    # permute(0,3,1,2) + 1x1-conv semantics are absorbed by the row/col layout.
    x = x_feat.reshape(B * HW, C).astype(jnp.bfloat16)
    x = conv_bn_prelu(x, params["conv1"])                  # conv1 + bn1 + PReLU
    x = psa_apply(x.reshape(B, HW, C), params["psa"])      # PSA_s
    feats = head_apply(x.reshape(B * HW, C), HW, params)   # conv2..fc2 fused
    return feats                                           # (B, feature_dim)


# ----------------------------------------------------------------------------
# Deterministic parameter construction (matches module shapes; BN uses eval
# running stats mean=0 / var=1, gamma=1, beta=0; PReLU slope 0.25; conv/linear
# biases are folded into the BN shift).
# ----------------------------------------------------------------------------
def init_params(key, in_channels=1024, feature_dim=512):
    C = in_channels
    C2 = C // 2
    C8 = C2 // 4
    ks = jax.random.split(key, 10)

    def kaiming(k, shape, fan_out):
        return jax.random.normal(k, shape, jnp.float32) * jnp.sqrt(2.0 / fan_out)

    def bn_fold(n, eps=1e-5):
        gamma = jnp.ones((1, n), jnp.float32)
        beta = jnp.zeros((1, n), jnp.float32)
        mean = jnp.zeros((1, n), jnp.float32)
        var = jnp.ones((1, n), jnp.float32)
        scale = gamma / jnp.sqrt(var + eps)
        shift = beta - mean * scale
        return scale, shift

    def mm_layer(w, bias, scale, shift):
        # y = (x@w + b)*s + t  ==  (x@w)*s + (b*s + t)
        return dict(w=w.astype(jnp.bfloat16),
                    scale=scale,
                    shift=shift + bias * scale,
                    alpha=jnp.full((1, 1), 0.25, jnp.float32))

    s1, t1 = bn_fold(C)
    s2, t2 = bn_fold(C)
    s3, t3 = bn_fold(768)
    s4, t4 = bn_fold(feature_dim)

    conv1 = mm_layer(kaiming(ks[0], (C, C), C), jnp.zeros((1, C), jnp.float32), s1, t1)
    conv2 = mm_layer(kaiming(ks[1], (C, C), C), jnp.zeros((1, C), jnp.float32), s2, t2)
    fc1 = mm_layer(jax.random.normal(ks[2], (C, 768), jnp.float32) * 0.01,
                   jnp.zeros((1, 768), jnp.float32), s3, t3)
    fc2 = mm_layer(jax.random.normal(ks[3], (768, feature_dim), jnp.float32) * 0.01,
                   jnp.zeros((1, feature_dim), jnp.float32), s4, t4)

    # PSA weights; conv_q_right packed into column C2 of the v_right weight
    # (remaining 127 pad columns are zero) so both come out of one matmul.
    wq_r = kaiming(ks[4], (C, 1), 1)
    wv_r = kaiming(ks[5], (C, C2), C2)
    wvq = jnp.zeros((C, C2 + 128), jnp.float32)
    wvq = wvq.at[:, :C2].set(wv_r)
    wvq = wvq.at[:, C2].set(wq_r[:, 0])

    psa = dict(
        wvq=wvq.astype(jnp.bfloat16),
        wu1=kaiming(ks[6], (C2, C8), C8),
        bu1=jnp.zeros((1, C8), jnp.float32),
        ln_g=jnp.ones((1, C8), jnp.float32),
        ln_b=jnp.zeros((1, C8), jnp.float32),
        wu2=kaiming(ks[7], (C8, C), C),
        bu2=jnp.zeros((1, C), jnp.float32),
        wq_l=kaiming(ks[8], (C, C2), C2).astype(jnp.bfloat16),
        wv_l=kaiming(ks[9], (C, C2), C2).astype(jnp.bfloat16),
    )
    return dict(conv1=conv1, conv2=conv2, fc1=fc1, fc2=fc2, psa=psa)


if __name__ == "__main__":
    key = jax.random.PRNGKey(0)
    kx, kp = jax.random.split(key)

    # Small synthetic backbone output: batch=2, 4x4 spatial, 1024 channels
    # (1024 is hardcoded in PSANFeatureModule).
    B, H, W, C = 2, 4, 4, 1024
    x_feat = jax.random.normal(kx, (B, H, W, C), dtype=jnp.float32)

    params = init_params(kp, in_channels=C, feature_dim=512)

    feats = jax.block_until_ready(psan_forward(x_feat, params))

    assert feats.shape == (B, 512), feats.shape
    assert bool(jnp.all(jnp.isfinite(feats)))
    print("KERNEL_OK")
</pallas_src>

<mosaic_0001>
module attributes {stable_mosaic.version = 11 : i64} {
  func.func @_mm_bn_prelu_kernel(%arg0: i32, %arg1: memref<32x1024xbf16, #tpu.memory_space<vmem>>, %arg2: memref<1024x1024xbf16, #tpu.memory_space<vmem>>, %arg3: memref<1x1024xf32, #tpu.memory_space<vmem>>, %arg4: memref<1x1024xf32, #tpu.memory_space<vmem>>, %arg5: memref<1x1xf32, #tpu.memory_space<vmem>>, %arg6: memref<32x1024xbf16, #tpu.memory_space<vmem>>) attributes {dimension_semantics = [#tpu.dimension_semantics<parallel>], iteration_bounds = array<i64: 1>, scalar_prefetch = 0 : i64, scratch_operands = 0 : i64, tpu.core_type = #tpu.core_type<tc>, window_params = [{transform_indices = @transform_0, window_bounds = array<i64: 32, 1024>}, {pipeline_mode = #tpu.pipeline_mode<synchronous>, transform_indices = @transform_1, window_bounds = array<i64: 1024, 1024>}, {pipeline_mode = #tpu.pipeline_mode<synchronous>, transform_indices = @transform_2, window_bounds = array<i64: 1, 1024>}, {pipeline_mode = #tpu.pipeline_mode<synchronous>, transform_indices = @transform_3, window_bounds = array<i64: 1, 1024>}, {pipeline_mode = #tpu.pipeline_mode<synchronous>, transform_indices = @transform_4, window_bounds = array<i64: 1, 1>}, {transform_indices = @transform_5, window_bounds = array<i64: 32, 1024>}]} {
    %c0 = arith.constant 0 : index
    %c0_0 = arith.constant 0 : index
    %0 = vector.load %arg1[%c0, %c0_0] : memref<32x1024xbf16, #tpu.memory_space<vmem>>, vector<32x1024xbf16>
    %c0_1 = arith.constant 0 : index
    %c0_2 = arith.constant 0 : index
    %1 = vector.load %arg2[%c0_1, %c0_2] : memref<1024x1024xbf16, #tpu.memory_space<vmem>>, vector<1024x1024xbf16>
    %cst = arith.constant dense<0.000000e+00> : vector<32x1024xf32>
    %2 = tpu.matmul %0, %1, %cst {dimension_numbers = #tpu.dot_dimension_numbers<[1], [0], [0], [1], [0, 0, 1, 1], [], []>} : vector<32x1024xbf16>, vector<1024x1024xbf16>, vector<32x1024xf32> -> vector<32x1024xf32>
    %c0_3 = arith.constant 0 : index
    %c0_4 = arith.constant 0 : index
    %3 = vector.load %arg3[%c0_3, %c0_4] : memref<1x1024xf32, #tpu.memory_space<vmem>>, vector<1x1024xf32>
    %4 = vector.broadcast %3 : vector<1x1024xf32> to vector<32x1024xf32>
    %5 = arith.mulf %2, %4 : vector<32x1024xf32>
    %c0_5 = arith.constant 0 : index
    %c0_6 = arith.constant 0 : index
    %6 = vector.load %arg4[%c0_5, %c0_6] : memref<1x1024xf32, #tpu.memory_space<vmem>>, vector<1x1024xf32>
    %7 = vector.broadcast %6 : vector<1x1024xf32> to vector<32x1024xf32>
    %8 = arith.addf %5, %7 : vector<32x1024xf32>
    %c0_7 = arith.constant 0 : index
    %c0_8 = arith.constant 0 : index
    %9 = vector.load %arg5[%c0_7, %c0_8] : memref<1x1xf32, #tpu.memory_space<vmem>>, vector<1x1xf32>
    %cst_9 = arith.constant 0.000000e+00 : f32
    %10 = vector.broadcast %cst_9 : f32 to vector<32x1024xf32>
    %11 = arith.cmpf oge, %8, %10 : vector<32x1024xf32>
    %12 = vector.broadcast %9 : vector<1x1xf32> to vector<32x1024xf32>
    %13 = arith.mulf %12, %8 : vector<32x1024xf32>
    %14 = arith.select %11, %8, %13 : vector<32x1024xi1>, vector<32x1024xf32>
    %15 = arith.truncf %14 : vector<32x1024xf32> to vector<32x1024xbf16>
    %c0_10 = arith.constant 0 : index
    %c0_11 = arith.constant 0 : index
    %16 = vector.load %arg6[%c0_10, %c0_11] : memref<32x1024xbf16, #tpu.memory_space<vmem>>, vector<32x1024xbf16>
    tpu.vector_store %arg6[%c0_10, %c0_11], %15 {strides = array<i32>} : memref<32x1024xbf16, #tpu.memory_space<vmem>>, vector<32x1024xbf16>,
    return
  }
  func.func @transform_0(%arg0: i32) -> (i32, i32) {
    %c0_i32 = arith.constant 0 : i32
    %c0_i32_0 = arith.constant 0 : i32
    return %arg0, %c0_i32 : i32, i32
  }
  func.func @transform_1(%arg0: i32) -> (i32, i32) {
    %c0_i32 = arith.constant 0 : i32
    %c0_i32_0 = arith.constant 0 : i32
    %c0_i32_1 = arith.constant 0 : i32
    return %c0_i32, %c0_i32_0 : i32, i32
  }
  func.func @transform_2(%arg0: i32) -> (i32, i32) {
    %c0_i32 = arith.constant 0 : i32
    %c0_i32_0 = arith.constant 0 : i32
    %c0_i32_1 = arith.constant 0 : i32
    return %c0_i32, %c0_i32_0 : i32, i32
  }
  func.func @transform_3(%arg0: i32) -> (i32, i32) {
    %c0_i32 = arith.constant 0 : i32
    %c0_i32_0 = arith.constant 0 : i32
    %c0_i32_1 = arith.constant 0 : i32
    return %c0_i32, %c0_i32_0 : i32, i32
  }
  func.func @transform_4(%arg0: i32) -> (i32, i32) {
    %c0_i32 = arith.constant 0 : i32
    %c0_i32_0 = arith.constant 0 : i32
    %c0_i32_1 = arith.constant 0 : i32
    return %c0_i32, %c0_i32_0 : i32, i32
  }
  func.func @transform_5(%arg0: i32) -> (i32, i32) {
    %c0_i32 = arith.constant 0 : i32
    %c0_i32_0 = arith.constant 0 : i32
    return %arg0, %c0_i32 : i32, i32
  }
}

</mosaic_0001>

<llo_original>
// kernel: tpu_custom_call.1
$region0: #{tpu_custom_call.1}
  #allocation0 [shape = 'u32[]', space=smem, size = 0x4, offset = 0x4, fixed_abs, tag = 'smem constant byte address 0x4 - core index']
  #allocation1 [shape = 'u32[72,128]{1,0:T(1,128)}', space=vmem, size = 0x9000, scoped, tag = 'internal scratch']
  #allocation2 [shape = 'f32[1,1]{1,0:T(1,128)S(1)}', space=vmem, size = 0x200, scoped, tag = 'scoped memory for tpu_custom_call.1']
  %s0 = inlined_call_operand.hbm [shape: bf16[32,1024], index: 0, kind: input, shape index: {}]
  %s1 = inlined_call_operand.hbm [shape: bf16[1024,1024], index: 1, kind: input, shape index: {}]
  %s2 = inlined_call_operand.hbm [shape: f32[1,1024], index: 2, kind: input, shape index: {}]
  %s3 = inlined_call_operand.hbm [shape: f32[1,1024], index: 3, kind: input, shape index: {}]
  %s4 = inlined_call_operand.<no memory space> [shape: f32[1,1], index: 4, kind: input, shape index: {}]
  %s5 = inlined_call_operand.hbm [shape: bf16[32,1024], index: 5, kind: output, shape index: {}]
  %s6 = sld [smem:[#allocation0]]
  $region46: #{tpu_custom_call.1} parent=0
    _
  %s8 = ssub.s32 1, %s6
  %s9 = scalar_select 0, %s8, %s6
  %v10 = vstv %s4
  %11 = vst [vmem:[#allocation2] sm:$0x1] %v10
  $region1: #{tpu_custom_call.1} parent=0
    #allocation3 [shape = 'u8[65536]{0}', space=vmem, size = 0x10000, scoped, tag = 'input window, operand 0, single buffered']
    #allocation4 [shape = 's32[1]{0}', space=sflag, size = 0x4, scoped, tag = 'scoped memory for tpu_custom_call.1']
    #allocation5 [shape = 's32[1]{0}', space=sflag, size = 0x4, scoped, tag = 'scoped memory for tpu_custom_call.1']
    #allocation6 [shape = 'u8[2097152]{0}', space=vmem, size = 0x200000, scoped, tag = 'input window, operand 1, single buffered']
    #allocation7 [shape = 's32[1]{0}', space=sflag, size = 0x4, scoped, tag = 'scoped memory for tpu_custom_call.1']
    #allocation8 [shape = 'u8[4096]{0}', space=vmem, size = 0x1000, scoped, tag = 'input window, operand 2, single buffered']
    #allocation9 [shape = 'u8[4096]{0}', space=vmem, size = 0x1000, scoped, tag = 'input window, operand 3, single buffered']
    #allocation10 [shape = 's32[1]{0}', space=sflag, size = 0x4, scoped, tag = 'scoped memory for tpu_custom_call.1']
    #allocation11 [shape = 'u8[65536]{0}', space=vmem, size = 0x10000, scoped, tag = 'output window, operand 0, single buffered']
    %12 = vsyncpa [#allocation4], 0
    %13 = vsyncpa [#allocation7], 0
    %14 = vsyncpa [#allocation10], 0
    %15 = vsyncpa [#allocation5], 0
    // Predicated region
    $region2: #{tpu_custom_call.1} parent=1 // pred_check
      _
    $region3: #{tpu_custom_call.1} parent=1 // pred_check_branch
      %17 = sbr.rel (0) target = $region5
    $region4: #{tpu_custom_call.1} parent=1 // pred_region
      %19 = vsyncadd [#allocation4], 0
      %s20 = sshll.u32 %s0, 4
      %s21 = int_to_ptr.hbm [resolvable:$true] %s20
      %s22 = sshll.u32 [#allocation3], 4
      %s23 = int_to_ptr.vmem [resolvable:$true] %s22
      %28 = dma.hbm_to_vmem [thread:$0]  %s21, 2048, %s23, [#allocation4], 512, 512, 32
    $region5: #{tpu_custom_call.1} parent=1 // pred_fallthru
      _
    // Predicated region
    $region6: #{tpu_custom_call.1} parent=1 // pred_check
      _
    $region7: #{tpu_custom_call.1} parent=1 // pred_check_branch
      %30 = sbr.rel (0) target = $region9
    $region8: #{tpu_custom_call.1} parent=1 // pred_region
      %32 = vsyncadd [#allocation7], 0
      %s33 = sshll.u32 %s1, 4
      %s34 = int_to_ptr.hbm [resolvable:$true] %s33
      %s35 = sshll.u32 [#allocation6], 4
      %s36 = int_to_ptr.vmem [resolvable:$true] %s35
      %41 = dma.hbm_to_vmem [thread:$0]  %s34, 65536, %s36, [#allocation7], 512, 512, 32
    $region9: #{tpu_custom_call.1} parent=1 // pred_fallthru
      _
    // Predicated region
    $region10: #{tpu_custom_call.1} parent=1 // pred_check
      _
    $region11: #{tpu_custom_call.1} parent=1 // pred_check_branch
      %43 = sbr.rel (0) target = $region13
    $region12: #{tpu_custom_call.1} parent=1 // pred_region
      %45 = vsyncadd [#allocation7], 0
      %s47 = sshll.u32 %s2, 4
      %s48 = int_to_ptr.hbm [resolvable:$true] %s47
      %s49 = sshll.u32 [#allocation8], 4
      %s50 = int_to_ptr.vmem [resolvable:$true] %s49
      %52 = dma.hbm_to_vmem [thread:$0]  %s48, 128, %s50, [#allocation7]
    $region13: #{tpu_custom_call.1} parent=1 // pred_fallthru
      _
    // Predicated region
    $region14: #{tpu_custom_call.1} parent=1 // pred_check
      _
    $region15: #{tpu_custom_call.1} parent=1 // pred_check_branch
      %54 = sbr.rel (0) target = $region17
    $region16: #{tpu_custom_call.1} parent=1 // pred_region
      %56 = vsyncadd [#allocation10], 0
      %s58 = sshll.u32 %s3, 4
      %s59 = int_to_ptr.hbm [resolvable:$true] %s58
      %s60 = sshll.u32 [#allocation9], 4
      %s61 = int_to_ptr.vmem [resolvable:$true] %s60
      %63 = dma.hbm_to_vmem [thread:$0]  %s59, 128, %s61, [#allocation10]
    $region17: #{tpu_custom_call.1} parent=1 // pred_fallthru
      _
    // Predicated region
    $region18: #{tpu_custom_call.1} parent=1 // pred_check
      _
    $region19: #{tpu_custom_call.1} parent=1 // pred_check_branch
      %65 = sbr.rel (0) target = $region21
    $region20: #{tpu_custom_call.1} parent=1 // pred_region
      _
    $region21: #{tpu_custom_call.1} parent=1 // pred_fallthru
      _
    // Predicated region
    $region22: #{tpu_custom_call.1} parent=1 // pred_check
      _
    $region23: #{tpu_custom_call.1} parent=1 // pred_check_branch
      %67 = sbr.rel (0) target = $region25
    $region24: #{tpu_custom_call.1} parent=1 // pred_region
      %69 = dma.done [#allocation4], 2048
    $region25: #{tpu_custom_call.1} parent=1 // pred_fallthru
      _
    // Predicated region
    $region26: #{tpu_custom_call.1} parent=1 // pred_check
      _
    $region27: #{tpu_custom_call.1} parent=1 // pred_check_branch
      %71 = sbr.rel (0) target = $region29
    $region28: #{tpu_custom_call.1} parent=1 // pred_region
      %73 = dma.done [#allocation7], 65536
    $region29: #{tpu_custom_call.1} parent=1 // pred_fallthru
      _
    // Predicated region
    $region30: #{tpu_custom_call.1} parent=1 // pred_check
      _
    $region31: #{tpu_custom_call.1} parent=1 // pred_check_branch
      %75 = sbr.rel (0) target = $region33
    $region32: #{tpu_custom_call.1} parent=1 // pred_region
      %77 = dma.done [#allocation7], 128
    $region33: #{tpu_custom_call.1} parent=1 // pred_fallthru
      _
    // Predicated region
    $region34: #{tpu_custom_call.1} parent=1 // pred_check
      _
    $region35: #{tpu_custom_call.1} parent=1 // pred_check_branch
      %79 = sbr.rel (0) target = $region37
    $region36: #{tpu_custom_call.1} parent=1 // pred_region
      %81 = dma.done [#allocation10], 128
    $region37: #{tpu_custom_call.1} parent=1 // pred_fallthru
      _
    %v82 = vld [vmem:[#allocation3] sm:$0xff]
    %v83 = vld [vmem:[#allocation3 + $0x8] sm:$0xff]
    %v84 = vld [vmem:[#allocation3 + $0x10] sm:$0xff]
    %v85 = vld [vmem:[#allocation3 + $0x18] sm:$0xff]
    %v86 = vld [vmem:[#allocation3 + $0x20] sm:$0xff]
    %v87 = vld [vmem:[#allocation3 + $0x28] sm:$0xff]
    %v88 = vld [vmem:[#allocation3 + $0x30] sm:$0xff]
    %v89 = vld [vmem:[#allocation3 + $0x38] sm:$0xff]
    %v90 = vld [vmem:[#allocation3 + $0x40] sm:$0xff]
    %v91 = vld [vmem:[#allocation3 + $0x48] sm:$0xff]
    %v92 = vld [vmem:[#allocation3 + $0x50] sm:$0xff]
    %v93 = vld [vmem:[#allocation3 + $0x58] sm:$0xff]
    %v94 = vld [vmem:[#allocation3 + $0x60] sm:$0xff]
    %v95 = vld [vmem:[#allocation3 + $0x68] sm:$0xff]
    %v96 = vld [vmem:[#allocation3 + $0x70] sm:$0xff]
    %v97 = vld [vmem:[#allocation3 + $0x78] sm:$0xff]
    %v98 = vld [vmem:[#allocation6] sm:$0xff]
    %v99 = vld [vmem:[#allocation6 + $0x8] sm:$0xff]
    %v100 = vld [vmem:[#allocation6 + $0x10] sm:$0xff]
    %v101 = vld [vmem:[#allocation6 + $0x18] sm:$0xff]
    %v102 = vld [vmem:[#allocation6 + $0x20] sm:$0xff]
    %v103 = vld [vmem:[#allocation6 + $0x28] sm:$0xff]
    %v104 = vld [vmem:[#allocation6 + $0x30] sm:$0xff]
    %v105 = vld [vmem:[#allocation6 + $0x38] sm:$0xff]
    %v106 = vld [vmem:[#allocation6 + $0x40] sm:$0xff]
    %v107 = vld [vmem:[#allocation6 + $0x48] sm:$0xff]
    %v108 = vld [vmem:[#allocation6 + $0x50] sm:$0xff]
    %v109 = vld [vmem:[#allocation6 + $0x58] sm:$0xff]
    %v110 = vld [vmem:[#allocation6 + $0x60] sm:$0xff]
    %v111 = vld [vmem:[#allocation6 + $0x68] sm:$0xff]
    %v112 = vld [vmem:[#allocation6 + $0x70] sm:$0xff]
    %v113 = vld [vmem:[#allocation6 + $0x78] sm:$0xff]
    %v114 = vld [vmem:[#allocation6 + $0x80] sm:$0xff]
    %v115 = vld [vmem:[#allocation6 + $0x88] sm:$0xff]
    %v116 = vld [vmem:[#allocation6 + $0x90] sm:$0xff]
    %v117 = vld [vmem:[#allocation6 + $0x98] sm:$0xff]
    %v118 = vld [vmem:[#allocation6 + $0xa0] sm:$0xff]
    %v119 = vld [vmem:[#allocation6 + $0xa8] sm:$0xff]
    %v120 = vld [vmem:[#allocation6 + $0xb0] sm:$0xff]
    %v121 = vld [vmem:[#allocation6 + $0xb8] sm:$0xff]
    %v122 = vld [vmem:[#allocation6 + $0xc0] sm:$0xff]
    %v123 = vld [vmem:[#allocation6 + $0xc8] sm:$0xff]
    %v124 = vld [vmem:[#allocation6 + $0xd0] sm:$0xff]
    %v125 = vld [vmem:[#allocation6 + $0xd8] sm:$0xff]
    %v126 = vld [vmem:[#allocation6 + $0xe0] sm:$0xff]
    %v127 = vld [vmem:[#allocation6 + $0xe8] sm:$0xff]
    %v128 = vld [vmem:[#allocation6 + $0xf0] sm:$0xff]
    %v129 = vld [vmem:[#allocation6 + $0xf8] sm:$0xff]
    %v130 = vld [vmem:[#allocation6 + $0x100] sm:$0xff]
    %v131 = vld [vmem:[#allocation6 + $0x108] sm:$0xff]
    %v132 = vld [vmem:[#allocation6 + $0x110] sm:$0xff]
    %v133 = vld [vmem:[#allocation6 + $0x118] sm:$0xff]
    %v134 = vld [vmem:[#allocation6 + $0x120] sm:$0xff]
    %v135 = vld [vmem:[#allocation6 + $0x128] sm:$0xff]
    %v136 = vld [vmem:[#allocation6 + $0x130] sm:$0xff]
    %v137 = vld [vmem:[#allocation6 + $0x138] sm:$0xff]
    %v138 = vld [vmem:[#allocation6 + $0x140] sm:$0xff]
    %v139 = vld [vmem:[#allocation6 + $0x148] sm:$0xff]
    %v140 = vld [vmem:[#allocation6 + $0x150] sm:$0xff]
    %v141 = vld [vmem:[#allocation6 + $0x158] sm:$0xff]
    %v142 = vld [vmem:[#allocation6 + $0x160] sm:$0xff]
    %v143 = vld [vmem:[#allocation6 + $0x168] sm:$0xff]
    %v144 = vld [vmem:[#allocation6 + $0x170] sm:$0xff]
    %v145 = vld [vmem:[#allocation6 + $0x178] sm:$0xff]
    %v146 = vld [vmem:[#allocation6 + $0x180] sm:$0xff]
    %v147 = vld [vmem:[#allocation6 + $0x188] sm:$0xff]
    %v148 = vld [vmem:[#allocation6 + $0x190] sm:$0xff]
    %v149 = vld [vmem:[#allocation6 + $0x198] sm:$0xff]
    %v150 = vld [vmem:[#allocation6 + $0x1a0] sm:$0xff]
    %v151 = vld [vmem:[#allocation6 + $0x1a8] sm:$0xff]
    %v152 = vld [vmem:[#allocation6 + $0x1b0] sm:$0xff]
    %v153 = vld [vmem:[#allocation6 + $0x1b8] sm:$0xff]
    %v154 = vld [vmem:[#allocation6 + $0x1c0] sm:$0xff]
    %v155 = vld [vmem:[#allocation6 + $0x1c8] sm:$0xff]
    %v156 = vld [vmem:[#allocation6 + $0x1d0] sm:$0xff]
    %v157 = vld [vmem:[#allocation6 + $0x1d8] sm:$0xff]
    %v158 = vld [vmem:[#allocation6 + $0x1e0] sm:$0xff]
    %v159 = vld [vmem:[#allocation6 + $0x1e8] sm:$0xff]
    %v160 = vld [vmem:[#allocation6 + $0x1f0] sm:$0xff]
    %v161 = vld [vmem:[#allocation6 + $0x1f8] sm:$0xff]
    %v162 = vld [vmem:[#allocation6 + $0x200] sm:$0xff]
    %v163 = vld [vmem:[#allocation6 + $0x208] sm:$0xff]
    %v164 = vld [vmem:[#allocation6 + $0x210] sm:$0xff]
    %v165 = vld [vmem:[#allocation6 + $0x218] sm:$0xff]
    %v166 = vld [vmem:[#allocation6 + $0x220] sm:$0xff]
    %v167 = vld [vmem:[#allocation6 + $0x228] sm:$0xff]
    %v168 = vld [vmem:[#allocation6 + $0x230] sm:$0xff]
    %v169 = vld [vmem:[#allocation6 + $0x238] sm:$0xff]
    %v170 = vld [vmem:[#allocation6 + $0x240] sm:$0xff]
    %v171 = vld [vmem:[#allocation6 + $0x248] sm:$0xff]
    %v172 = vld [vmem:[#allocation6 + $0x250] sm:$0xff]
    %v173 = vld [vmem:[#allocation6 + $0x258] sm:$0xff]
    %v174 = vld [vmem:[#allocation6 + $0x260] sm:$0xff]
    %v175 = vld [vmem:[#allocation6 + $0x268] sm:$0xff]
    %v176 = vld [vmem:[#allocation6 + $0x270] sm:$0xff]
    %v177 = vld [vmem:[#allocation6 + $0x278] sm:$0xff]
    %v178 = vld [vmem:[#allocation6 + $0x280] sm:$0xff]
    %v179 = vld [vmem:[#allocation6 + $0x288] sm:$0xff]
    %v180 = vld [vmem:[#allocation6 + $0x290] sm:$0xff]
    %v181 = vld [vmem:[#allocation6 + $0x298] sm:$0xff]
    %v182 = vld [vmem:[#allocation6 + $0x2a0] sm:$0xff]
    %v183 = vld [vmem:[#allocation6 + $0x2a8] sm:$0xff]
    %v184 = vld [vmem:[#allocation6 + $0x2b0] sm:$0xff]
    %v185 = vld [vmem:[#allocation6 + $0x2b8] sm:$0xff]
    %v186 = vld [vmem:[#allocation6 + $0x2c0] sm:$0xff]
    %v187 = vld [vmem:[#allocation6 + $0x2c8] sm:$0xff]
    %v188 = vld [vmem:[#allocation6 + $0x2d0] sm:$0xff]
    %v189 = vld [vmem:[#allocation6 + $0x2d8] sm:$0xff]
    %v190 = vld [vmem:[#allocation6 + $0x2e0] sm:$0xff]
    %v191 = vld [vmem:[#allocation6 + $0x2e8] sm:$0xff]
    %v192 = vld [vmem:[#allocation6 + $0x2f0] sm:$0xff]
    %v193 = vld [vmem:[#allocation6 + $0x2f8] sm:$0xff]
    %v194 = vld [vmem:[#allocation6 + $0x300] sm:$0xff]
    %v195 = vld [vmem:[#allocation6 + $0x308] sm:$0xff]
    %v196 = vld [vmem:[#allocation6 + $0x310] sm:$0xff]
    %v197 = vld [vmem:[#allocation6 + $0x318] sm:$0xff]
    %v198 = vld [vmem:[#allocation6 + $0x320] sm:$0xff]
    %v199 = vld [vmem:[#allocation6 + $0x328] sm:$0xff]
    %v200 = vld [vmem:[#allocation6 + $0x330] sm:$0xff]
    %v201 = vld [vmem:[#allocation6 + $0x338] sm:$0xff]
    %v202 = vld [vmem:[#allocation6 + $0x340] sm:$0xff]
    %v203 = vld [vmem:[#allocation6 + $0x348] sm:$0xff]
    %v204 = vld [vmem:[#allocation6 + $0x350] sm:$0xff]
    %v205 = vld [vmem:[#allocation6 + $0x358] sm:$0xff]
    %v206 = vld [vmem:[#allocation6 + $0x360] sm:$0xff]
    %v207 = vld [vmem:[#allocation6 + $0x368] sm:$0xff]
    %v208 = vld [vmem:[#allocation6 + $0x370] sm:$0xff]
    %v209 = vld [vmem:[#allocation6 + $0x378] sm:$0xff]
    %v210 = vld [vmem:[#allocation6 + $0x380] sm:$0xff]
    %v211 = vld [vmem:[#allocation6 + $0x388] sm:$0xff]
    %v212 = vld [vmem:[#allocation6 + $0x390] sm:$0xff]
    %v213 = vld [vmem:[#allocation6 + $0x398] sm:$0xff]
    %v214 = vld [vmem:[#allocation6 + $0x3a0] sm:$0xff]
    %v215 = vld [vmem:[#allocation6 + $0x3a8] sm:$0xff]
    %v216 = vld [vmem:[#allocation6 + $0x3b0] sm:$0xff]
    %v217 = vld [vmem:[#allocation6 + $0x3b8] sm:$0xff]
    %v218 = vld [vmem:[#allocation6 + $0x3c0] sm:$0xff]
    %v219 = vld [vmem:[#allocation6 + $0x3c8] sm:$0xff]
    %v220 = vld [vmem:[#allocation6 + $0x3d0] sm:$0xff]
    %v221 = vld [vmem:[#allocation6 + $0x3d8] sm:$0xff]
    %v222 = vld [vmem:[#allocation6 + $0x3e0] sm:$0xff]
    %v223 = vld [vmem:[#allocation6 + $0x3e8] sm:$0xff]
    %v224 = vld [vmem:[#allocation6 + $0x3f0] sm:$0xff]
    %v225 = vld [vmem:[#allocation6 + $0x3f8] sm:$0xff]
    %v226 = vld [vmem:[#allocation6 + $0x400] sm:$0xff]
    %v227 = vld [vmem:[#allocation6 + $0x408] sm:$0xff]
    %v228 = vld [vmem:[#allocation6 + $0x410] sm:$0xff]
    %v229 = vld [vmem:[#allocation6 + $0x418] sm:$0xff]
    %v230 = vld [vmem:[#allocation6 + $0x420] sm:$0xff]
    %v231 = vld [vmem:[#allocation6 + $0x428] sm:$0xff]
    %v232 = vld [vmem:[#allocation6 + $0x430] sm:$0xff]
    %v233 = vld [vmem:[#allocation6 + $0x438] sm:$0xff]
    %v234 = vld [vmem:[#allocation6 + $0x440] sm:$0xff]
    %v235 = vld [vmem:[#allocation6 + $0x448] sm:$0xff]
    %v236 = vld [vmem:[#allocation6 + $0x450] sm:$0xff]
    %v237 = vld [vmem:[#allocation6 + $0x458] sm:$0xff]
    %v238 = vld [vmem:[#allocation6 + $0x460] sm:$0xff]
    %v239 = vld [vmem:[#allocation6 + $0x468] sm:$0xff]
    %v240 = vld [vmem:[#allocation6 + $0x470] sm:$0xff]
    %v241 = vld [vmem:[#allocation6 + $0x478] sm:$0xff]
    %v242 = vld [vmem:[#allocation6 + $0x480] sm:$0xff]
    %v243 = vld [vmem:[#allocation6 + $0x488] sm:$0xff]
    %v244 = vld [vmem:[#allocation6 + $0x490] sm:$0xff]
    %v245 = vld [vmem:[#allocation6 + $0x498] sm:$0xff]
    %v246 = vld [vmem:[#allocation6 + $0x4a0] sm:$0xff]
    %v247 = vld [vmem:[#allocation6 + $0x4a8] sm:$0xff]
    %v248 = vld [vmem:[#allocation6 + $0x4b0] sm:$0xff]
    %v249 = vld [vmem:[#allocation6 + $0x4b8] sm:$0xff]
    %v250 = vld [vmem:[#allocation6 + $0x4c0] sm:$0xff]
    %v251 = vld [vmem:[#allocation6 + $0x4c8] sm:$0xff]
    %v252 = vld [vmem:[#allocation6 + $0x4d0] sm:$0xff]
    %v253 = vld [vmem:[#allocation6 + $0x4d8] sm:$0xff]
    %v254 = vld [vmem:[#allocation6 + $0x4e0] sm:$0xff]
    %v255 = vld [vmem:[#allocation6 + $0x4e8] sm:$0xff]
    %v256 = vld [vmem:[#allocation6 + $0x4f0] sm:$0xff]
    %v257 = vld [vmem:[#allocation6 + $0x4f8] sm:$0xff]
    %v258 = vld [vmem:[#allocation6 + $0x500] sm:$0xff]
    %v259 = vld [vmem:[#allocation6 + $0x508] sm:$0xff]
    %v260 = vld [vmem:[#allocation6 + $0x510] sm:$0xff]
    %v261 = vld [vmem:[#allocation6 + $0x518] sm:$0xff]
    %v262 = vld [vmem:[#allocation6 + $0x520] sm:$0xff]
    %v263 = vld [vmem:[#allocation6 + $0x528] sm:$0xff]
    %v264 = vld [vmem:[#allocation6 + $0x530] sm:$0xff]
    %v265 = vld [vmem:[#allocation6 + $0x538] sm:$0xff]
    %v266 = vld [vmem:[#allocation6 + $0x540] sm:$0xff]
    %v267 = vld [vmem:[#allocation6 + $0x548] sm:$0xff]
    %v268 = vld [vmem:[#allocation6 + $0x550] sm:$0xff]
    %v269 = vld [vmem:[#allocation6 + $0x558] sm:$0xff]
    %v270 = vld [vmem:[#allocation6 + $0x560] sm:$0xff]
    %v271 = vld [vmem:[#allocation6 + $0x568] sm:$0xff]
    %v272 = vld [vmem:[#allocation6 + $0x570] sm:$0xff]
    %v273 = vld [vmem:[#allocation6 + $0x578] sm:$0xff]
    %v274 = vld [vmem:[#allocation6 + $0x580] sm:$0xff]
    %v275 = vld [vmem:[#allocation6 + $0x588] sm:$0xff]
    %v276 = vld [vmem:[#allocation6 + $0x590] sm:$0xff]
    %v277 = vld [vmem:[#allocation6 + $0x598] sm:$0xff]
    %v278 = vld [vmem:[#allocation6 + $0x5a0] sm:$0xff]
    %v279 = vld [vmem:[#allocation6 + $0x5a8] sm:$0xff]
    %v280 = vld [vmem:[#allocation6 + $0x5b0] sm:$0xff]
    %v281 = vld [vmem:[#allocation6 + $0x5b8] sm:$0xff]
    %v282 = vld [vmem:[#allocation6 + $0x5c0] sm:$0xff]
    %v283 = vld [vmem:[#allocation6 + $0x5c8] sm:$0xff]
    %v284 = vld [vmem:[#allocation6 + $0x5d0] sm:$0xff]
    %v285 = vld [vmem:[#allocation6 + $0x5d8] sm:$0xff]
    %v286 = vld [vmem:[#allocation6 + $0x5e0] sm:$0xff]
    %v287 = vld [vmem:[#allocation6 + $0x5e8] sm:$0xff]
    %v288 = vld [vmem:[#allocation6 + $0x5f0] sm:$0xff]
    %v289 = vld [vmem:[#allocation6 + $0x5f8] sm:$0xff]
    %v290 = vld [vmem:[#allocation6 + $0x600] sm:$0xff]
    %v291 = vld [vmem:[#allocation6 + $0x608] sm:$0xff]
    %v292 = vld [vmem:[#allocation6 + $0x610] sm:$0xff]
    %v293 = vld [vmem:[#allocation6 + $0x618] sm:$0xff]
    %v294 = vld [vmem:[#allocation6 + $0x620] sm:$0xff]
    %v295 = vld [vmem:[#allocation6 + $0x628] sm:$0xff]
    %v296 = vld [vmem:[#allocation6 + $0x630] sm:$0xff]
    %v297 = vld [vmem:[#allocation6 + $0x638] sm:$0xff]
    %v298 = vld [vmem:[#allocation6 + $0x640] sm:$0xff]
    %v299 = vld [vmem:[#allocation6 + $0x648] sm:$0xff]
    %v300 = vld [vmem:[#allocation6 + $0x650] sm:$0xff]
    %v301 = vld [vmem:[#allocation6 + $0x658] sm:$0xff]
    %v302 = vld [vmem:[#allocation6 + $0x660] sm:$0xff]
    %v303 = vld [vmem:[#allocation6 + $0x668] sm:$0xff]
    %v304 = vld [vmem:[#allocation6 + $0x670] sm:$0xff]
    %v305 = vld [vmem:[#allocation6 + $0x678] sm:$0xff]
    %v306 = vld [vmem:[#allocation6 + $0x680] sm:$0xff]
    %v307 = vld [vmem:[#allocation6 + $0x688] sm:$0xff]
    %v308 = vld [vmem:[#allocation6 + $0x690] sm:$0xff]
    %v309 = vld [vmem:[#allocation6 + $0x698] sm:$0xff]
    %v310 = vld [vmem:[#allocation6 + $0x6a0] sm:$0xff]
    %v311 = vld [vmem:[#allocation6 + $0x6a8] sm:$0xff]
    %v312 = vld [vmem:[#allocation6 + $0x6b0] sm:$0xff]
    %v313 = vld [vmem:[#allocation6 + $0x6b8] sm:$0xff]
    %v314 = vld [vmem:[#allocation6 + $0x6c0] sm:$0xff]
    %v315 = vld [vmem:[#allocation6 + $0x6c8] sm:$0xff]
    %v316 = vld [vmem:[#allocation6 + $0x6d0] sm:$0xff]
    %v317 = vld [vmem:[#allocation6 + $0x6d8] sm:$0xff]
    %v318 = vld [vmem:[#allocation6 + $0x6e0] sm:$0xff]
    %v319 = vld [vmem:[#allocation6 + $0x6e8] sm:$0xff]
    %v320 = vld [vmem:[#allocation6 + $0x6f0] sm:$0xff]
    %v321 = vld [vmem:[#allocation6 + $0x6f8] sm:$0xff]
    %v322 = vld [vmem:[#allocation6 + $0x700] sm:$0xff]
    %v323 = vld [vmem:[#allocation6 + $0x708] sm:$0xff]
    %v324 = vld [vmem:[#allocation6 + $0x710] sm:$0xff]
    %v325 = vld [vmem:[#allocation6 + $0x718] sm:$0xff]
    %v326 = vld [vmem:[#allocation6 + $0x720] sm:$0xff]
    %v327 = vld [vmem:[#allocation6 + $0x728] sm:$0xff]
    %v328 = vld [vmem:[#allocation6 + $0x730] sm:$0xff]
    %v329 = vld [vmem:[#allocation6 + $0x738] sm:$0xff]
    %v330 = vld [vmem:[#allocation6 + $0x740] sm:$0xff]
    %v331 = vld [vmem:[#allocation6 + $0x748] sm:$0xff]
    %v332 = vld [vmem:[#allocation6 + $0x750] sm:$0xff]
    %v333 = vld [vmem:[#allocation6 + $0x758] sm:$0xff]
    %v334 = vld [vmem:[#allocation6 + $0x760] sm:$0xff]
    %v335 = vld [vmem:[#allocation6 + $0x768] sm:$0xff]
    %v336 = vld [vmem:[#allocation6 + $0x770] sm:$0xff]
    %v337 = vld [vmem:[#allocation6 + $0x778] sm:$0xff]
    %v338 = vld [vmem:[#allocation6 + $0x780] sm:$0xff]
    %v339 = vld [vmem:[#allocation6 + $0x788] sm:$0xff]
    %v340 = vld [vmem:[#allocation6 + $0x790] sm:$0xff]
    %v341 = vld [vmem:[#allocation6 + $0x798] sm:$0xff]
    %v342 = vld [vmem:[#allocation6 + $0x7a0] sm:$0xff]
    %v343 = vld [vmem:[#allocation6 + $0x7a8] sm:$0xff]
    %v344 = vld [vmem:[#allocation6 + $0x7b0] sm:$0xff]
    %v345 = vld [vmem:[#allocation6 + $0x7b8] sm:$0xff]
    %v346 = vld [vmem:[#allocation6 + $0x7c0] sm:$0xff]
    %v347 = vld [vmem:[#allocation6 + $0x7c8] sm:$0xff]
    %v348 = vld [vmem:[#allocation6 + $0x7d0] sm:$0xff]
    %v349 = vld [vmem:[#allocation6 + $0x7d8] sm:$0xff]
    %v350 = vld [vmem:[#allocation6 + $0x7e0] sm:$0xff]
    %v351 = vld [vmem:[#allocation6 + $0x7e8] sm:$0xff]
    %v352 = vld [vmem:[#allocation6 + $0x7f0] sm:$0xff]
    %v353 = vld [vmem:[#allocation6 + $0x7f8] sm:$0xff]
    %v354 = vld [vmem:[#allocation6 + $0x800] sm:$0xff]
    %v355 = vld [vmem:[#allocation6 + $0x808] sm:$0xff]
    %v356 = vld [vmem:[#allocation6 + $0x810] sm:$0xff]
    %v357 = vld [vmem:[#allocation6 + $0x818] sm:$0xff]
    %v358 = vld [vmem:[#allocation6 + $0x820] sm:$0xff]
    %v359 = vld [vmem:[#allocation6 + $0x828] sm:$0xff]
    %v360 = vld [vmem:[#allocation6 + $0x830] sm:$0xff]
    %v361 = vld [vmem:[#allocation6 + $0x838] sm:$0xff]
    %v362 = vld [vmem:[#allocation6 + $0x840] sm:$0xff]
    %v363 = vld [vmem:[#allocation6 + $0x848] sm:$0xff]
    %v364 = vld [vmem:[#allocation6 + $0x850] sm:$0xff]
    %v365 = vld [vmem:[#allocation6 + $0x858] sm:$0xff]
    %v366 = vld [vmem:[#allocation6 + $0x860] sm:$0xff]
    %v367 = vld [vmem:[#allocation6 + $0x868] sm:$0xff]
    %v368 = vld [vmem:[#allocation6 + $0x870] sm:$0xff]
    %v369 = vld [vmem:[#allocation6 + $0x878] sm:$0xff]
    %v370 = vld [vmem:[#allocation6 + $0x880] sm:$0xff]
    %v371 = vld [vmem:[#allocation6 + $0x888] sm:$0xff]
    %v372 = vld [vmem:[#allocation6 + $0x890] sm:$0xff]
    %v373 = vld [vmem:[#allocation6 + $0x898] sm:$0xff]
    %v374 = vld [vmem:[#allocation6 + $0x8a0] sm:$0xff]
    %v375 = vld [vmem:[#allocation6 + $0x8a8] sm:$0xff]
    %v376 = vld [vmem:[#allocation6 + $0x8b0] sm:$0xff]
    %v377 = vld [vmem:[#allocation6 + $0x8b8] sm:$0xff]
    %v378 = vld [vmem:[#allocation6 + $0x8c0] sm:$0xff]
    %v379 = vld [vmem:[#allocation6 + $0x8c8] sm:$0xff]
    %v380 = vld [vmem:[#allocation6 + $0x8d0] sm:$0xff]
    %v381 = vld [vmem:[#allocation6 + $0x8d8] sm:$0xff]
    %v382 = vld [vmem:[#allocation6 + $0x8e0] sm:$0xff]
    %v383 = vld [vmem:[#allocation6 + $0x8e8] sm:$0xff]
    %v384 = vld [vmem:[#allocation6 + $0x8f0] sm:$0xff]
    %v385 = vld [vmem:[#allocation6 + $0x8f8] sm:$0xff]
    %v386 = vld [vmem:[#allocation6 + $0x900] sm:$0xff]
    %v387 = vld [vmem:[#allocation6 + $0x908] sm:$0xff]
    %v388 = vld [vmem:[#allocation6 + $0x910] sm:$0xff]
    %v389 = vld [vmem:[#allocation6 + $0x918] sm:$0xff]
    %v390 = vld [vmem:[#allocation6 + $0x920] sm:$0xff]
    %v391 = vld [vmem:[#allocation6 + $0x928] sm:$0xff]
    %v392 = vld [vmem:[#allocation6 + $0x930] sm:$0xff]
    %v393 = vld [vmem:[#allocation6 + $0x938] sm:$0xff]
    %v394 = vld [vmem:[#allocation6 + $0x940] sm:$0xff]
    %v395 = vld [vmem:[#allocation6 + $0x948] sm:$0xff]
    %v396 = vld [vmem:[#allocation6 + $0x950] sm:$0xff]
    %v397 = vld [vmem:[#allocation6 + $0x958] sm:$0xff]
    %v398 = vld [vmem:[#allocation6 + $0x960] sm:$0xff]
    %v399 = vld [vmem:[#allocation6 + $0x968] sm:$0xff]
    %v400 = vld [vmem:[#allocation6 + $0x970] sm:$0xff]
    %v401 = vld [vmem:[#allocation6 + $0x978] sm:$0xff]
    %v402 = vld [vmem:[#allocation6 + $0x980] sm:$0xff]
    %v403 = vld [vmem:[#allocation6 + $0x988] sm:$0xff]
    %v404 = vld [vmem:[#allocation6 + $0x990] sm:$0xff]
    %v405 = vld [vmem:[#allocation6 + $0x998] sm:$0xff]
    %v406 = vld [vmem:[#allocation6 + $0x9a0] sm:$0xff]
    %v407 = vld [vmem:[#allocation6 + $0x9a8] sm:$0xff]
    %v408 = vld [vmem:[#allocation6 + $0x9b0] sm:$0xff]
    %v409 = vld [vmem:[#allocation6 + $0x9b8] sm:$0xff]
    %v410 = vld [vmem:[#allocation6 + $0x9c0] sm:$0xff]
    %v411 = vld [vmem:[#allocation6 + $0x9c8] sm:$0xff]
    %v412 = vld [vmem:[#allocation6 + $0x9d0] sm:$0xff]
    %v413 = vld [vmem:[#allocation6 + $0x9d8] sm:$0xff]
    %v414 = vld [vmem:[#allocation6 + $0x9e0] sm:$0xff]
    %v415 = vld [vmem:[#allocation6 + $0x9e8] sm:$0xff]
    %v416 = vld [vmem:[#allocation6 + $0x9f0] sm:$0xff]
    %v417 = vld [vmem:[#allocation6 + $0x9f8] sm:$0xff]
    %v418 = vld [vmem:[#allocation6 + $0xa00] sm:$0xff]
    %v419 = vld [vmem:[#allocation6 + $0xa08] sm:$0xff]
    %v420 = vld [vmem:[#allocation6 + $0xa10] sm:$0xff]
    %v421 = vld [vmem:[#allocation6 + $0xa18] sm:$0xff]
    %v422 = vld [vmem:[#allocation6 + $0xa20] sm:$0xff]
    %v423 = vld [vmem:[#allocation6 + $0xa28] sm:$0xff]
    %v424 = vld [vmem:[#allocation6 + $0xa30] sm:$0xff]
    %v425 = vld [vmem:[#allocation6 + $0xa38] sm:$0xff]
    %v426 = vld [vmem:[#allocation6 + $0xa40] sm:$0xff]
    %v427 = vld [vmem:[#allocation6 + $0xa48] sm:$0xff]
    %v428 = vld [vmem:[#allocation6 + $0xa50] sm:$0xff]
    %v429 = vld [vmem:[#allocation6 + $0xa58] sm:$0xff]
    %v430 = vld [vmem:[#allocation6 + $0xa60] sm:$0xff]
    %v431 = vld [vmem:[#allocation6 + $0xa68] sm:$0xff]
    %v432 = vld [vmem:[#allocation6 + $0xa70] sm:$0xff]
    %v433 = vld [vmem:[#allocation6 + $0xa78] sm:$0xff]
    %v434 = vld [vmem:[#allocation6 + $0xa80] sm:$0xff]
    %v435 = vld [vmem:[#allocation6 + $0xa88] sm:$0xff]
    %v436 = vld [vmem:[#allocation6 + $0xa90] sm:$0xff]
    %v437 = vld [vmem:[#allocation6 + $0xa98] sm:$0xff]
    %v438 = vld [vmem:[#allocation6 + $0xaa0] sm:$0xff]
    %v439 = vld [vmem:[#allocation6 + $0xaa8] sm:$0xff]
    %v440 = vld [vmem:[#allocation6 + $0xab0] sm:$0xff]
    %v441 = vld [vmem:[#allocation6 + $0xab8] sm:$0xff]
    %v442 = vld [vmem:[#allocation6 + $0xac0] sm:$0xff]
    %v443 = vld [vmem:[#allocation6 + $0xac8] sm:$0xff]
    %v444 = vld [vmem:[#allocation6 + $0xad0] sm:$0xff]
    %v445 = vld [vmem:[#allocation6 + $0xad8] sm:$0xff]
    %v446 = vld [vmem:[#allocation6 + $0xae0] sm:$0xff]
    %v447 = vld [vmem:[#allocation6 + $0xae8] sm:$0xff]
    %v448 = vld [vmem:[#allocation6 + $0xaf0] sm:$0xff]
    %v449 = vld [vmem:[#allocation6 + $0xaf8] sm:$0xff]
    %v450 = vld [vmem:[#allocation6 + $0xb00] sm:$0xff]
    %v451 = vld [vmem:[#allocation6 + $0xb08] sm:$0xff]
    %v452 = vld [vmem:[#allocation6 + $0xb10] sm:$0xff]
    %v453 = vld [vmem:[#allocation6 + $0xb18] sm:$0xff]
    %v454 = vld [vmem:[#allocation6 + $0xb20] sm:$0xff]
    %v455 = vld [vmem:[#allocation6 + $0xb28] sm:$0xff]
    %v456 = vld [vmem:[#allocation6 + $0xb30] sm:$0xff]
    %v457 = vld [vmem:[#allocation6 + $0xb38] sm:$0xff]
    %v458 = vld [vmem:[#allocation6 + $0xb40] sm:$0xff]
    %v459 = vld [vmem:[#allocation6 + $0xb48] sm:$0xff]
    %v460 = vld [vmem:[#allocation6 + $0xb50] sm:$0xff]
    %v461 = vld [vmem:[#allocation6 + $0xb58] sm:$0xff]
    %v462 = vld [vmem:[#allocation6 + $0xb60] sm:$0xff]
    %v463 = vld [vmem:[#allocation6 + $0xb68] sm:$0xff]
    %v464 = vld [vmem:[#allocation6 + $0xb70] sm:$0xff]
    %v465 = vld [vmem:[#allocation6 + $0xb78] sm:$0xff]
    %v466 = vld [vmem:[#allocation6 + $0xb80] sm:$0xff]
    %v467 = vld [vmem:[#allocation6 + $0xb88] sm:$0xff]
    %v468 = vld [vmem:[#allocation6 + $0xb90] sm:$0xff]
    %v469 = vld [vmem:[#allocation6 + $0xb98] sm:$0xff]
    %v470 = vld [vmem:[#allocation6 + $0xba0] sm:$0xff]
    %v471 = vld [vmem:[#allocation6 + $0xba8] sm:$0xff]
    %v472 = vld [vmem:[#allocation6 + $0xbb0] sm:$0xff]
    %v473 = vld [vmem:[#allocation6 + $0xbb8] sm:$0xff]
    %v474 = vld [vmem:[#allocation6 + $0xbc0] sm:$0xff]
    %v475 = vld [vmem:[#allocation6 + $0xbc8] sm:$0xff]
    %v476 = vld [vmem:[#allocation6 + $0xbd0] sm:$0xff]
    %v477 = vld [vmem:[#allocation6 + $0xbd8] sm:$0xff]
    %v478 = vld [vmem:[#allocation6 + $0xbe0] sm:$0xff]
    %v479 = vld [vmem:[#allocation6 + $0xbe8] sm:$0xff]
    %v480 = vld [vmem:[#allocation6 + $0xbf0] sm:$0xff]
    %v481 = vld [vmem:[#allocation6 + $0xbf8] sm:$0xff]
    %v482 = vld [vmem:[#allocation6 + $0xc00] sm:$0xff]
    %v483 = vld [vmem:[#allocation6 + $0xc08] sm:$0xff]
    %v484 = vld [vmem:[#allocation6 + $0xc10] sm:$0xff]
    %v485 = vld [vmem:[#allocation6 + $0xc18] sm:$0xff]
    %v486 = vld [vmem:[#allocation6 + $0xc20] sm:$0xff]
    %v487 = vld [vmem:[#allocation6 + $0xc28] sm:$0xff]
    %v488 = vld [vmem:[#allocation6 + $0xc30] sm:$0xff]
    %v489 = vld [vmem:[#allocation6 + $0xc38] sm:$0xff]
    %v490 = vld [vmem:[#allocation6 + $0xc40] sm:$0xff]
    %v491 = vld [vmem:[#allocation6 + $0xc48] sm:$0xff]
    %v492 = vld [vmem:[#allocation6 + $0xc50] sm:$0xff]
    %v493 = vld [vmem:[#allocation6 + $0xc58] sm:$0xff]
    %v494 = vld [vmem:[#allocation6 + $0xc60] sm:$0xff]
    %v495 = vld [vmem:[#allocation6 + $0xc68] sm:$0xff]
    %v496 = vld [vmem:[#allocation6 + $0xc70] sm:$0xff]
    %v497 = vld [vmem:[#allocation6 + $0xc78] sm:$0xff]
    %v498 = vld [vmem:[#allocation6 + $0xc80] sm:$0xff]
    %v499 = vld [vmem:[#allocation6 + $0xc88] sm:$0xff]
    %v500 = vld [vmem:[#allocation6 + $0xc90] sm:$0xff]
    %v501 = vld [vmem:[#allocation6 + $0xc98] sm:$0xff]
    %v502 = vld [vmem:[#allocation6 + $0xca0] sm:$0xff]
    %v503 = vld [vmem:[#allocation6 + $0xca8] sm:$0xff]
    %v504 = vld [vmem:[#allocation6 + $0xcb0] sm:$0xff]
    %v505 = vld [vmem:[#allocation6 + $0xcb8] sm:$0xff]
    %v506 = vld [vmem:[#allocation6 + $0xcc0] sm:$0xff]
    %v507 = vld [vmem:[#allocation6 + $0xcc8] sm:$0xff]
    %v508 = vld [vmem:[#allocation6 + $0xcd0] sm:$0xff]
    %v509 = vld [vmem:[#allocation6 + $0xcd8] sm:$0xff]
    %v510 = vld [vmem:[#allocation6 + $0xce0] sm:$0xff]
    %v511 = vld [vmem:[#allocation6 + $0xce8] sm:$0xff]
    %v512 = vld [vmem:[#allocation6 + $0xcf0] sm:$0xff]
    %v513 = vld [vmem:[#allocation6 + $0xcf8] sm:$0xff]
    %v514 = vld [vmem:[#allocation6 + $0xd00] sm:$0xff]
    %v515 = vld [vmem:[#allocation6 + $0xd08] sm:$0xff]
    %v516 = vld [vmem:[#allocation6 + $0xd10] sm:$0xff]
    %v517 = vld [vmem:[#allocation6 + $0xd18] sm:$0xff]
    %v518 = vld [vmem:[#allocation6 + $0xd20] sm:$0xff]
    %v519 = vld [vmem:[#allocation6 + $0xd28] sm:$0xff]
    %v520 = vld [vmem:[#allocation6 + $0xd30] sm:$0xff]
    %v521 = vld [vmem:[#allocation6 + $0xd38] sm:$0xff]
    %v522 = vld [vmem:[#allocation6 + $0xd40] sm:$0xff]
    %v523 = vld [vmem:[#allocation6 + $0xd48] sm:$0xff]
    %v524 = vld [vmem:[#allocation6 + $0xd50] sm:$0xff]
    %v525 = vld [vmem:[#allocation6 + $0xd58] sm:$0xff]
    %v526 = vld [vmem:[#allocation6 + $0xd60] sm:$0xff]
    %v527 = vld [vmem:[#allocation6 + $0xd68] sm:$0xff]
    %v528 = vld [vmem:[#allocation6 + $0xd70] sm:$0xff]
    %v529 = vld [vmem:[#allocation6 + $0xd78] sm:$0xff]
    %v530 = vld [vmem:[#allocation6 + $0xd80] sm:$0xff]
    %v531 = vld [vmem:[#allocation6 + $0xd88] sm:$0xff]
    %v532 = vld [vmem:[#allocation6 + $0xd90] sm:$0xff]
    %v533 = vld [vmem:[#allocation6 + $0xd98] sm:$0xff]
    %v534 = vld [vmem:[#allocation6 + $0xda0] sm:$0xff]
    %v535 = vld [vmem:[#allocation6 + $0xda8] sm:$0xff]
    %v536 = vld [vmem:[#allocation6 + $0xdb0] sm:$0xff]
    %v537 = vld [vmem:[#allocation6 + $0xdb8] sm:$0xff]
    %v538 = vld [vmem:[#allocation6 + $0xdc0] sm:$0xff]
    %v539 = vld [vmem:[#allocation6 + $0xdc8] sm:$0xff]
    %v540 = vld [vmem:[#allocation6 + $0xdd0] sm:$0xff]
    %v541 = vld [vmem:[#allocation6 + $0xdd8] sm:$0xff]
    %v542 = vld [vmem:[#allocation6 + $0xde0] sm:$0xff]
    %v543 = vld [vmem:[#allocation6 + $0xde8] sm:$0xff]
    %v544 = vld [vmem:[#allocation6 + $0xdf0] sm:$0xff]
    %v545 = vld [vmem:[#allocation6 + $0xdf8] sm:$0xff]
    %v546 = vld [vmem:[#allocation6 + $0xe00] sm:$0xff]
    %v547 = vld [vmem:[#allocation6 + $0xe08] sm:$0xff]
    %v548 = vld [vmem:[#allocation6 + $0xe10] sm:$0xff]
    %v549 = vld [vmem:[#allocation6 + $0xe18] sm:$0xff]
    %v550 = vld [vmem:[#allocation6 + $0xe20] sm:$0xff]
    %v551 = vld [vmem:[#allocation6 + $0xe28] sm:$0xff]
    %v552 = vld [vmem:[#allocation6 + $0xe30] sm:$0xff]
    %v553 = vld [vmem:[#allocation6 + $0xe38] sm:$0xff]
    %v554 = vld [vmem:[#allocation6 + $0xe40] sm:$0xff]
    %v555 = vld [vmem:[#allocation6 + $0xe48] sm:$0xff]
    %v556 = vld [vmem:[#allocation6 + $0xe50] sm:$0xff]
    %v557 = vld [vmem:[#allocation6 + $0xe58] sm:$0xff]
    %v558 = vld [vmem:[#allocation6 + $0xe60] sm:$0xff]
    %v559 = vld [vmem:[#allocation6 + $0xe68] sm:$0xff]
    %v560 = vld [vmem:[#allocation6 + $0xe70] sm:$0xff]
    %v561 = vld [vmem:[#allocation6 + $0xe78] sm:$0xff]
    %v562 = vld [vmem:[#allocation6 + $0xe80] sm:$0xff]
    %v563 = vld [vmem:[#allocation6 + $0xe88] sm:$0xff]
    %v564 = vld [vmem:[#allocation6 + $0xe90] sm:$0xff]
    %v565 = vld [vmem:[#allocation6 + $0xe98] sm:$0xff]
    %v566 = vld [vmem:[#allocation6 + $0xea0] sm:$0xff]
    %v567 = vld [vmem:[#allocation6 + $0xea8] sm:$0xff]
    %v568 = vld [vmem:[#allocation6 + $0xeb0] sm:$0xff]
    %v569 = vld [vmem:[#allocation6 + $0xeb8] sm:$0xff]
    %v570 = vld [vmem:[#allocation6 + $0xec0] sm:$0xff]
    %v571 = vld [vmem:[#allocation6 + $0xec8] sm:$0xff]
    %v572 = vld [vmem:[#allocation6 + $0xed0] sm:$0xff]
    %v573 = vld [vmem:[#allocation6 + $0xed8] sm:$0xff]
    %v574 = vld [vmem:[#allocation6 + $0xee0] sm:$0xff]
    %v575 = vld [vmem:[#allocation6 + $0xee8] sm:$0xff]
    %v576 = vld [vmem:[#allocation6 + $0xef0] sm:$0xff]
    %v577 = vld [vmem:[#allocation6 + $0xef8] sm:$0xff]
    %v578 = vld [vmem:[#allocation6 + $0xf00] sm:$0xff]
    %v579 = vld [vmem:[#allocation6 + $0xf08] sm:$0xff]
    %v580 = vld [vmem:[#allocation6 + $0xf10] sm:$0xff]
    %v581 = vld [vmem:[#allocation6 + $0xf18] sm:$0xff]
    %v582 = vld [vmem:[#allocation6 + $0xf20] sm:$0xff]
    %v583 = vld [vmem:[#allocation6 + $0xf28] sm:$0xff]
    %v584 = vld [vmem:[#allocation6 + $0xf30] sm:$0xff]
    %v585 = vld [vmem:[#allocation6 + $0xf38] sm:$0xff]
    %v586 = vld [vmem:[#allocation6 + $0xf40] sm:$0xff]
    %v587 = vld [vmem:[#allocation6 + $0xf48] sm:$0xff]
    %v588 = vld [vmem:[#allocation6 + $0xf50] sm:$0xff]
    %v589 = vld [vmem:[#allocation6 + $0xf58] sm:$0xff]
    %v590 = vld [vmem:[#allocation6 + $0xf60] sm:$0xff]
    %v591 = vld [vmem:[#allocation6 + $0xf68] sm:$0xff]
    %v592 = vld [vmem:[#allocation6 + $0xf70] sm:$0xff]
    %v593 = vld [vmem:[#allocation6 + $0xf78] sm:$0xff]
    %v594 = vld [vmem:[#allocation6 + $0xf80] sm:$0xff]
    %v595 = vld [vmem:[#allocation6 + $0xf88] sm:$0xff]
    %v596 = vld [vmem:[#allocation6 + $0xf90] sm:$0xff]
    %v597 = vld [vmem:[#allocation6 + $0xf98] sm:$0xff]
    %v598 = vld [vmem:[#allocation6 + $0xfa0] sm:$0xff]
    %v599 = vld [vmem:[#allocation6 + $0xfa8] sm:$0xff]
    %v600 = vld [vmem:[#allocation6 + $0xfb0] sm:$0xff]
    %v601 = vld [vmem:[#allocation6 + $0xfb8] sm:$0xff]
    %v602 = vld [vmem:[#allocation6 + $0xfc0] sm:$0xff]
    %v603 = vld [vmem:[#allocation6 + $0xfc8] sm:$0xff]
    %v604 = vld [vmem:[#allocation6 + $0xfd0] sm:$0xff]
    %v605 = vld [vmem:[#allocation6 + $0xfd8] sm:$0xff]
    %v606 = vld [vmem:[#allocation6 + $0xfe0] sm:$0xff]
    %v607 = vld [vmem:[#allocation6 + $0xfe8] sm:$0xff]
    %v608 = vld [vmem:[#allocation6 + $0xff0] sm:$0xff]
    %v609 = vld [vmem:[#allocation6 + $0xff8] sm:$0xff]
    %v626 = vunpack.c.l.b16 %v82
    %v627 = vunpack.c.h.b16 %v82
    %v628 = vunpack.c.l.b16 %v83
    %v629 = vunpack.c.h.b16 %v83
    %v630 = vunpack.c.l.b16 %v84
    %v631 = vunpack.c.h.b16 %v84
    %v632 = vunpack.c.l.b16 %v85
    %v633 = vunpack.c.h.b16 %v85
    %v634 = vunpack.c.l.b16 %v86
    %v635 = vunpack.c.h.b16 %v86
    %v636 = vunpack.c.l.b16 %v87
    %v637 = vunpack.c.h.b16 %v87
    %v638 = vunpack.c.l.b16 %v88
    %v639 = vunpack.c.h.b16 %v88
    %v640 = vunpack.c.l.b16 %v89
    %v641 = vunpack.c.h.b16 %v89
    %v642 = vunpack.c.l.b16 %v90
    %v643 = vunpack.c.h.b16 %v90
    %v644 = vunpack.c.l.b16 %v91
    %v645 = vunpack.c.h.b16 %v91
    %v646 = vunpack.c.l.b16 %v92
    %v647 = vunpack.c.h.b16 %v92
    %v648 = vunpack.c.l.b16 %v93
    %v649 = vunpack.c.h.b16 %v93
    %v650 = vunpack.c.l.b16 %v94
    %v651 = vunpack.c.h.b16 %v94
    %v652 = vunpack.c.l.b16 %v95
    %v653 = vunpack.c.h.b16 %v95
    %v654 = vunpack.c.l.b16 %v96
    %v655 = vunpack.c.h.b16 %v96
    %v656 = vunpack.c.l.b16 %v97
    %v657 = vunpack.c.h.b16 %v97
    %v658 = vpack.c.b16 %v634, %v626
    %v659 = vpack.c.b16 %v635, %v627
    %v660 = vpack.c.b16 %v636, %v628
    %v661 = vpack.c.b16 %v637, %v629
    %v662 = vpack.c.b16 %v638, %v630
    %v663 = vpack.c.b16 %v639, %v631
    %v664 = vpack.c.b16 %v640, %v632
    %v665 = vpack.c.b16 %v641, %v633
    %v666 = vpack.c.b16 %v650, %v642
    %v667 = vpack.c.b16 %v651, %v643
    %v668 = vpack.c.b16 %v652, %v644
    %v669 = vpack.c.b16 %v653, %v645
    %v670 = vpack.c.b16 %v654, %v646
    %v671 = vpack.c.b16 %v655, %v647
    %v672 = vpack.c.b16 %v656, %v648
    %v673 = vpack.c.b16 %v657, %v649
    %v1202 = vunpack.c.l.b16 %v98
    %v1203 = vunpack.c.h.b16 %v98
    %v1204 = vunpack.c.l.b16 %v99
    %v1205 = vunpack.c.h.b16 %v99
    %v1206 = vunpack.c.l.b16 %v100
    %v1207 = vunpack.c.h.b16 %v100
    %v1208 = vunpack.c.l.b16 %v101
    %v1209 = vunpack.c.h.b16 %v101
    %v1210 = vunpack.c.l.b16 %v102
    %v1211 = vunpack.c.h.b16 %v102
    %v1212 = vunpack.c.l.b16 %v103
    %v1213 = vunpack.c.h.b16 %v103
    %v1214 = vunpack.c.l.b16 %v104
    %v1215 = vunpack.c.h.b16 %v104
    %v1216 = vunpack.c.l.b16 %v105
    %v1217 = vunpack.c.h.b16 %v105
    %v1218 = vunpack.c.l.b16 %v106
    %v1219 = vunpack.c.h.b16 %v106
    %v1220 = vunpack.c.l.b16 %v107
    %v1221 = vunpack.c.h.b16 %v107
    %v1222 = vunpack.c.l.b16 %v108
    %v1223 = vunpack.c.h.b16 %v108
    %v1224 = vunpack.c.l.b16 %v109
    %v1225 = vunpack.c.h.b16 %v109
    %v1226 = vunpack.c.l.b16 %v110
    %v1227 = vunpack.c.h.b16 %v110
    %v1228 = vunpack.c.l.b16 %v111
    %v1229 = vunpack.c.h.b16 %v111
    %v1230 = vunpack.c.l.b16 %v112
    %v1231 = vunpack.c.h.b16 %v112
    %v1232 = vunpack.c.l.b16 %v113
    %v1233 = vunpack.c.h.b16 %v113
    %v1234 = vunpack.c.l.b16 %v114
    %v1235 = vunpack.c.h.b16 %v114
    %v1236 = vunpack.c.l.b16 %v115
    %v1237 = vunpack.c.h.b16 %v115
    %v1238 = vunpack.c.l.b16 %v116
    %v1239 = vunpack.c.h.b16 %v116
    %v1240 = vunpack.c.l.b16 %v117
    %v1241 = vunpack.c.h.b16 %v117
    %v1242 = vunpack.c.l.b16 %v118
    %v1243 = vunpack.c.h.b16 %v118
    %v1244 = vunpack.c.l.b16 %v119
    %v1245 = vunpack.c.h.b16 %v119
    %v1246 = vunpack.c.l.b16 %v120
    %v1247 = vunpack.c.h.b16 %v120
    %v1248 = vunpack.c.l.b16 %v121
    %v1249 = vunpack.c.h.b16 %v121
    %v1250 = vunpack.c.l.b16 %v122
    %v1251 = vunpack.c.h.b16 %v122
    %v1252 = vunpack.c.l.b16 %v123
    %v1253 = vunpack.c.h.b16 %v123
    %v1254 = vunpack.c.l.b16 %v124
    %v1255 = vunpack.c.h.b16 %v124
    %v1256 = vunpack.c.l.b16 %v125
    %v1257 = vunpack.c.h.b16 %v125
    %v1258 = vunpack.c.l.b16 %v126
    %v1259 = vunpack.c.h.b16 %v126
    %v1260 = vunpack.c.l.b16 %v127
    %v1261 = vunpack.c.h.b16 %v127
    %v1262 = vunpack.c.l.b16 %v128
    %v1263 = vunpack.c.h.b16 %v128
    %v1264 = vunpack.c.l.b16 %v129
    %v1265 = vunpack.c.h.b16 %v129
    %v1266 = vunpack.c.l.b16 %v130
    %v1267 = vunpack.c.h.b16 %v130
    %v1268 = vunpack.c.l.b16 %v131
    %v1269 = vunpack.c.h.b16 %v131
    %v1270 = vunpack.c.l.b16 %v132
    %v1271 = vunpack.c.h.b16 %v132
    %v1272 = vunpack.c.l.b16 %v133
    %v1273 = vunpack.c.h.b16 %v133
    %v1274 = vunpack.c.l.b16 %v134
    %v1275 = vunpack.c.h.b16 %v134
    %v1276 = vunpack.c.l.b16 %v135
    %v1277 = vunpack.c.h.b16 %v135
    %v1278 = vunpack.c.l.b16 %v136
    %v1279 = vunpack.c.h.b16 %v136
    %v1280 = vunpack.c.l.b16 %v137
    %v1281 = vunpack.c.h.b16 %v137
    %v1282 = vunpack.c.l.b16 %v138
    %v1283 = vunpack.c.h.b16 %v138
    %v1284 = vunpack.c.l.b16 %v139
    %v1285 = vunpack.c.h.b16 %v139
    %v1286 = vunpack.c.l.b16 %v140
    %v1287 = vunpack.c.h.b16 %v140
    %v1288 = vunpack.c.l.b16 %v141
    %v1289 = vunpack.c.h.b16 %v141
    %v1290 = vunpack.c.l.b16 %v142
    %v1291 = vunpack.c.h.b16 %v142
    %v1292 = vunpack.c.l.b16 %v143
    %v1293 = vunpack.c.h.b16 %v143
    %v1294 = vunpack.c.l.b16 %v144
    %v1295 = vunpack.c.h.b16 %v144
    %v1296 = vunpack.c.l.b16 %v145
    %v1297 = vunpack.c.h.b16 %v145
    %v1298 = vunpack.c.l.b16 %v146
    %v1299 = vunpack.c.h.b16 %v146
    %v1300 = vunpack.c.l.b16 %v147
    %v1301 = vunpack.c.h.b16 %v147
    %v1302 = vunpack.c.l.b16 %v148
    %v1303 = vunpack.c.h.b16 %v148
    %v1304 = vunpack.c.l.b16 %v149
    %v1305 = vunpack.c.h.b16 %v149
    %v1306 = vunpack.c.l.b16 %v150
    %v1307 = vunpack.c.h.b16 %v150
    %v1308 = vunpack.c.l.b16 %v151
    %v1309 = vunpack.c.h.b16 %v151
    %v1310 = vunpack.c.l.b16 %v152
    %v1311 = vunpack.c.h.b16 %v152
    %v1312 = vunpack.c.l.b16 %v153
    %v1313 = vunpack.c.h.b16 %v153
    %v1314 = vunpack.c.l.b16 %v154
    %v1315 = vunpack.c.h.b16 %v154
    %v1316 = vunpack.c.l.b16 %v155
    %v1317 = vunpack.c.h.b16 %v155
    %v1318 = vunpack.c.l.b16 %v156
    %v1319 = vunpack.c.h.b16 %v156
    %v1320 = vunpack.c.l.b16 %v157
    %v1321 = vunpack.c.h.b16 %v157
    %v1322 = vunpack.c.l.b16 %v158
    %v1323 = vunpack.c.h.b16 %v158
    %v1324 = vunpack.c.l.b16 %v159
    %v1325 = vunpack.c.h.b16 %v159
    %v1326 = vunpack.c.l.b16 %v160
    %v1327 = vunpack.c.h.b16 %v160
    %v1328 = vunpack.c.l.b16 %v161
    %v1329 = vunpack.c.h.b16 %v161
    %v1330 = vunpack.c.l.b16 %v162
    %v1331 = vunpack.c.h.b16 %v162
    %v1332 = vunpack.c.l.b16 %v163
    %v1333 = vunpack.c.h.b16 %v163
    %v1334 = vunpack.c.l.b16 %v164
    %v1335 = vunpack.c.h.b16 %v164
    %v1336 = vunpack.c.l.b16 %v165
    %v1337 = vunpack.c.h.b16 %v165
    %v1338 = vunpack.c.l.b16 %v166
    %v1339 = vunpack.c.h.b16 %v166
    %v1340 = vunpack.c.l.b16 %v167
    %v1341 = vunpack.c.h.b16 %v167
    %v1342 = vunpack.c.l.b16 %v168
    %v1343 = vunpack.c.h.b16 %v168
    %v1344 = vunpack.c.l.b16 %v169
    %v1345 = vunpack.c.h.b16 %v169
    %v1346 = vunpack.c.l.b16 %v170
    %v1347 = vunpack.c.h.b16 %v170
    %v1348 = vunpack.c.l.b16 %v171
    %v1349 = vunpack.c.h.b16 %v171
    %v1350 = vunpack.c.l.b16 %v172
    %v1351 = vunpack.c.h.b16 %v172
    %v1352 = vunpack.c.l.b16 %v173
    %v1353 = vunpack.c.h.b16 %v173
    %v1354 = vunpack.c.l.b16 %v174
    %v1355 = vunpack.c.h.b16 %v174
    %v1356 = vunpack.c.l.b16 %v175
    %v1357 = vunpack.c.h.b16 %v175
    %v1358 = vunpack.c.l.b16 %v176
    %v1359 = vunpack.c.h.b16 %v176
    %v1360 = vunpack.c.l.b16 %v177
    %v1361 = vunpack.c.h.b16 %v177
    %v1362 = vunpack.c.l.b16 %v178
    %v1363 = vunpack.c.h.b16 %v178
    %v1364 = vunpack.c.l.b16 %v179
    %v1365 = vunpack.c.h.b16 %v179
    %v1366 = vunpack.c.l.b16 %v180
    %v1367 = vunpack.c.h.b16 %v180
    %v1368 = vunpack.c.l.b16 %v181
    %v1369 = vunpack.c.h.b16 %v181
    %v1370 = vunpack.c.l.b16 %v182
    %v1371 = vunpack.c.h.b16 %v182
    %v1372 = vunpack.c.l.b16 %v183
    %v1373 = vunpack.c.h.b16 %v183
    %v1374 = vunpack.c.l.b16 %v184
    %v1375 = vunpack.c.h.b16 %v184
    %v1376 = vunpack.c.l.b16 %v185
    %v1377 = vunpack.c.h.b16 %v185
    %v1378 = vunpack.c.l.b16 %v186
    %v1379 = vunpack.c.h.b16 %v186
    %v1380 = vunpack.c.l.b16 %v187
    %v1381 = vunpack.c.h.b16 %v187
    %v1382 = vunpack.c.l.b16 %v188
    %v1383 = vunpack.c.h.b16 %v188
    %v1384 = vunpack.c.l.b16 %v189
    %v1385 = vunpack.c.h.b16 %v189
    %v1386 = vunpack.c.l.b16 %v190
    %v1387 = vunpack.c.h.b16 %v190
    %v1388 = vunpack.c.l.b16 %v191
    %v1389 = vunpack.c.h.b16 %v191
    %v1390 = vunpack.c.l.b16 %v192
    %v1391 = vunpack.c.h.b16 %v192
    %v1392 = vunpack.c.l.b16 %v193
    %v1393 = vunpack.c.h.b16 %v193
    %v1394 = vunpack.c.l.b16 %v194
    %v1395 = vunpack.c.h.b16 %v194
    %v1396 = vunpack.c.l.b16 %v195
    %v1397 = vunpack.c.h.b16 %v195
    %v1398 = vunpack.c.l.b16 %v196
    %v1399 = vunpack.c.h.b16 %v196
    %v1400 = vunpack.c.l.b16 %v197
    %v1401 = vunpack.c.h.b16 %v197
    %v1402 = vunpack.c.l.b16 %v198
    %v1403 = vunpack.c.h.b16 %v198
    %v1404 = vunpack.c.l.b16 %v199
    %v1405 = vunpack.c.h.b16 %v199
    %v1406 = vunpack.c.l.b16 %v200
    %v1407 = vunpack.c.h.b16 %v200
    %v1408 = vunpack.c.l.b16 %v201
    %v1409 = vunpack.c.h.b16 %v201
    %v1410 = vunpack.c.l.b16 %v202
    %v1411 = vunpack.c.h.b16 %v202
    %v1412 = vunpack.c.l.b16 %v203
    %v1413 = vunpack.c.h.b16 %v203
    %v1414 = vunpack.c.l.b16 %v204
    %v1415 = vunpack.c.h.b16 %v204
    %v1416 = vunpack.c.l.b16 %v205
    %v1417 = vunpack.c.h.b16 %v205
    %v1418 = vunpack.c.l.b16 %v206
    %v1419 = vunpack.c.h.b16 %v206
    %v1420 = vunpack.c.l.b16 %v207
    %v1421 = vunpack.c.h.b16 %v207
    %v1422 = vunpack.c.l.b16 %v208
    %v1423 = vunpack.c.h.b16 %v208
    %v1424 = vunpack.c.l.b16 %v209
    %v1425 = vunpack.c.h.b16 %v209
    %v1426 = vunpack.c.l.b16 %v210
    %v1427 = vunpack.c.h.b16 %v210
    %v1428 = vunpack.c.l.b16 %v211
    %v1429 = vunpack.c.h.b16 %v211
    %v1430 = vunpack.c.l.b16 %v212
    %v1431 = vunpack.c.h.b16 %v212
    %v1432 = vunpack.c.l.b16 %v213
    %v1433 = vunpack.c.h.b16 %v213
    %v1434 = vunpack.c.l.b16 %v214
    %v1435 = vunpack.c.h.b16 %v214
    %v1436 = vunpack.c.l.b16 %v215
    %v1437 = vunpack.c.h.b16 %v215
    %v1438 = vunpack.c.l.b16 %v216
    %v1439 = vunpack.c.h.b16 %v216
    %v1440 = vunpack.c.l.b16 %v217
    %v1441 = vunpack.c.h.b16 %v217
    %v1442 = vunpack.c.l.b16 %v218
    %v1443 = vunpack.c.h.b16 %v218
    %v1444 = vunpack.c.l.b16 %v219
    %v1445 = vunpack.c.h.b16 %v219
    %v1446 = vunpack.c.l.b16 %v220
    %v1447 = vunpack.c.h.b16 %v220
    %v1448 = vunpack.c.l.b16 %v221
    %v1449 = vunpack.c.h.b16 %v221
    %v1450 = vunpack.c.l.b16 %v222
    %v1451 = vunpack.c.h.b16 %v222
    %v1452 = vunpack.c.l.b16 %v223
    %v1453 = vunpack.c.h.b16 %v223
    %v1454 = vunpack.c.l.b16 %v224
    %v1455 = vunpack.c.h.b16 %v224
    %v1456 = vunpack.c.l.b16 %v225
    %v1457 = vunpack.c.h.b16 %v225
    %v1458 = vunpack.c.l.b16 %v226
    %v1459 = vunpack.c.h.b16 %v226
    %v1460 = vunpack.c.l.b16 %v227
    %v1461 = vunpack.c.h.b16 %v227
    %v1462 = vunpack.c.l.b16 %v228
    %v1463 = vunpack.c.h.b16 %v228
    %v1464 = vunpack.c.l.b16 %v229
    %v1465 = vunpack.c.h.b16 %v229
    %v1466 = vunpack.c.l.b16 %v230
    %v1467 = vunpack.c.h.b16 %v230
    %v1468 = vunpack.c.l.b16 %v231
    %v1469 = vunpack.c.h.b16 %v231
    %v1470 = vunpack.c.l.b16 %v232
    %v1471 = vunpack.c.h.b16 %v232
    %v1472 = vunpack.c.l.b16 %v233
    %v1473 = vunpack.c.h.b16 %v233
    %v1474 = vunpack.c.l.b16 %v234
    %v1475 = vunpack.c.h.b16 %v234
    %v1476 = vunpack.c.l.b16 %v235
    %v1477 = vunpack.c.h.b16 %v235
    %v1478 = vunpack.c.l.b16 %v236
    %v1479 = vunpack.c.h.b16 %v236
    %v1480 = vunpack.c.l.b16 %v237
    %v1481 = vunpack.c.h.b16 %v237
    %v1482 = vunpack.c.l.b16 %v238
    %v1483 = vunpack.c.h.b16 %v238
    %v1484 = vunpack.c.l.b16 %v239
    %v1485 = vunpack.c.h.b16 %v239
    %v1486 = vunpack.c.l.b16 %v240
    %v1487 = vunpack.c.h.b16 %v240
    %v1488 = vunpack.c.l.b16 %v241
    %v1489 = vunpack.c.h.b16 %v241
    %v1490 = vunpack.c.l.b16 %v242
    %v1491 = vunpack.c.h.b16 %v242
    %v1492 = vunpack.c.l.b16 %v243
    %v1493 = vunpack.c.h.b16 %v243
    %v1494 = vunpack.c.l.b16 %v244
    %v1495 = vunpack.c.h.b16 %v244
    %v1496 = vunpack.c.l.b16 %v245
    %v1497 = vunpack.c.h.b16 %v245
    %v1498 = vunpack.c.l.b16 %v246
    %v1499 = vunpack.c.h.b16 %v246
    %v1500 = vunpack.c.l.b16 %v247
    %v1501 = vunpack.c.h.b16 %v247
    %v1502 = vunpack.c.l.b16 %v248
    %v1503 = vunpack.c.h.b16 %v248
    %v1504 = vunpack.c.l.b16 %v249
    %v1505 = vunpack.c.h.b16 %v249
    %v1506 = vunpack.c.l.b16 %v250
    %v1507 = vunpack.c.h.b16 %v250
    %v1508 = vunpack.c.l.b16 %v251
    %v1509 = vunpack.c.h.b16 %v251
    %v1510 = vunpack.c.l.b16 %v252
    %v1511 = vunpack.c.h.b16 %v252
    %v1512 = vunpack.c.l.b16 %v253
    %v1513 = vunpack.c.h.b16 %v253
    %v1514 = vunpack.c.l.b16 %v254
    %v1515 = vunpack.c.h.b16 %v254
    %v1516 = vunpack.c.l.b16 %v255
    %v1517 = vunpack.c.h.b16 %v255
    %v1518 = vunpack.c.l.b16 %v256
    %v1519 = vunpack.c.h.b16 %v256
    %v1520 = vunpack.c.l.b16 %v257
    %v1521 = vunpack.c.h.b16 %v257
    %v1522 = vunpack.c.l.b16 %v258
    %v1523 = vunpack.c.h.b16 %v258
    %v1524 = vunpack.c.l.b16 %v259
    %v1525 = vunpack.c.h.b16 %v259
    %v1526 = vunpack.c.l.b16 %v260
    %v1527 = vunpack.c.h.b16 %v260
    %v1528 = vunpack.c.l.b16 %v261
    %v1529 = vunpack.c.h.b16 %v261
    %v1530 = vunpack.c.l.b16 %v262
    %v1531 = vunpack.c.h.b16 %v262
    %v1532 = vunpack.c.l.b16 %v263
    %v1533 = vunpack.c.h.b16 %v263
    %v1534 = vunpack.c.l.b16 %v264
    %v1535 = vunpack.c.h.b16 %v264
    %v1536 = vunpack.c.l.b16 %v265
    %v1537 = vunpack.c.h.b16 %v265
    %v1538 = vunpack.c.l.b16 %v266
    %v1539 = vunpack.c.h.b16 %v266
    %v1540 = vunpack.c.l.b16 %v267
    %v1541 = vunpack.c.h.b16 %v267
    %v1542 = vunpack.c.l.b16 %v268
    %v1543 = vunpack.c.h.b16 %v268
    %v1544 = vunpack.c.l.b16 %v269
    %v1545 = vunpack.c.h.b16 %v269
    %v1546 = vunpack.c.l.b16 %v270
    %v1547 = vunpack.c.h.b16 %v270
    %v1548 = vunpack.c.l.b16 %v271
    %v1549 = vunpack.c.h.b16 %v271
    %v1550 = vunpack.c.l.b16 %v272
    %v1551 = vunpack.c.h.b16 %v272
    %v1552 = vunpack.c.l.b16 %v273
    %v1553 = vunpack.c.h.b16 %v273
    %v1554 = vunpack.c.l.b16 %v274
    %v1555 = vunpack.c.h.b16 %v274
    %v1556 = vunpack.c.l.b16 %v275
    %v1557 = vunpack.c.h.b16 %v275
    %v1558 = vunpack.c.l.b16 %v276
    %v1559 = vunpack.c.h.b16 %v276
    %v1560 = vunpack.c.l.b16 %v277
    %v1561 = vunpack.c.h.b16 %v277
    %v1562 = vunpack.c.l.b16 %v278
    %v1563 = vunpack.c.h.b16 %v278
    %v1564 = vunpack.c.l.b16 %v279
    %v1565 = vunpack.c.h.b16 %v279
    %v1566 = vunpack.c.l.b16 %v280
    %v1567 = vunpack.c.h.b16 %v280
    %v1568 = vunpack.c.l.b16 %v281
    %v1569 = vunpack.c.h.b16 %v281
    %v1570 = vunpack.c.l.b16 %v282
    %v1571 = vunpack.c.h.b16 %v282
    %v1572 = vunpack.c.l.b16 %v283
    %v1573 = vunpack.c.h.b16 %v283
    %v1574 = vunpack.c.l.b16 %v284
    %v1575 = vunpack.c.h.b16 %v284
    %v1576 = vunpack.c.l.b16 %v285
    %v1577 = vunpack.c.h.b16 %v285
    %v1578 = vunpack.c.l.b16 %v286
    %v1579 = vunpack.c.h.b16 %v286
    %v1580 = vunpack.c.l.b16 %v287
    %v1581 = vunpack.c.h.b16 %v287
    %v1582 = vunpack.c.l.b16 %v288
    %v1583 = vunpack.c.h.b16 %v288
    %v1584 = vunpack.c.l.b16 %v289
    %v1585 = vunpack.c.h.b16 %v289
    %v1586 = vunpack.c.l.b16 %v290
    %v1587 = vunpack.c.h.b16 %v290
    %v1588 = vunpack.c.l.b16 %v291
    %v1589 = vunpack.c.h.b16 %v291
    %v1590 = vunpack.c.l.b16 %v292
    %v1591 = vunpack.c.h.b16 %v292
    %v1592 = vunpack.c.l.b16 %v293
    %v1593 = vunpack.c.h.b16 %v293
    %v1594 = vunpack.c.l.b16 %v294
    %v1595 = vunpack.c.h.b16 %v294
    %v1596 = vunpack.c.l.b16 %v295
    %v1597 = vunpack.c.h.b16 %v295
    %v1598 = vunpack.c.l.b16 %v296
    %v1599 = vunpack.c.h.b16 %v296
    %v1600 = vunpack.c.l.b16 %v297
    %v1601 = vunpack.c.h.b16 %v297
    %v1602 = vunpack.c.l.b16 %v298
    %v1603 = vunpack.c.h.b16 %v298
    %v1604 = vunpack.c.l.b16 %v299
    %v1605 = vunpack.c.h.b16 %v299
    %v1606 = vunpack.c.l.b16 %v300
    %v1607 = vunpack.c.h.b16 %v300
    %v1608 = vunpack.c.l.b16 %v301
    %v1609 = vunpack.c.h.b16 %v301
    %v1610 = vunpack.c.l.b16 %v302
    %v1611 = vunpack.c.h.b16 %v302
    %v1612 = vunpack.c.l.b16 %v303
    %v1613 = vunpack.c.h.b16 %v303
    %v1614 = vunpack.c.l.b16 %v304
    %v1615 = vunpack.c.h.b16 %v304
    %v1616 = vunpack.c.l.b16 %v305
    %v1617 = vunpack.c.h.b16 %v305
    %v1618 = vunpack.c.l.b16 %v306
    %v1619 = vunpack.c.h.b16 %v306
    %v1620 = vunpack.c.l.b16 %v307
    %v1621 = vunpack.c.h.b16 %v307
    %v1622 = vunpack.c.l.b16 %v308
    %v1623 = vunpack.c.h.b16 %v308
    %v1624 = vunpack.c.l.b16 %v309
    %v1625 = vunpack.c.h.b16 %v309
    %v1626 = vunpack.c.l.b16 %v310
    %v1627 = vunpack.c.h.b16 %v310
    %v1628 = vunpack.c.l.b16 %v311
    %v1629 = vunpack.c.h.b16 %v311
    %v1630 = vunpack.c.l.b16 %v312
    %v1631 = vunpack.c.h.b16 %v312
    %v1632 = vunpack.c.l.b16 %v313
    %v1633 = vunpack.c.h.b16 %v313
    %v1634 = vunpack.c.l.b16 %v314
    %v1635 = vunpack.c.h.b16 %v314
    %v1636 = vunpack.c.l.b16 %v315
    %v1637 = vunpack.c.h.b16 %v315
    %v1638 = vunpack.c.l.b16 %v316
    %v1639 = vunpack.c.h.b16 %v316
    %v1640 = vunpack.c.l.b16 %v317
    %v1641 = vunpack.c.h.b16 %v317
    %v1642 = vunpack.c.l.b16 %v318
    %v1643 = vunpack.c.h.b16 %v318
    %v1644 = vunpack.c.l.b16 %v319
    %v1645 = vunpack.c.h.b16 %v319
    %v1646 = vunpack.c.l.b16 %v320
    %v1647 = vunpack.c.h.b16 %v320
    %v1648 = vunpack.c.l.b16 %v321
    %v1649 = vunpack.c.h.b16 %v321
    %v1650 = vunpack.c.l.b16 %v322
    %v1651 = vunpack.c.h.b16 %v322
    %v1652 = vunpack.c.l.b16 %v323
    %v1653 = vunpack.c.h.b16 %v323
    %v1654 = vunpack.c.l.b16 %v324
    %v1655 = vunpack.c.h.b16 %v324
    %v1656 = vunpack.c.l.b16 %v325
    %v1657 = vunpack.c.h.b16 %v325
    %v1658 = vunpack.c.l.b16 %v326
    %v1659 = vunpack.c.h.b16 %v326
    %v1660 = vunpack.c.l.b16 %v327
    %v1661 = vunpack.c.h.b16 %v327
    %v1662 = vunpack.c.l.b16 %v328
    %v1663 = vunpack.c.h.b16 %v328
    %v1664 = vunpack.c.l.b16 %v329
    %v1665 = vunpack.c.h.b16 %v329
    %v1666 = vunpack.c.l.b16 %v330
    %v1667 = vunpack.c.h.b16 %v330
    %v1668 = vunpack.c.l.b16 %v331
    %v1669 = vunpack.c.h.b16 %v331
    %v1670 = vunpack.c.l.b16 %v332
    %v1671 = vunpack.c.h.b16 %v332
    %v1672 = vunpack.c.l.b16 %v333
    %v1673 = vunpack.c.h.b16 %v333
    %v1674 = vunpack.c.l.b16 %v334
    %v1675 = vunpack.c.h.b16 %v334
    %v1676 = vunpack.c.l.b16 %v335
    %v1677 = vunpack.c.h.b16 %v335
    %v1678 = vunpack.c.l.b16 %v336
    %v1679 = vunpack.c.h.b16 %v336
    %v1680 = vunpack.c.l.b16 %v337
    %v1681 = vunpack.c.h.b16 %v337
    %v1682 = vunpack.c.l.b16 %v338
    %v1683 = vunpack.c.h.b16 %v338
    %v1684 = vunpack.c.l.b16 %v339
    %v1685 = vunpack.c.h.b16 %v339
    %v1686 = vunpack.c.l.b16 %v340
    %v1687 = vunpack.c.h.b16 %v340
    %v1688 = vunpack.c.l.b16 %v341
    %v1689 = vunpack.c.h.b16 %v341
    %v1690 = vunpack.c.l.b16 %v342
    %v1691 = vunpack.c.h.b16 %v342
    %v1692 = vunpack.c.l.b16 %v343
    %v1693 = vunpack.c.h.b16 %v343
    %v1694 = vunpack.c.l.b16 %v344
    %v1695 = vunpack.c.h.b16 %v344
    %v1696 = vunpack.c.l.b16 %v345
    %v1697 = vunpack.c.h.b16 %v345
    %v1698 = vunpack.c.l.b16 %v346
    %v1699 = vunpack.c.h.b16 %v346
    %v1700 = vunpack.c.l.b16 %v347
    %v1701 = vunpack.c.h.b16 %v347
    %v1702 = vunpack.c.l.b16 %v348
    %v1703 = vunpack.c.h.b16 %v348
    %v1704 = vunpack.c.l.b16 %v349
    %v1705 = vunpack.c.h.b16 %v349
    %v1706 = vunpack.c.l.b16 %v350
    %v1707 = vunpack.c.h.b16 %v350
    %v1708 = vunpack.c.l.b16 %v351
    %v1709 = vunpack.c.h.b16 %v351
    %v1710 = vunpack.c.l.b16 %v352
    %v1711 = vunpack.c.h.b16 %v352
    %v1712 = vunpack.c.l.b16 %v353
    %v1713 = vunpack.c.h.b16 %v353
    %v1714 = vunpack.c.l.b16 %v354
    %v1715 = vunpack.c.h.b16 %v354
    %v1716 = vunpack.c.l.b16 %v355
    %v1717 = vunpack.c.h.b16 %v355
    %v1718 = vunpack.c.l.b16 %v356
    %v1719 = vunpack.c.h.b16 %v356
    %v1720 = vunpack.c.l.b16 %v357
    %v1721 = vunpack.c.h.b16 %v357
    %v1722 = vunpack.c.l.b16 %v358
    %v1723 = vunpack.c.h.b16 %v358
    %v1724 = vunpack.c.l.b16 %v359
    %v1725 = vunpack.c.h.b16 %v359
    %v1726 = vunpack.c.l.b16 %v360
    %v1727 = vunpack.c.h.b16 %v360
    %v1728 = vunpack.c.l.b16 %v361
    %v1729 = vunpack.c.h.b16 %v361
    %v1730 = vunpack.c.l.b16 %v362
    %v1731 = vunpack.c.h.b16 %v362
    %v1732 = vunpack.c.l.b16 %v363
    %v1733 = vunpack.c.h.b16 %v363
    %v1734 = vunpack.c.l.b16 %v364
    %v1735 = vunpack.c.h.b16 %v364
    %v1736 = vunpack.c.l.b16 %v365
    %v1737 = vunpack.c.h.b16 %v365
    %v1738 = vunpack.c.l.b16 %v366
    %v1739 = vunpack.c.h.b16 %v366
    %v1740 = vunpack.c.l.b16 %v367
    %v1741 = vunpack.c.h.b16 %v367
    %v1742 = vunpack.c.l.b16 %v368
    %v1743 = vunpack.c.h.b16 %v368
    %v1744 = vunpack.c.l.b16 %v369
    %v1745 = vunpack.c.h.b16 %v369
    %v1746 = vunpack.c.l.b16 %v370
    %v1747 = vunpack.c.h.b16 %v370
    %v1748 = vunpack.c.l.b16 %v371
    %v1749 = vunpack.c.h.b16 %v371
    %v1750 = vunpack.c.l.b16 %v372
    %v1751 = vunpack.c.h.b16 %v372
    %v1752 = vunpack.c.l.b16 %v373
    %v1753 = vunpack.c.h.b16 %v373
    %v1754 = vunpack.c.l.b16 %v374
    %v1755 = vunpack.c.h.b16 %v374
    %v1756 = vunpack.c.l.b16 %v375
    %v1757 = vunpack.c.h.b16 %v375
    %v1758 = vunpack.c.l.b16 %v376
    %v1759 = vunpack.c.h.b16 %v376
    %v1760 = vunpack.c.l.b16 %v377
    %v1761 = vunpack.c.h.b16 %v377
    %v1762 = vunpack.c.l.b16 %v378
    %v1763 = vunpack.c.h.b16 %v378
    %v1764 = vunpack.c.l.b16 %v379
    %v1765 = vunpack.c.h.b16 %v379
    %v1766 = vunpack.c.l.b16 %v380
    %v1767 = vunpack.c.h.b16 %v380
    %v1768 = vunpack.c.l.b16 %v381
    %v1769 = vunpack.c.h.b16 %v381
    %v1770 = vunpack.c.l.b16 %v382
    %v1771 = vunpack.c.h.b16 %v382
    %v1772 = vunpack.c.l.b16 %v383
    %v1773 = vunpack.c.h.b16 %v383
    %v1774 = vunpack.c.l.b16 %v384
    %v1775 = vunpack.c.h.b16 %v384
    %v1776 = vunpack.c.l.b16 %v385
    %v1777 = vunpack.c.h.b16 %v385
    %v1778 = vunpack.c.l.b16 %v386
    %v1779 = vunpack.c.h.b16 %v386
    %v1780 = vunpack.c.l.b16 %v387
    %v1781 = vunpack.c.h.b16 %v387
    %v1782 = vunpack.c.l.b16 %v388
    %v1783 = vunpack.c.h.b16 %v388
    %v1784 = vunpack.c.l.b16 %v389
    %v1785 = vunpack.c.h.b16 %v389
    %v1786 = vunpack.c.l.b16 %v390
    %v1787 = vunpack.c.h.b16 %v390
    %v1788 = vunpack.c.l.b16 %v391
    %v1789 = vunpack.c.h.b16 %v391
    %v1790 = vunpack.c.l.b16 %v392
    %v1791 = vunpack.c.h.b16 %v392
    %v1792 = vunpack.c.l.b16 %v393
    %v1793 = vunpack.c.h.b16 %v393
    %v1794 = vunpack.c.l.b16 %v394
    %v1795 = vunpack.c.h.b16 %v394
    %v1796 = vunpack.c.l.b16 %v395
    %v1797 = vunpack.c.h.b16 %v395
    %v1798 = vunpack.c.l.b16 %v396
    %v1799 = vunpack.c.h.b16 %v396
    %v1800 = vunpack.c.l.b16 %v397
    %v1801 = vunpack.c.h.b16 %v397
    %v1802 = vunpack.c.l.b16 %v398
    %v1803 = vunpack.c.h.b16 %v398
    %v1804 = vunpack.c.l.b16 %v399
    %v1805 = vunpack.c.h.b16 %v399
    %v1806 = vunpack.c.l.b16 %v400
    %v1807 = vunpack.c.h.b16 %v400
    %v1808 = vunpack.c.l.b16 %v401
    %v1809 = vunpack.c.h.b16 %v401
    %v1810 = vunpack.c.l.b16 %v402
    %v1811 = vunpack.c.h.b16 %v402
    %v1812 = vunpack.c.l.b16 %v403
    %v1813 = vunpack.c.h.b16 %v403
    %v1814 = vunpack.c.l.b16 %v404
    %v1815 = vunpack.c.h.b16 %v404
    %v1816 = vunpack.c.l.b16 %v405
    %v1817 = vunpack.c.h.b16 %v405
    %v1818 = vunpack.c.l.b16 %v406
    %v1819 = vunpack.c.h.b16 %v406
    %v1820 = vunpack.c.l.b16 %v407
    %v1821 = vunpack.c.h.b16 %v407
    %v1822 = vunpack.c.l.b16 %v408
    %v1823 = vunpack.c.h.b16 %v408
    %v1824 = vunpack.c.l.b16 %v409
    %v1825 = vunpack.c.h.b16 %v409
    %v1826 = vunpack.c.l.b16 %v410
    %v1827 = vunpack.c.h.b16 %v410
    %v1828 = vunpack.c.l.b16 %v411
    %v1829 = vunpack.c.h.b16 %v411
    %v1830 = vunpack.c.l.b16 %v412
    %v1831 = vunpack.c.h.b16 %v412
    %v1832 = vunpack.c.l.b16 %v413
    %v1833 = vunpack.c.h.b16 %v413
    %v1834 = vunpack.c.l.b16 %v414
    %v1835 = vunpack.c.h.b16 %v414
    %v1836 = vunpack.c.l.b16 %v415
    %v1837 = vunpack.c.h.b16 %v415
    %v1838 = vunpack.c.l.b16 %v416
    %v1839 = vunpack.c.h.b16 %v416
    %v1840 = vunpack.c.l.b16 %v417
    %v1841 = vunpack.c.h.b16 %v417
    %v1842 = vunpack.c.l.b16 %v418
    %v1843 = vunpack.c.h.b16 %v418
    %v1844 = vunpack.c.l.b16 %v419
    %v1845 = vunpack.c.h.b16 %v419
    %v1846 = vunpack.c.l.b16 %v420
    %v1847 = vunpack.c.h.b16 %v420
    %v1848 = vunpack.c.l.b16 %v421
    %v1849 = vunpack.c.h.b16 %v421
    %v1850 = vunpack.c.l.b16 %v422
    %v1851 = vunpack.c.h.b16 %v422
    %v1852 = vunpack.c.l.b16 %v423
    %v1853 = vunpack.c.h.b16 %v423
    %v1854 = vunpack.c.l.b16 %v424
    %v1855 = vunpack.c.h.b16 %v424
    %v1856 = vunpack.c.l.b16 %v425
    %v1857 = vunpack.c.h.b16 %v425
    %v1858 = vunpack.c.l.b16 %v426
    %v1859 = vunpack.c.h.b16 %v426
    %v1860 = vunpack.c.l.b16 %v427
    %v1861 = vunpack.c.h.b16 %v427
    %v1862 = vunpack.c.l.b16 %v428
    %v1863 = vunpack.c.h.b16 %v428
    %v1864 = vunpack.c.l.b16 %v429
    %v1865 = vunpack.c.h.b16 %v429
    %v1866 = vunpack.c.l.b16 %v430
    %v1867 = vunpack.c.h.b16 %v430
    %v1868 = vunpack.c.l.b16 %v431
    %v1869 = vunpack.c.h.b16 %v431
    %v1870 = vunpack.c.l.b16 %v432
    %v1871 = vunpack.c.h.b16 %v432
    %v1872 = vunpack.c.l.b16 %v433
    %v1873 = vunpack.c.h.b16 %v433
    %v1874 = vunpack.c.l.b16 %v434
    %v1875 = vunpack.c.h.b16 %v434
    %v1876 = vunpack.c.l.b16 %v435
    %v1877 = vunpack.c.h.b16 %v435
    %v1878 = vunpack.c.l.b16 %v436
    %v1879 = vunpack.c.h.b16 %v436
    %v1880 = vunpack.c.l.b16 %v437
    %v1881 = vunpack.c.h.b16 %v437
    %v1882 = vunpack.c.l.b16 %v438
    %v1883 = vunpack.c.h.b16 %v438
    %v1884 = vunpack.c.l.b16 %v439
    %v1885 = vunpack.c.h.b16 %v439
    %v1886 = vunpack.c.l.b16 %v440
    %v1887 = vunpack.c.h.b16 %v440
    %v1888 = vunpack.c.l.b16 %v441
    %v1889 = vunpack.c.h.b16 %v441
    %v1890 = vunpack.c.l.b16 %v442
    %v1891 = vunpack.c.h.b16 %v442
    %v1892 = vunpack.c.l.b16 %v443
    %v1893 = vunpack.c.h.b16 %v443
    %v1894 = vunpack.c.l.b16 %v444
    %v1895 = vunpack.c.h.b16 %v444
    %v1896 = vunpack.c.l.b16 %v445
    %v1897 = vunpack.c.h.b16 %v445
    %v1898 = vunpack.c.l.b16 %v446
    %v1899 = vunpack.c.h.b16 %v446
    %v1900 = vunpack.c.l.b16 %v447
    %v1901 = vunpack.c.h.b16 %v447
    %v1902 = vunpack.c.l.b16 %v448
    %v1903 = vunpack.c.h.b16 %v448
    %v1904 = vunpack.c.l.b16 %v449
    %v1905 = vunpack.c.h.b16 %v449
    %v1906 = vunpack.c.l.b16 %v450
    %v1907 = vunpack.c.h.b16 %v450
    %v1908 = vunpack.c.l.b16 %v451
    %v1909 = vunpack.c.h.b16 %v451
    %v1910 = vunpack.c.l.b16 %v452
    %v1911 = vunpack.c.h.b16 %v452
    %v1912 = vunpack.c.l.b16 %v453
    %v1913 = vunpack.c.h.b16 %v453
    %v1914 = vunpack.c.l.b16 %v454
    %v1915 = vunpack.c.h.b16 %v454
    %v1916 = vunpack.c.l.b16 %v455
    %v1917 = vunpack.c.h.b16 %v455
    %v1918 = vunpack.c.l.b16 %v456
    %v1919 = vunpack.c.h.b16 %v456
    %v1920 = vunpack.c.l.b16 %v457
    %v1921 = vunpack.c.h.b16 %v457
    %v1922 = vunpack.c.l.b16 %v458
    %v1923 = vunpack.c.h.b16 %v458
    %v1924 = vunpack.c.l.b16 %v459
    %v1925 = vunpack.c.h.b16 %v459
    %v1926 = vunpack.c.l.b16 %v460
    %v1927 = vunpack.c.h.b16 %v460
    %v1928 = vunpack.c.l.b16 %v461
    %v1929 = vunpack.c.h.b16 %v461
    %v1930 = vunpack.c.l.b16 %v462
    %v1931 = vunpack.c.h.b16 %v462
    %v1932 = vunpack.c.l.b16 %v463
    %v1933 = vunpack.c.h.b16 %v463
    %v1934 = vunpack.c.l.b16 %v464
    %v1935 = vunpack.c.h.b16 %v464
    %v1936 = vunpack.c.l.b16 %v465
    %v1937 = vunpack.c.h.b16 %v465
    %v1938 = vunpack.c.l.b16 %v466
    %v1939 = vunpack.c.h.b16 %v466
    %v1940 = vunpack.c.l.b16 %v467
    %v1941 = vunpack.c.h.b16 %v467
    %v1942 = vunpack.c.l.b16 %v468
    %v1943 = vunpack.c.h.b16 %v468
    %v1944 = vunpack.c.l.b16 %v469
    %v1945 = vunpack.c.h.b16 %v469
    %v1946 = vunpack.c.l.b16 %v470
    %v1947 = vunpack.c.h.b16 %v470
    %v1948 = vunpack.c.l.b16 %v471
    %v1949 = vunpack.c.h.b16 %v471
    %v1950 = vunpack.c.l.b16 %v472
    %v1951 = vunpack.c.h.b16 %v472
    %v1952 = vunpack.c.l.b16 %v473
    %v1953 = vunpack.c.h.b16 %v473
    %v1954 = vunpack.c.l.b16 %v474
    %v1955 = vunpack.c.h.b16 %v474
    %v1956 = vunpack.c.l.b16 %v475
    %v1957 = vunpack.c.h.b16 %v475
    %v1958 = vunpack.c.l.b16 %v476
    %v1959 = vunpack.c.h.b16 %v476
    %v1960 = vunpack.c.l.b16 %v477
    %v1961 = vunpack.c.h.b16 %v477
    %v1962 = vunpack.c.l.b16 %v478
    %v1963 = vunpack.c.h.b16 %v478
    %v1964 = vunpack.c.l.b16 %v479
    %v1965 = vunpack.c.h.b16 %v479
    %v1966 = vunpack.c.l.b16 %v480
    %v1967 = vunpack.c.h.b16 %v480
    %v1968 = vunpack.c.l.b16 %v481
    %v1969 = vunpack.c.h.b16 %v481
    %v1970 = vunpack.c.l.b16 %v482
    %v1971 = vunpack.c.h.b16 %v482
    %v1972 = vunpack.c.l.b16 %v483
    %v1973 = vunpack.c.h.b16 %v483
    %v1974 = vunpack.c.l.b16 %v484
    %v1975 = vunpack.c.h.b16 %v484
    %v1976 = vunpack.c.l.b16 %v485
    %v1977 = vunpack.c.h.b16 %v485
    %v1978 = vunpack.c.l.b16 %v486
    %v1979 = vunpack.c.h.b16 %v486
    %v1980 = vunpack.c.l.b16 %v487
    %v1981 = vunpack.c.h.b16 %v487
    %v1982 = vunpack.c.l.b16 %v488
    %v1983 = vunpack.c.h.b16 %v488
    %v1984 = vunpack.c.l.b16 %v489
    %v1985 = vunpack.c.h.b16 %v489
    %v1986 = vunpack.c.l.b16 %v490
    %v1987 = vunpack.c.h.b16 %v490
    %v1988 = vunpack.c.l.b16 %v491
    %v1989 = vunpack.c.h.b16 %v491
    %v1990 = vunpack.c.l.b16 %v492
    %v1991 = vunpack.c.h.b16 %v492
    %v1992 = vunpack.c.l.b16 %v493
    %v1993 = vunpack.c.h.b16 %v493
    %v1994 = vunpack.c.l.b16 %v494
    %v1995 = vunpack.c.h.b16 %v494
    %v1996 = vunpack.c.l.b16 %v495
    %v1997 = vunpack.c.h.b16 %v495
    %v1998 = vunpack.c.l.b16 %v496
    %v1999 = vunpack.c.h.b16 %v496
    %v2000 = vunpack.c.l.b16 %v497
    %v2001 = vunpack.c.h.b16 %v497
    %v2002 = vunpack.c.l.b16 %v498
    %v2003 = vunpack.c.h.b16 %v498
    %v2004 = vunpack.c.l.b16 %v499
    %v2005 = vunpack.c.h.b16 %v499
    %v2006 = vunpack.c.l.b16 %v500
    %v2007 = vunpack.c.h.b16 %v500
    %v2008 = vunpack.c.l.b16 %v501
    %v2009 = vunpack.c.h.b16 %v501
    %v2010 = vunpack.c.l.b16 %v502
    %v2011 = vunpack.c.h.b16 %v502
    %v2012 = vunpack.c.l.b16 %v503
    %v2013 = vunpack.c.h.b16 %v503
    %v2014 = vunpack.c.l.b16 %v504
    %v2015 = vunpack.c.h.b16 %v504
    %v2016 = vunpack.c.l.b16 %v505
    %v2017 = vunpack.c.h.b16 %v505
    %v2018 = vunpack.c.l.b16 %v506
    %v2019 = vunpack.c.h.b16 %v506
    %v2020 = vunpack.c.l.b16 %v507
    %v2021 = vunpack.c.h.b16 %v507
    %v2022 = vunpack.c.l.b16 %v508
    %v2023 = vunpack.c.h.b16 %v508
    %v2024 = vunpack.c.l.b16 %v509
    %v2025 = vunpack.c.h.b16 %v509
    %v2026 = vunpack.c.l.b16 %v510
    %v2027 = vunpack.c.h.b16 %v510
    %v2028 = vunpack.c.l.b16 %v511
    %v2029 = vunpack.c.h.b16 %v511
    %v2030 = vunpack.c.l.b16 %v512
    %v2031 = vunpack.c.h.b16 %v512
    %v2032 = vunpack.c.l.b16 %v513
    %v2033 = vunpack.c.h.b16 %v513
    %v2034 = vunpack.c.l.b16 %v514
    %v2035 = vunpack.c.h.b16 %v514
    %v2036 = vunpack.c.l.b16 %v515
    %v2037 = vunpack.c.h.b16 %v515
    %v2038 = vunpack.c.l.b16 %v516
    %v2039 = vunpack.c.h.b16 %v516
    %v2040 = vunpack.c.l.b16 %v517
    %v2041 = vunpack.c.h.b16 %v517
    %v2042 = vunpack.c.l.b16 %v518
    %v2043 = vunpack.c.h.b16 %v518
    %v2044 = vunpack.c.l.b16 %v519
    %v2045 = vunpack.c.h.b16 %v519
    %v2046 = vunpack.c.l.b16 %v520
    %v2047 = vunpack.c.h.b16 %v520
    %v2048 = vunpack.c.l.b16 %v521
    %v2049 = vunpack.c.h.b16 %v521
    %v2050 = vunpack.c.l.b16 %v522
    %v2051 = vunpack.c.h.b16 %v522
    %v2052 = vunpack.c.l.b16 %v523
    %v2053 = vunpack.c.h.b16 %v523
    %v2054 = vunpack.c.l.b16 %v524
    %v2055 = vunpack.c.h.b16 %v524
    %v2056 = vunpack.c.l.b16 %v525
    %v2057 = vunpack.c.h.b16 %v525
    %v2058 = vunpack.c.l.b16 %v526
    %v2059 = vunpack.c.h.b16 %v526
    %v2060 = vunpack.c.l.b16 %v527
    %v2061 = vunpack.c.h.b16 %v527
    %v2062 = vunpack.c.l.b16 %v528
    %v2063 = vunpack.c.h.b16 %v528
    %v2064 = vunpack.c.l.b16 %v529
    %v2065 = vunpack.c.h.b16 %v529
    %v2066 = vunpack.c.l.b16 %v530
    %v2067 = vunpack.c.h.b16 %v530
    %v2068 = vunpack.c.l.b16 %v531
    %v2069 = vunpack.c.h.b16 %v531
    %v2070 = vunpack.c.l.b16 %v532
    %v2071 = vunpack.c.h.b16 %v532
    %v2072 = vunpack.c.l.b16 %v533
    %v2073 = vunpack.c.h.b16 %v533
    %v2074 = vunpack.c.l.b16 %v534
    %v2075 = vunpack.c.h.b16 %v534
    %v2076 = vunpack.c.l.b16 %v535
    %v2077 = vunpack.c.h.b16 %v535
    %v2078 = vunpack.c.l.b16 %v536
    %v2079 = vunpack.c.h.b16 %v536
    %v2080 = vunpack.c.l.b16 %v537
    %v2081 = vunpack.c.h.b16 %v537
    %v2082 = vunpack.c.l.b16 %v538
    %v2083 = vunpack.c.h.b16 %v538
    %v2084 = vunpack.c.l.b16 %v539
    %v2085 = vunpack.c.h.b16 %v539
    %v2086 = vunpack.c.l.b16 %v540
    %v2087 = vunpack.c.h.b16 %v540
    %v2088 = vunpack.c.l.b16 %v541
    %v2089 = vunpack.c.h.b16 %v541
    %v2090 = vunpack.c.l.b16 %v542
    %v2091 = vunpack.c.h.b16 %v542
    %v2092 = vunpack.c.l.b16 %v543
    %v2093 = vunpack.c.h.b16 %v543
    %v2094 = vunpack.c.l.b16 %v544
    %v2095 = vunpack.c.h.b16 %v544
    %v2096 = vunpack.c.l.b16 %v545
    %v2097 = vunpack.c.h.b16 %v545
    %v2098 = vunpack.c.l.b16 %v546
    %v2099 = vunpack.c.h.b16 %v546
    %v2100 = vunpack.c.l.b16 %v547
    %v2101 = vunpack.c.h.b16 %v547
    %v2102 = vunpack.c.l.b16 %v548
    %v2103 = vunpack.c.h.b16 %v548
    %v2104 = vunpack.c.l.b16 %v549
    %v2105 = vunpack.c.h.b16 %v549
    %v2106 = vunpack.c.l.b16 %v550
    %v2107 = vunpack.c.h.b16 %v550
    %v2108 = vunpack.c.l.b16 %v551
    %v2109 = vunpack.c.h.b16 %v551
    %v2110 = vunpack.c.l.b16 %v552
    %v2111 = vunpack.c.h.b16 %v552
    %v2112 = vunpack.c.l.b16 %v553
    %v2113 = vunpack.c.h.b16 %v553
    %v2114 = vunpack.c.l.b16 %v554
    %v2115 = vunpack.c.h.b16 %v554
    %v2116 = vunpack.c.l.b16 %v555
    %v2117 = vunpack.c.h.b16 %v555
    %v2118 = vunpack.c.l.b16 %v556
    %v2119 = vunpack.c.h.b16 %v556
    %v2120 = vunpack.c.l.b16 %v557
    %v2121 = vunpack.c.h.b16 %v557
    %v2122 = vunpack.c.l.b16 %v558
    %v2123 = vunpack.c.h.b16 %v558
    %v2124 = vunpack.c.l.b16 %v559
    %v2125 = vunpack.c.h.b16 %v559
    %v2126 = vunpack.c.l.b16 %v560
    %v2127 = vunpack.c.h.b16 %v560
    %v2128 = vunpack.c.l.b16 %v561
    %v2129 = vunpack.c.h.b16 %v561
    %v2130 = vunpack.c.l.b16 %v562
    %v2131 = vunpack.c.h.b16 %v562
    %v2132 = vunpack.c.l.b16 %v563
    %v2133 = vunpack.c.h.b16 %v563
    %v2134 = vunpack.c.l.b16 %v564
    %v2135 = vunpack.c.h.b16 %v564
    %v2136 = vunpack.c.l.b16 %v565
    %v2137 = vunpack.c.h.b16 %v565
    %v2138 = vunpack.c.l.b16 %v566
    %v2139 = vunpack.c.h.b16 %v566
    %v2140 = vunpack.c.l.b16 %v567
    %v2141 = vunpack.c.h.b16 %v567
    %v2142 = vunpack.c.l.b16 %v568
    %v2143 = vunpack.c.h.b16 %v568
    %v2144 = vunpack.c.l.b16 %v569
    %v2145 = vunpack.c.h.b16 %v569
    %v2146 = vunpack.c.l.b16 %v570
    %v2147 = vunpack.c.h.b16 %v570
    %v2148 = vunpack.c.l.b16 %v571
    %v2149 = vunpack.c.h.b16 %v571
    %v2150 = vunpack.c.l.b16 %v572
    %v2151 = vunpack.c.h.b16 %v572
    %v2152 = vunpack.c.l.b16 %v573
    %v2153 = vunpack.c.h.b16 %v573
    %v2154 = vunpack.c.l.b16 %v574
    %v2155 = vunpack.c.h.b16 %v574
    %v2156 = vunpack.c.l.b16 %v575
    %v2157 = vunpack.c.h.b16 %v575
    %v2158 = vunpack.c.l.b16 %v576
    %v2159 = vunpack.c.h.b16 %v576
    %v2160 = vunpack.c.l.b16 %v577
    %v2161 = vunpack.c.h.b16 %v577
    %v2162 = vunpack.c.l.b16 %v578
    %v2163 = vunpack.c.h.b16 %v578
    %v2164 = vunpack.c.l.b16 %v579
    %v2165 = vunpack.c.h.b16 %v579
    %v2166 = vunpack.c.l.b16 %v580
    %v2167 = vunpack.c.h.b16 %v580
    %v2168 = vunpack.c.l.b16 %v581
    %v2169 = vunpack.c.h.b16 %v581
    %v2170 = vunpack.c.l.b16 %v582
    %v2171 = vunpack.c.h.b16 %v582
    %v2172 = vunpack.c.l.b16 %v583
    %v2173 = vunpack.c.h.b16 %v583
    %v2174 = vunpack.c.l.b16 %v584
    %v2175 = vunpack.c.h.b16 %v584
    %v2176 = vunpack.c.l.b16 %v585
    %v2177 = vunpack.c.h.b16 %v585
    %v2178 = vunpack.c.l.b16 %v586
    %v2179 = vunpack.c.h.b16 %v586
    %v2180 = vunpack.c.l.b16 %v587
    %v2181 = vunpack.c.h.b16 %v587
    %v2182 = vunpack.c.l.b16 %v588
    %v2183 = vunpack.c.h.b16 %v588
    %v2184 = vunpack.c.l.b16 %v589
    %v2185 = vunpack.c.h.b16 %v589
    %v2186 = vunpack.c.l.b16 %v590
    %v2187 = vunpack.c.h.b16 %v590
    %v2188 = vunpack.c.l.b16 %v591
    %v2189 = vunpack.c.h.b16 %v591
    %v2190 = vunpack.c.l.b16 %v592
    %v2191 = vunpack.c.h.b16 %v592
    %v2192 = vunpack.c.l.b16 %v593
    %v2193 = vunpack.c.h.b16 %v593
    %v2194 = vunpack.c.l.b16 %v594
    %v2195 = vunpack.c.h.b16 %v594
    %v2196 = vunpack.c.l.b16 %v595
    %v2197 = vunpack.c.h.b16 %v595
    %v2198 = vunpack.c.l.b16 %v596
    %v2199 = vunpack.c.h.b16 %v596
    %v2200 = vunpack.c.l.b16 %v597
    %v2201 = vunpack.c.h.b16 %v597
    %v2202 = vunpack.c.l.b16 %v598
    %v2203 = vunpack.c.h.b16 %v598
    %v2204 = vunpack.c.l.b16 %v599
    %v2205 = vunpack.c.h.b16 %v599
    %v2206 = vunpack.c.l.b16 %v600
    %v2207 = vunpack.c.h.b16 %v600
    %v2208 = vunpack.c.l.b16 %v601
    %v2209 = vunpack.c.h.b16 %v601
    %v2210 = vunpack.c.l.b16 %v602
    %v2211 = vunpack.c.h.b16 %v602
    %v2212 = vunpack.c.l.b16 %v603
    %v2213 = vunpack.c.h.b16 %v603
    %v2214 = vunpack.c.l.b16 %v604
    %v2215 = vunpack.c.h.b16 %v604
    %v2216 = vunpack.c.l.b16 %v605
    %v2217 = vunpack.c.h.b16 %v605
    %v2218 = vunpack.c.l.b16 %v606
    %v2219 = vunpack.c.h.b16 %v606
    %v2220 = vunpack.c.l.b16 %v607
    %v2221 = vunpack.c.h.b16 %v607
    %v2222 = vunpack.c.l.b16 %v608
    %v2223 = vunpack.c.h.b16 %v608
    %v2224 = vunpack.c.l.b16 %v609
    %v2225 = vunpack.c.h.b16 %v609
    %v2226 = vpack.c.b16 %v1210, %v1202
    %v2227 = vpack.c.b16 %v1211, %v1203
    %v2228 = vpack.c.b16 %v1212, %v1204
    %v2229 = vpack.c.b16 %v1213, %v1205
    %v2230 = vpack.c.b16 %v1214, %v1206
    %v2231 = vpack.c.b16 %v1215, %v1207
    %v2232 = vpack.c.b16 %v1216, %v1208
    %v2233 = vpack.c.b16 %v1217, %v1209
    %v2234 = vpack.c.b16 %v1226, %v1218
    %v2235 = vpack.c.b16 %v1227, %v1219
    %v2236 = vpack.c.b16 %v1228, %v1220
    %v2237 = vpack.c.b16 %v1229, %v1221
    %v2238 = vpack.c.b16 %v1230, %v1222
    %v2239 = vpack.c.b16 %v1231, %v1223
    %v2240 = vpack.c.b16 %v1232, %v1224
    %v2241 = vpack.c.b16 %v1233, %v1225
    %v2242 = vpack.c.b16 %v1242, %v1234
    %v2243 = vpack.c.b16 %v1243, %v1235
    %v2244 = vpack.c.b16 %v1244, %v1236
    %v2245 = vpack.c.b16 %v1245, %v1237
    %v2246 = vpack.c.b16 %v1246, %v1238
    %v2247 = vpack.c.b16 %v1247, %v1239
    %v2248 = vpack.c.b16 %v1248, %v1240
    %v2249 = vpack.c.b16 %v1249, %v1241
    %v2250 = vpack.c.b16 %v1258, %v1250
    %v2251 = vpack.c.b16 %v1259, %v1251
    %v2252 = vpack.c.b16 %v1260, %v1252
    %v2253 = vpack.c.b16 %v1261, %v1253
    %v2254 = vpack.c.b16 %v1262, %v1254
    %v2255 = vpack.c.b16 %v1263, %v1255
    %v2256 = vpack.c.b16 %v1264, %v1256
    %v2257 = vpack.c.b16 %v1265, %v1257
    %v2258 = vpack.c.b16 %v1274, %v1266
    %v2259 = vpack.c.b16 %v1275, %v1267
    %v2260 = vpack.c.b16 %v1276, %v1268
    %v2261 = vpack.c.b16 %v1277, %v1269
    %v2262 = vpack.c.b16 %v1278, %v1270
    %v2263 = vpack.c.b16 %v1279, %v1271
    %v2264 = vpack.c.b16 %v1280, %v1272
    %v2265 = vpack.c.b16 %v1281, %v1273
    %v2266 = vpack.c.b16 %v1290, %v1282
    %v2267 = vpack.c.b16 %v1291, %v1283
    %v2268 = vpack.c.b16 %v1292, %v1284
    %v2269 = vpack.c.b16 %v1293, %v1285
    %v2270 = vpack.c.b16 %v1294, %v1286
    %v2271 = vpack.c.b16 %v1295, %v1287
    %v2272 = vpack.c.b16 %v1296, %v1288
    %v2273 = vpack.c.b16 %v1297, %v1289
    %v2274 = vpack.c.b16 %v1306, %v1298
    %v2275 = vpack.c.b16 %v1307, %v1299
    %v2276 = vpack.c.b16 %v1308, %v1300
    %v2277 = vpack.c.b16 %v1309, %v1301
    %v2278 = vpack.c.b16 %v1310, %v1302
    %v2279 = vpack.c.b16 %v1311, %v1303
    %v2280 = vpack.c.b16 %v1312, %v1304
    %v2281 = vpack.c.b16 %v1313, %v1305
    %v2282 = vpack.c.b16 %v1322, %v1314
    %v2283 = vpack.c.b16 %v1323, %v1315
    %v2284 = vpack.c.b16 %v1324, %v1316
    %v2285 = vpack.c.b16 %v1325, %v1317
    %v2286 = vpack.c.b16 %v1326, %v1318
    %v2287 = vpack.c.b16 %v1327, %v1319
    %v2288 = vpack.c.b16 %v1328, %v1320
    %v2289 = vpack.c.b16 %v1329, %v1321
    %v2290 = vpack.c.b16 %v1338, %v1330
    %v2291 = vpack.c.b16 %v1339, %v1331
    %v2292 = vpack.c.b16 %v1340, %v1332
    %v2293 = vpack.c.b16 %v1341, %v1333
    %v2294 = vpack.c.b16 %v1342, %v1334
    %v2295 = vpack.c.b16 %v1343, %v1335
    %v2296 = vpack.c.b16 %v1344, %v1336
    %v2297 = vpack.c.b16 %v1345, %v1337
    %v2298 = vpack.c.b16 %v1354, %v1346
    %v2299 = vpack.c.b16 %v1355, %v1347
    %v2300 = vpack.c.b16 %v1356, %v1348
    %v2301 = vpack.c.b16 %v1357, %v1349
    %v2302 = vpack.c.b16 %v1358, %v1350
    %v2303 = vpack.c.b16 %v1359, %v1351
    %v2304 = vpack.c.b16 %v1360, %v1352
    %v2305 = vpack.c.b16 %v1361, %v1353
    %v2306 = vpack.c.b16 %v1370, %v1362
    %v2307 = vpack.c.b16 %v1371, %v1363
    %v2308 = vpack.c.b16 %v1372, %v1364
    %v2309 = vpack.c.b16 %v1373, %v1365
    %v2310 = vpack.c.b16 %v1374, %v1366
    %v2311 = vpack.c.b16 %v1375, %v1367
    %v2312 = vpack.c.b16 %v1376, %v1368
    %v2313 = vpack.c.b16 %v1377, %v1369
    %v2314 = vpack.c.b16 %v1386, %v1378
    %v2315 = vpack.c.b16 %v1387, %v1379
    %v2316 = vpack.c.b16 %v1388, %v1380
    %v2317 = vpack.c.b16 %v1389, %v1381
    %v2318 = vpack.c.b16 %v1390, %v1382
    %v2319 = vpack.c.b16 %v1391, %v1383
    %v2320 = vpack.c.b16 %v1392, %v1384
    %v2321 = vpack.c.b16 %v1393, %v1385
    %v2322 = vpack.c.b16 %v1402, %v1394
    %v2323 = vpack.c.b16 %v1403, %v1395
    %v2324 = vpack.c.b16 %v1404, %v1396
    %v2325 = vpack.c.b16 %v1405, %v1397
    %v2326 = vpack.c.b16 %v1406, %v1398
    %v2327 = vpack.c.b16 %v1407, %v1399
    %v2328 = vpack.c.b16 %v1408, %v1400
    %v2329 = vpack.c.b16 %v1409, %v1401
    %v2330 = vpack.c.b16 %v1418, %v1410
    %v2331 = vpack.c.b16 %v1419, %v1411
    %v2332 = vpack.c.b16 %v1420, %v1412
    %v2333 = vpack.c.b16 %v1421, %v1413
    %v2334 = vpack.c.b16 %v1422, %v1414
    %v2335 = vpack.c.b16 %v1423, %v1415
    %v2336 = vpack.c.b16 %v1424, %v1416
    %v2337 = vpack.c.b16 %v1425, %v1417
    %v2338 = vpack.c.b16 %v1434, %v1426
    %v2339 = vpack.c.b16 %v1435, %v1427
    %v2340 = vpack.c.b16 %v1436, %v1428
    %v2341 = vpack.c.b16 %v1437, %v1429
    %v2342 = vpack.c.b16 %v1438, %v1430
    %v2343 = vpack.c.b16 %v1439, %v1431
    %v2344 = vpack.c.b16 %v1440, %v1432
    %v2345 = vpack.c.b16 %v1441, %v1433
    %v2346 = vpack.c.b16 %v1450, %v1442
    %v2347 = vpack.c.b16 %v1451, %v1443
    %v2348 = vpack.c.b16 %v1452, %v1444
    %v2349 = vpack.c.b16 %v1453, %v1445
    %v2350 = vpack.c.b16 %v1454, %v1446
    %v2351 = vpack.c.b16 %v1455, %v1447
    %v2352 = vpack.c.b16 %v1456, %v1448
    %v2353 = vpack.c.b16 %v1457, %v1449
    %v2354 = vpack.c.b16 %v1466, %v1458
    %v2355 = vpack.c.b16 %v1467, %v1459
    %v2356 = vpack.c.b16 %v1468, %v1460
    %v2357 = vpack.c.b16 %v1469, %v1461
    %v2358 = vpack.c.b16 %v1470, %v1462
    %v2359 = vpack.c.b16 %v1471, %v1463
    %v2360 = vpack.c.b16 %v1472, %v1464
    %v2361 = vpack.c.b16 %v1473, %v1465
    %v2362 = vpack.c.b16 %v1482, %v1474
    %v2363 = vpack.c.b16 %v1483, %v1475
    %v2364 = vpack.c.b16 %v1484, %v1476
    %v2365 = vpack.c.b16 %v1485, %v1477
    %v2366 = vpack.c.b16 %v1486, %v1478
    %v2367 = vpack.c.b16 %v1487, %v1479
    %v2368 = vpack.c.b16 %v1488, %v1480
    %v2369 = vpack.c.b16 %v1489, %v1481
    %v2370 = vpack.c.b16 %v1498, %v1490
    %v2371 = vpack.c.b16 %v1499, %v1491
    %v2372 = vpack.c.b16 %v1500, %v1492
    %v2373 = vpack.c.b16 %v1501, %v1493
    %v2374 = vpack.c.b16 %v1502, %v1494
    %v2375 = vpack.c.b16 %v1503, %v1495
    %v2376 = vpack.c.b16 %v1504, %v1496
    %v2377 = vpack.c.b16 %v1505, %v1497
    %v2378 = vpack.c.b16 %v1514, %v1506
    %v2379 = vpack.c.b16 %v1515, %v1507
    %v2380 = vpack.c.b16 %v1516, %v1508
    %v2381 = vpack.c.b16 %v1517, %v1509
    %v2382 = vpack.c.b16 %v1518, %v1510
    %v2383 = vpack.c.b16 %v1519, %v1511
    %v2384 = vpack.c.b16 %v1520, %v1512
    %v2385 = vpack.c.b16 %v1521, %v1513
    %v2386 = vpack.c.b16 %v1530, %v1522
    %v2387 = vpack.c.b16 %v1531, %v1523
    %v2388 = vpack.c.b16 %v1532, %v1524
    %v2389 = vpack.c.b16 %v1533, %v1525
    %v2390 = vpack.c.b16 %v1534, %v1526
    %v2391 = vpack.c.b16 %v1535, %v1527
    %v2392 = vpack.c.b16 %v1536, %v1528
    %v2393 = vpack.c.b16 %v1537, %v1529
    %v2394 = vpack.c.b16 %v1546, %v1538
    %v2395 = vpack.c.b16 %v1547, %v1539
    %v2396 = vpack.c.b16 %v1548, %v1540
    %v2397 = vpack.c.b16 %v1549, %v1541
    %v2398 = vpack.c.b16 %v1550, %v1542
    %v2399 = vpack.c.b16 %v1551, %v1543
    %v2400 = vpack.c.b16 %v1552, %v1544
    %v2401 = vpack.c.b16 %v1553, %v1545
    %v2402 = vpack.c.b16 %v1562, %v1554
    %v2403 = vpack.c.b16 %v1563, %v1555
    %v2404 = vpack.c.b16 %v1564, %v1556
    %v2405 = vpack.c.b16 %v1565, %v1557
    %v2406 = vpack.c.b16 %v1566, %v1558
    %v2407 = vpack.c.b16 %v1567, %v1559
    %v2408 = vpack.c.b16 %v1568, %v1560
    %v2409 = vpack.c.b16 %v1569, %v1561
    %v2410 = vpack.c.b16 %v1578, %v1570
    %v2411 = vpack.c.b16 %v1579, %v1571
    %v2412 = vpack.c.b16 %v1580, %v1572
    %v2413 = vpack.c.b16 %v1581, %v1573
    %v2414 = vpack.c.b16 %v1582, %v1574
    %v2415 = vpack.c.b16 %v1583, %v1575
    %v2416 = vpack.c.b16 %v1584, %v1576
    %v2417 = vpack.c.b16 %v1585, %v1577
    %v2418 = vpack.c.b16 %v1594, %v1586
    %v2419 = vpack.c.b16 %v1595, %v1587
    %v2420 = vpack.c.b16 %v1596, %v1588
    %v2421 = vpack.c.b16 %v1597, %v1589
    %v2422 = vpack.c.b16 %v1598, %v1590
    %v2423 = vpack.c.b16 %v1599, %v1591
    %v2424 = vpack.c.b16 %v1600, %v1592
    %v2425 = vpack.c.b16 %v1601, %v1593
    %v2426 = vpack.c.b16 %v1610, %v1602
    %v2427 = vpack.c.b16 %v1611, %v1603
    %v2428 = vpack.c.b16 %v1612, %v1604
    %v2429 = vpack.c.b16 %v1613, %v1605
    %v2430 = vpack.c.b16 %v1614, %v1606
    %v2431 = vpack.c.b16 %v1615, %v1607
    %v2432 = vpack.c.b16 %v1616, %v1608
    %v2433 = vpack.c.b16 %v1617, %v1609
    %v2434 = vpack.c.b16 %v1626, %v1618
    %v2435 = vpack.c.b16 %v1627, %v1619
    %v2436 = vpack.c.b16 %v1628, %v1620
    %v2437 = vpack.c.b16 %v1629, %v1621
    %v2438 = vpack.c.b16 %v1630, %v1622
    %v2439 = vpack.c.b16 %v1631, %v1623
    %v2440 = vpack.c.b16 %v1632, %v1624
    %v2441 = vpack.c.b16 %v1633, %v1625
    %v2442 = vpack.c.b16 %v1642, %v1634
    %v2443 = vpack.c.b16 %v1643, %v1635
    %v2444 = vpack.c.b16 %v1644, %v1636
    %v2445 = vpack.c.b16 %v1645, %v1637
    %v2446 = vpack.c.b16 %v1646, %v1638
    %v2447 = vpack.c.b16 %v1647, %v1639
    %v2448 = vpack.c.b16 %v1648, %v1640
    %v2449 = vpack.c.b16 %v1649, %v1641
    %v2450 = vpack.c.b16 %v1658, %v1650
    %v2451 = vpack.c.b16 %v1659, %v1651
    %v2452 = vpack.c.b16 %v1660, %v1652
    %v2453 = vpack.c.b16 %v1661, %v1653
    %v2454 = vpack.c.b16 %v1662, %v1654
    %v2455 = vpack.c.b16 %v1663, %v1655
    %v2456 = vpack.c.b16 %v1664, %v1656
    %v2457 = vpack.c.b16 %v1665, %v1657
    %v2458 = vpack.c.b16 %v1674, %v1666
    %v2459 = vpack.c.b16 %v1675, %v1667
    %v2460 = vpack.c.b16 %v1676, %v1668
    %v2461 = vpack.c.b16 %v1677, %v1669
    %v2462 = vpack.c.b16 %v1678, %v1670
    %v2463 = vpack.c.b16 %v1679, %v1671
    %v2464 = vpack.c.b16 %v1680, %v1672
    %v2465 = vpack.c.b16 %v1681, %v1673
    %v2466 = vpack.c.b16 %v1690, %v1682
    %v2467 = vpack.c.b16 %v1691, %v1683
    %v2468 = vpack.c.b16 %v1692, %v1684
    %v2469 = vpack.c.b16 %v1693, %v1685
    %v2470 = vpack.c.b16 %v1694, %v1686
    %v2471 = vpack.c.b16 %v1695, %v1687
    %v2472 = vpack.c.b16 %v1696, %v1688
    %v2473 = vpack.c.b16 %v1697, %v1689
    %v2474 = vpack.c.b16 %v1706, %v1698
    %v2475 = vpack.c.b16 %v1707, %v1699
    %v2476 = vpack.c.b16 %v1708, %v1700
    %v2477 = vpack.c.b16 %v1709, %v1701
    %v2478 = vpack.c.b16 %v1710, %v1702
    %v2479 = vpack.c.b16 %v1711, %v1703
    %v2480 = vpack.c.b16 %v1712, %v1704
    %v2481 = vpack.c.b16 %v1713, %v1705
    %v2482 = vpack.c.b16 %v1722, %v1714
    %v2483 = vpack.c.b16 %v1723, %v1715
    %v2484 = vpack.c.b16 %v1724, %v1716
    %v2485 = vpack.c.b16 %v1725, %v1717
    %v2486 = vpack.c.b16 %v1726, %v1718
    %v2487 = vpack.c.b16 %v1727, %v1719
    %v2488 = vpack.c.b16 %v1728, %v1720
    %v2489 = vpack.c.b16 %v1729, %v1721
    %v2490 = vpack.c.b16 %v1738, %v1730
    %v2491 = vpack.c.b16 %v1739, %v1731
    %v2492 = vpack.c.b16 %v1740, %v1732
    %v2493 = vpack.c.b16 %v1741, %v1733
    %v2494 = vpack.c.b16 %v1742, %v1734
    %v2495 = vpack.c.b16 %v1743, %v1735
    %v2496 = vpack.c.b16 %v1744, %v1736
    %v2497 = vpack.c.b16 %v1745, %v1737
    %v2498 = vpack.c.b16 %v1754, %v1746
    %v2499 = vpack.c.b16 %v1755, %v1747
    %v2500 = vpack.c.b16 %v1756, %v1748
    %v2501 = vpack.c.b16 %v1757, %v1749
    %v2502 = vpack.c.b16 %v1758, %v1750
    %v2503 = vpack.c.b16 %v1759, %v1751
    %v2504 = vpack.c.b16 %v1760, %v1752
    %v2505 = vpack.c.b16 %v1761, %v1753
    %v2506 = vpack.c.b16 %v1770, %v1762
    %v2507 = vpack.c.b16 %v1771, %v1763
    %v2508 = vpack.c.b16 %v1772, %v1764
    %v2509 = vpack.c.b16 %v1773, %v1765
    %v2510 = vpack.c.b16 %v1774, %v1766
    %v2511 = vpack.c.b16 %v1775, %v1767
    %v2512 = vpack.c.b16 %v1776, %v1768
    %v2513 = vpack.c.b16 %v1777, %v1769
    %v2514 = vpack.c.b16 %v1786, %v1778
    %v2515 = vpack.c.b16 %v1787, %v1779
    %v2516 = vpack.c.b16 %v1788, %v1780
    %v2517 = vpack.c.b16 %v1789, %v1781
    %v2518 = vpack.c.b16 %v1790, %v1782
    %v2519 = vpack.c.b16 %v1791, %v1783
    %v2520 = vpack.c.b16 %v1792, %v1784
    %v2521 = vpack.c.b16 %v1793, %v1785
    %v2522 = vpack.c.b16 %v1802, %v1794
    %v2523 = vpack.c.b16 %v1803, %v1795
    %v2524 = vpack.c.b16 %v1804, %v1796
    %v2525 = vpack.c.b16 %v1805, %v1797
    %v2526 = vpack.c.b16 %v1806, %v1798
    %v2527 = vpack.c.b16 %v1807, %v1799
    %v2528 = vpack.c.b16 %v1808, %v1800
    %v2529 = vpack.c.b16 %v1809, %v1801
    %v2530 = vpack.c.b16 %v1818, %v1810
    %v2531 = vpack.c.b16 %v1819, %v1811
    %v2532 = vpack.c.b16 %v1820, %v1812
    %v2533 = vpack.c.b16 %v1821, %v1813
    %v2534 = vpack.c.b16 %v1822, %v1814
    %v2535 = vpack.c.b16 %v1823, %v1815
    %v2536 = vpack.c.b16 %v1824, %v1816
    %v2537 = vpack.c.b16 %v1825, %v1817
    %v2538 = vpack.c.b16 %v1834, %v1826
    %v2539 = vpack.c.b16 %v1835, %v1827
    %v2540 = vpack.c.b16 %v1836, %v1828
    %v2541 = vpack.c.b16 %v1837, %v1829
    %v2542 = vpack.c.b16 %v1838, %v1830
    %v2543 = vpack.c.b16 %v1839, %v1831
    %v2544 = vpack.c.b16 %v1840, %v1832
    %v2545 = vpack.c.b16 %v1841, %v1833
    %v2546 = vpack.c.b16 %v1850, %v1842
    %v2547 = vpack.c.b16 %v1851, %v1843
    %v2548 = vpack.c.b16 %v1852, %v1844
    %v2549 = vpack.c.b16 %v1853, %v1845
    %v2550 = vpack.c.b16 %v1854, %v1846
    %v2551 = vpack.c.b16 %v1855, %v1847
    %v2552 = vpack.c.b16 %v1856, %v1848
    %v2553 = vpack.c.b16 %v1857, %v1849
    %v2554 = vpack.c.b16 %v1866, %v1858
    %v2555 = vpack.c.b16 %v1867, %v1859
    %v2556 = vpack.c.b16 %v1868, %v1860
    %v2557 = vpack.c.b16 %v1869, %v1861
    %v2558 = vpack.c.b16 %v1870, %v1862
    %v2559 = vpack.c.b16 %v1871, %v1863
    %v2560 = vpack.c.b16 %v1872, %v1864
    %v2561 = vpack.c.b16 %v1873, %v1865
    %v2562 = vpack.c.b16 %v1882, %v1874
    %v2563 = vpack.c.b16 %v1883, %v1875
    %v2564 = vpack.c.b16 %v1884, %v1876
    %v2565 = vpack.c.b16 %v1885, %v1877
    %v2566 = vpack.c.b16 %v1886, %v1878
    %v2567 = vpack.c.b16 %v1887, %v1879
    %v2568 = vpack.c.b16 %v1888, %v1880
    %v2569 = vpack.c.b16 %v1889, %v1881
    %v2570 = vpack.c.b16 %v1898, %v1890
    %v2571 = vpack.c.b16 %v1899, %v1891
    %v2572 = vpack.c.b16 %v1900, %v1892
    %v2573 = vpack.c.b16 %v1901, %v1893
    %v2574 = vpack.c.b16 %v1902, %v1894
    %v2575 = vpack.c.b16 %v1903, %v1895
    %v2576 = vpack.c.b16 %v1904, %v1896
    %v2577 = vpack.c.b16 %v1905, %v1897
    %v2578 = vpack.c.b16 %v1914, %v1906
    %v2579 = vpack.c.b16 %v1915, %v1907
    %v2580 = vpack.c.b16 %v1916, %v1908
    %v2581 = vpack.c.b16 %v1917, %v1909
    %v2582 = vpack.c.b16 %v1918, %v1910
    %v2583 = vpack.c.b16 %v1919, %v1911
    %v2584 = vpack.c.b16 %v1920, %v1912
    %v2585 = vpack.c.b16 %v1921, %v1913
    %v2586 = vpack.c.b16 %v1930, %v1922
    %v2587 = vpack.c.b16 %v1931, %v1923
    %v2588 = vpack.c.b16 %v1932, %v1924
    %v2589 = vpack.c.b16 %v1933, %v1925
    %v2590 = vpack.c.b16 %v1934, %v1926
    %v2591 = vpack.c.b16 %v1935, %v1927
    %v2592 = vpack.c.b16 %v1936, %v1928
    %v2593 = vpack.c.b16 %v1937, %v1929
    %v2594 = vpack.c.b16 %v1946, %v1938
    %v2595 = vpack.c.b16 %v1947, %v1939
    %v2596 = vpack.c.b16 %v1948, %v1940
    %v2597 = vpack.c.b16 %v1949, %v1941
    %v2598 = vpack.c.b16 %v1950, %v1942
    %v2599 = vpack.c.b16 %v1951, %v1943
    %v2600 = vpack.c.b16 %v1952, %v1944
    %v2601 = vpack.c.b16 %v1953, %v1945
    %v2602 = vpack.c.b16 %v1962, %v1954
    %v2603 = vpack.c.b16 %v1963, %v1955
    %v2604 = vpack.c.b16 %v1964, %v1956
    %v2605 = vpack.c.b16 %v1965, %v1957
    %v2606 = vpack.c.b16 %v1966, %v1958
    %v2607 = vpack.c.b16 %v1967, %v1959
    %v2608 = vpack.c.b16 %v1968, %v1960
    %v2609 = vpack.c.b16 %v1969, %v1961
    %v2610 = vpack.c.b16 %v1978, %v1970
    %v2611 = vpack.c.b16 %v1979, %v1971
    %v2612 = vpack.c.b16 %v1980, %v1972
    %v2613 = vpack.c.b16 %v1981, %v1973
    %v2614 = vpack.c.b16 %v1982, %v1974
    %v2615 = vpack.c.b16 %v1983, %v1975
    %v2616 = vpack.c.b16 %v1984, %v1976
    %v2617 = vpack.c.b16 %v1985, %v1977
    %v2618 = vpack.c.b16 %v1994, %v1986
    %v2619 = vpack.c.b16 %v1995, %v1987
    %v2620 = vpack.c.b16 %v1996, %v1988
    %v2621 = vpack.c.b16 %v1997, %v1989
    %v2622 = vpack.c.b16 %v1998, %v1990
    %v2623 = vpack.c.b16 %v1999, %v1991
    %v2624 = vpack.c.b16 %v2000, %v1992
    %v2625 = vpack.c.b16 %v2001, %v1993
    %v2626 = vpack.c.b16 %v2010, %v2002
    %v2627 = vpack.c.b16 %v2011, %v2003
    %v2628 = vpack.c.b16 %v2012, %v2004
    %v2629 = vpack.c.b16 %v2013, %v2005
    %v2630 = vpack.c.b16 %v2014, %v2006
    %v2631 = vpack.c.b16 %v2015, %v2007
    %v2632 = vpack.c.b16 %v2016, %v2008
    %v2633 = vpack.c.b16 %v2017, %v2009
    %v2634 = vpack.c.b16 %v2026, %v2018
    %v2635 = vpack.c.b16 %v2027, %v2019
    %v2636 = vpack.c.b16 %v2028, %v2020
    %v2637 = vpack.c.b16 %v2029, %v2021
    %v2638 = vpack.c.b16 %v2030, %v2022
    %v2639 = vpack.c.b16 %v2031, %v2023
    %v2640 = vpack.c.b16 %v2032, %v2024
    %v2641 = vpack.c.b16 %v2033, %v2025
    %v2642 = vpack.c.b16 %v2042, %v2034
    %v2643 = vpack.c.b16 %v2043, %v2035
    %v2644 = vpack.c.b16 %v2044, %v2036
    %v2645 = vpack.c.b16 %v2045, %v2037
    %v2646 = vpack.c.b16 %v2046, %v2038
    %v2647 = vpack.c.b16 %v2047, %v2039
    %v2648 = vpack.c.b16 %v2048, %v2040
    %v2649 = vpack.c.b16 %v2049, %v2041
    %v2650 = vpack.c.b16 %v2058, %v2050
    %v2651 = vpack.c.b16 %v2059, %v2051
    %v2652 = vpack.c.b16 %v2060, %v2052
    %v2653 = vpack.c.b16 %v2061, %v2053
    %v2654 = vpack.c.b16 %v2062, %v2054
    %v2655 = vpack.c.b16 %v2063, %v2055
    %v2656 = vpack.c.b16 %v2064, %v2056
    %v2657 = vpack.c.b16 %v2065, %v2057
    %v2658 = vpack.c.b16 %v2074, %v2066
    %v2659 = vpack.c.b16 %v2075, %v2067
    %v2660 = vpack.c.b16 %v2076, %v2068
    %v2661 = vpack.c.b16 %v2077, %v2069
    %v2662 = vpack.c.b16 %v2078, %v2070
    %v2663 = vpack.c.b16 %v2079, %v2071
    %v2664 = vpack.c.b16 %v2080, %v2072
    %v2665 = vpack.c.b16 %v2081, %v2073
    %v2666 = vpack.c.b16 %v2090, %v2082
    %v2667 = vpack.c.b16 %v2091, %v2083
    %v2668 = vpack.c.b16 %v2092, %v2084
    %v2669 = vpack.c.b16 %v2093, %v2085
    %v2670 = vpack.c.b16 %v2094, %v2086
    %v2671 = vpack.c.b16 %v2095, %v2087
    %v2672 = vpack.c.b16 %v2096, %v2088
    %v2673 = vpack.c.b16 %v2097, %v2089
    %v2674 = vpack.c.b16 %v2106, %v2098
    %v2675 = vpack.c.b16 %v2107, %v2099
    %v2676 = vpack.c.b16 %v2108, %v2100
    %v2677 = vpack.c.b16 %v2109, %v2101
    %v2678 = vpack.c.b16 %v2110, %v2102
    %v2679 = vpack.c.b16 %v2111, %v2103
    %v2680 = vpack.c.b16 %v2112, %v2104
    %v2681 = vpack.c.b16 %v2113, %v2105
    %v2682 = vpack.c.b16 %v2122, %v2114
    %v2683 = vpack.c.b16 %v2123, %v2115
    %v2684 = vpack.c.b16 %v2124, %v2116
    %v2685 = vpack.c.b16 %v2125, %v2117
    %v2686 = vpack.c.b16 %v2126, %v2118
    %v2687 = vpack.c.b16 %v2127, %v2119
    %v2688 = vpack.c.b16 %v2128, %v2120
    %v2689 = vpack.c.b16 %v2129, %v2121
    %v2690 = vpack.c.b16 %v2138, %v2130
    %v2691 = vpack.c.b16 %v2139, %v2131
    %v2692 = vpack.c.b16 %v2140, %v2132
    %v2693 = vpack.c.b16 %v2141, %v2133
    %v2694 = vpack.c.b16 %v2142, %v2134
    %v2695 = vpack.c.b16 %v2143, %v2135
    %v2696 = vpack.c.b16 %v2144, %v2136
    %v2697 = vpack.c.b16 %v2145, %v2137
    %v2698 = vpack.c.b16 %v2154, %v2146
    %v2699 = vpack.c.b16 %v2155, %v2147
    %v2700 = vpack.c.b16 %v2156, %v2148
    %v2701 = vpack.c.b16 %v2157, %v2149
    %v2702 = vpack.c.b16 %v2158, %v2150
    %v2703 = vpack.c.b16 %v2159, %v2151
    %v2704 = vpack.c.b16 %v2160, %v2152
    %v2705 = vpack.c.b16 %v2161, %v2153
    %v2706 = vpack.c.b16 %v2170, %v2162
    %v2707 = vpack.c.b16 %v2171, %v2163
    %v2708 = vpack.c.b16 %v2172, %v2164
    %v2709 = vpack.c.b16 %v2173, %v2165
    %v2710 = vpack.c.b16 %v2174, %v2166
    %v2711 = vpack.c.b16 %v2175, %v2167
    %v2712 = vpack.c.b16 %v2176, %v2168
    %v2713 = vpack.c.b16 %v2177, %v2169
    %v2714 = vpack.c.b16 %v2186, %v2178
    %v2715 = vpack.c.b16 %v2187, %v2179
    %v2716 = vpack.c.b16 %v2188, %v2180
    %v2717 = vpack.c.b16 %v2189, %v2181
    %v2718 = vpack.c.b16 %v2190, %v2182
    %v2719 = vpack.c.b16 %v2191, %v2183
    %v2720 = vpack.c.b16 %v2192, %v2184
    %v2721 = vpack.c.b16 %v2193, %v2185
    %v2722 = vpack.c.b16 %v2202, %v2194
    %v2723 = vpack.c.b16 %v2203, %v2195
    %v2724 = vpack.c.b16 %v2204, %v2196
    %v2725 = vpack.c.b16 %v2205, %v2197
    %v2726 = vpack.c.b16 %v2206, %v2198
    %v2727 = vpack.c.b16 %v2207, %v2199
    %v2728 = vpack.c.b16 %v2208, %v2200
    %v2729 = vpack.c.b16 %v2209, %v2201
    %v2730 = vpack.c.b16 %v2218, %v2210
    %v2731 = vpack.c.b16 %v2219, %v2211
    %v2732 = vpack.c.b16 %v2220, %v2212
    %v2733 = vpack.c.b16 %v2221, %v2213
    %v2734 = vpack.c.b16 %v2222, %v2214
    %v2735 = vpack.c.b16 %v2223, %v2215
    %v2736 = vpack.c.b16 %v2224, %v2216
    %v2737 = vpack.c.b16 %v2225, %v2217
    %3250 = vmatpush.bf16.msra.mxu0 %v2282
    %3251 = vmatpush.bf16.msra.mxu0 %v2274
    %3252 = vmatpush.bf16.msra.mxu0 %v2266
    %3253 = vmatpush.bf16.msra.mxu0 %v2258
    %3254 = vmatpush.bf16.msra.mxu0 %v2250
    %3255 = vmatpush.bf16.msra.mxu0 %v2242
    %3256 = vmatpush.bf16.msra.mxu0 %v2234
    %3257 = vmatpush.bf16.msra.mxu0 %v2226
    %3258 = vmatmul.bf16.gmra.mxu0 %v658
    %v3259 = vpop.f32.mrf.mxu0
    %v3260 = vadd.f32 0.0, %v3259
    %v3261 = vpop.f32.mrf.mxu0
    %v3262 = vadd.f32 0.0, %v3261
    %3263 = vmatmul.bf16.gmra.mxu0 %v666
    %v3264 = vpop.f32.mrf.mxu0
    %v3265 = vadd.f32 0.0, %v3264
    %v3266 = vpop.f32.mrf.mxu0
    %v3267 = vadd.f32 0.0, %v3266
    %3268 = vdwg.mxu0
    %3269 = vmatpush.bf16.msra.mxu0 %v2346
    %3270 = vmatpush.bf16.msra.mxu0 %v2338
    %3271 = vmatpush.bf16.msra.mxu0 %v2330
    %3272 = vmatpush.bf16.msra.mxu0 %v2322
    %3273 = vmatpush.bf16.msra.mxu0 %v2314
    %3274 = vmatpush.bf16.msra.mxu0 %v2306
    %3275 = vmatpush.bf16.msra.mxu0 %v2298
    %3276 = vmatpush.bf16.msra.mxu0 %v2290
    %3277 = vmatmul.bf16.gmra.mxu0 %v659
    %v3278 = vpop.f32.mrf.mxu0
    %v3279 = vadd.f32 %v3260, %v3278
    %v3280 = vpop.f32.mrf.mxu0
    %v3281 = vadd.f32 %v3262, %v3280
    %3282 = vmatmul.bf16.gmra.mxu0 %v667
    %v3283 = vpop.f32.mrf.mxu0
    %v3284 = vadd.f32 %v3265, %v3283
    %v3285 = vpop.f32.mrf.mxu0
    %v3286 = vadd.f32 %v3267, %v3285
    %3287 = vdwg.mxu0
    %3288 = vmatpush.bf16.msra.mxu0 %v2410
    %3289 = vmatpush.bf16.msra.mxu0 %v2402
    %3290 = vmatpush.bf16.msra.mxu0 %v2394
    %3291 = vmatpush.bf16.msra.mxu0 %v2386
    %3292 = vmatpush.bf16.msra.mxu0 %v2378
    %3293 = vmatpush.bf16.msra.mxu0 %v2370
    %3294 = vmatpush.bf16.msra.mxu0 %v2362
    %3295 = vmatpush.bf16.msra.mxu0 %v2354
    %3296 = vmatmul.bf16.gmra.mxu0 %v660
    %v3297 = vpop.f32.mrf.mxu0
    %v3298 = vadd.f32 %v3279, %v3297
    %v3299 = vpop.f32.mrf.mxu0
    %v3300 = vadd.f32 %v3281, %v3299
    %3301 = vmatmul.bf16.gmra.mxu0 %v668
    %v3302 = vpop.f32.mrf.mxu0
    %v3303 = vadd.f32 %v3284, %v3302
    %v3304 = vpop.f32.mrf.mxu0
    %v3305 = vadd.f32 %v3286, %v3304
    %3306 = vdwg.mxu0
    %3307 = vmatpush.bf16.msra.mxu0 %v2474
    %3308 = vmatpush.bf16.msra.mxu0 %v2466
    %3309 = vmatpush.bf16.msra.mxu0 %v2458
    %3310 = vmatpush.bf16.msra.mxu0 %v2450
    %3311 = vmatpush.bf16.msra.mxu0 %v2442
    %3312 = vmatpush.bf16.msra.mxu0 %v2434
    %3313 = vmatpush.bf16.msra.mxu0 %v2426
    %3314 = vmatpush.bf16.msra.mxu0 %v2418
    %3315 = vmatmul.bf16.gmra.mxu0 %v661
    %v3316 = vpop.f32.mrf.mxu0
    %v3317 = vadd.f32 %v3298, %v3316
    %v3318 = vpop.f32.mrf.mxu0
    %v3319 = vadd.f32 %v3300, %v3318
    %3320 = vmatmul.bf16.gmra.mxu0 %v669
    %v3321 = vpop.f32.mrf.mxu0
    %v3322 = vadd.f32 %v3303, %v3321
    %v3323 = vpop.f32.mrf.mxu0
    %v3324 = vadd.f32 %v3305, %v3323
    %3325 = vdwg.mxu0
    %3326 = vmatpush.bf16.msra.mxu0 %v2538
    %3327 = vmatpush.bf16.msra.mxu0 %v2530
    %3328 = vmatpush.bf16.msra.mxu0 %v2522
    %3329 = vmatpush.bf16.msra.mxu0 %v2514
    %3330 = vmatpush.bf16.msra.mxu0 %v2506
    %3331 = vmatpush.bf16.msra.mxu0 %v2498
    %3332 = vmatpush.bf16.msra.mxu0 %v2490
    %3333 = vmatpush.bf16.msra.mxu0 %v2482
    %3334 = vmatmul.bf16.gmra.mxu0 %v662
    %v3335 = vpop.f32.mrf.mxu0
    %v3336 = vadd.f32 %v3317, %v3335
    %v3337 = vpop.f32.mrf.mxu0
    %v3338 = vadd.f32 %v3319, %v3337
    %3339 = vmatmul.bf16.gmra.mxu0 %v670
    %v3340 = vpop.f32.mrf.mxu0
    %v3341 = vadd.f32 %v3322, %v3340
    %v3342 = vpop.f32.mrf.mxu0
    %v3343 = vadd.f32 %v3324, %v3342
    %3344 = vdwg.mxu0
    %3345 = vmatpush.bf16.msra.mxu0 %v2602
    %3346 = vmatpush.bf16.msra.mxu0 %v2594
    %3347 = vmatpush.bf16.msra.mxu0 %v2586
    %3348 = vmatpush.bf16.msra.mxu0 %v2578
    %3349 = vmatpush.bf16.msra.mxu0 %v2570
    %3350 = vmatpush.bf16.msra.mxu0 %v2562
    %3351 = vmatpush.bf16.msra.mxu0 %v2554
    %3352 = vmatpush.bf16.msra.mxu0 %v2546
    %3353 = vmatmul.bf16.gmra.mxu0 %v663
    %v3354 = vpop.f32.mrf.mxu0
    %v3355 = vadd.f32 %v3336, %v3354
    %v3356 = vpop.f32.mrf.mxu0
    %v3357 = vadd.f32 %v3338, %v3356
    %3358 = vmatmul.bf16.gmra.mxu0 %v671
    %v3359 = vpop.f32.mrf.mxu0
    %v3360 = vadd.f32 %v3341, %v3359
    %v3361 = vpop.f32.mrf.mxu0
    %v3362 = vadd.f32 %v3343, %v3361
    %3363 = vdwg.mxu0
    %3364 = vmatpush.bf16.msra.mxu0 %v2666
    %3365 = vmatpush.bf16.msra.mxu0 %v2658
    %3366 = vmatpush.bf16.msra.mxu0 %v2650
    %3367 = vmatpush.bf16.msra.mxu0 %v2642
    %3368 = vmatpush.bf16.msra.mxu0 %v2634
    %3369 = vmatpush.bf16.msra.mxu0 %v2626
    %3370 = vmatpush.bf16.msra.mxu0 %v2618
    %3371 = vmatpush.bf16.msra.mxu0 %v2610
    %3372 = vmatmul.bf16.gmra.mxu0 %v664
    %v3373 = vpop.f32.mrf.mxu0
    %v3374 = vadd.f32 %v3355, %v3373
    %v3375 = vpop.f32.mrf.mxu0
    %v3376 = vadd.f32 %v3357, %v3375
    %3377 = vmatmul.bf16.gmra.mxu0 %v672
    %v3378 = vpop.f32.mrf.mxu0
    %v3379 = vadd.f32 %v3360, %v3378
    %v3380 = vpop.f32.mrf.mxu0
    %v3381 = vadd.f32 %v3362, %v3380
    %3382 = vdwg.mxu0
    %3383 = vmatpush.bf16.msra.mxu0 %v2730
    %3384 = vmatpush.bf16.msra.mxu0 %v2722
    %3385 = vmatpush.bf16.msra.mxu0 %v2714
    %3386 = vmatpush.bf16.msra.mxu0 %v2706
    %3387 = vmatpush.bf16.msra.mxu0 %v2698
    %3388 = vmatpush.bf16.msra.mxu0 %v2690
    %3389 = vmatpush.bf16.msra.mxu0 %v2682
    %3390 = vmatpush.bf16.msra.mxu0 %v2674
    %3391 = vmatmul.bf16.gmra.mxu0 %v665
    %v3392 = vpop.f32.mrf.mxu0
    %v3393 = vadd.f32 %v3374, %v3392
    %v3394 = vpop.f32.mrf.mxu0
    %v3395 = vadd.f32 %v3376, %v3394
    %3396 = vmatmul.bf16.gmra.mxu0 %v673
    %v3397 = vpop.f32.mrf.mxu0
    %v3398 = vadd.f32 %v3379, %v3397
    %v3399 = vpop.f32.mrf.mxu0
    %v3400 = vadd.f32 %v3381, %v3399
    %3401 = vdwg.mxu0
    %3402 = vmatpush.bf16.msra.mxu0 %v2283
    %3403 = vmatpush.bf16.msra.mxu0 %v2275
    %3404 = vmatpush.bf16.msra.mxu0 %v2267
    %3405 = vmatpush.bf16.msra.mxu0 %v2259
    %3406 = vmatpush.bf16.msra.mxu0 %v2251
    %3407 = vmatpush.bf16.msra.mxu0 %v2243
    %3408 = vmatpush.bf16.msra.mxu0 %v2235
    %3409 = vmatpush.bf16.msra.mxu0 %v2227
    %3410 = vmatmul.bf16.gmra.mxu0 %v658
    %v3411 = vpop.f32.mrf.mxu0
    %v3412 = vadd.f32 0.0, %v3411
    %v3413 = vpop.f32.mrf.mxu0
    %v3414 = vadd.f32 0.0, %v3413
    %3415 = vmatmul.bf16.gmra.mxu0 %v666
    %v3416 = vpop.f32.mrf.mxu0
    %v3417 = vadd.f32 0.0, %v3416
    %v3418 = vpop.f32.mrf.mxu0
    %v3419 = vadd.f32 0.0, %v3418
    %3420 = vdwg.mxu0
    %3421 = vmatpush.bf16.msra.mxu0 %v2347
    %3422 = vmatpush.bf16.msra.mxu0 %v2339
    %3423 = vmatpush.bf16.msra.mxu0 %v2331
    %3424 = vmatpush.bf16.msra.mxu0 %v2323
    %3425 = vmatpush.bf16.msra.mxu0 %v2315
    %3426 = vmatpush.bf16.msra.mxu0 %v2307
    %3427 = vmatpush.bf16.msra.mxu0 %v2299
    %3428 = vmatpush.bf16.msra.mxu0 %v2291
    %3429 = vmatmul.bf16.gmra.mxu0 %v659
    %v3430 = vpop.f32.mrf.mxu0
    %v3431 = vadd.f32 %v3412, %v3430
    %v3432 = vpop.f32.mrf.mxu0
    %v3433 = vadd.f32 %v3414, %v3432
    %3434 = vmatmul.bf16.gmra.mxu0 %v667
    %v3435 = vpop.f32.mrf.mxu0
    %v3436 = vadd.f32 %v3417, %v3435
    %v3437 = vpop.f32.mrf.mxu0
    %v3438 = vadd.f32 %v3419, %v3437
    %3439 = vdwg.mxu0
    %3440 = vmatpush.bf16.msra.mxu0 %v2411
    %3441 = vmatpush.bf16.msra.mxu0 %v2403
    %3442 = vmatpush.bf16.msra.mxu0 %v2395
    %3443 = vmatpush.bf16.msra.mxu0 %v2387
    %3444 = vmatpush.bf16.msra.mxu0 %v2379
    %3445 = vmatpush.bf16.msra.mxu0 %v2371
    %3446 = vmatpush.bf16.msra.mxu0 %v2363
    %3447 = vmatpush.bf16.msra.mxu0 %v2355
    %3448 = vmatmul.bf16.gmra.mxu0 %v660
    %v3449 = vpop.f32.mrf.mxu0
    %v3450 = vadd.f32 %v3431, %v3449
    %v3451 = vpop.f32.mrf.mxu0
    %v3452 = vadd.f32 %v3433, %v3451
    %3453 = vmatmul.bf16.gmra.mxu0 %v668
    %v3454 = vpop.f32.mrf.mxu0
    %v3455 = vadd.f32 %v3436, %v3454
    %v3456 = vpop.f32.mrf.mxu0
    %v3457 = vadd.f32 %v3438, %v3456
    %3458 = vdwg.mxu0
    %3459 = vmatpush.bf16.msra.mxu0 %v2475
    %3460 = vmatpush.bf16.msra.mxu0 %v2467
    %3461 = vmatpush.bf16.msra.mxu0 %v2459
    %3462 = vmatpush.bf16.msra.mxu0 %v2451
    %3463 = vmatpush.bf16.msra.mxu0 %v2443
    %3464 = vmatpush.bf16.msra.mxu0 %v2435
    %3465 = vmatpush.bf16.msra.mxu0 %v2427
    %3466 = vmatpush.bf16.msra.mxu0 %v2419
    %3467 = vmatmul.bf16.gmra.mxu0 %v661
    %v3468 = vpop.f32.mrf.mxu0
    %v3469 = vadd.f32 %v3450, %v3468
    %v3470 = vpop.f32.mrf.mxu0
    %v3471 = vadd.f32 %v3452, %v3470
    %3472 = vmatmul.bf16.gmra.mxu0 %v669
    %v3473 = vpop.f32.mrf.mxu0
    %v3474 = vadd.f32 %v3455, %v3473
    %v3475 = vpop.f32.mrf.mxu0
    %v3476 = vadd.f32 %v3457, %v3475
    %3477 = vdwg.mxu0
    %3478 = vmatpush.bf16.msra.mxu0 %v2539
    %3479 = vmatpush.bf16.msra.mxu0 %v2531
    %3480 = vmatpush.bf16.msra.mxu0 %v2523
    %3481 = vmatpush.bf16.msra.mxu0 %v2515
    %3482 = vmatpush.bf16.msra.mxu0 %v2507
    %3483 = vmatpush.bf16.msra.mxu0 %v2499
    %3484 = vmatpush.bf16.msra.mxu0 %v2491
    %3485 = vmatpush.bf16.msra.mxu0 %v2483
    %3486 = vmatmul.bf16.gmra.mxu0 %v662
    %v3487 = vpop.f32.mrf.mxu0
    %v3488 = vadd.f32 %v3469, %v3487
    %v3489 = vpop.f32.mrf.mxu0
    %v3490 = vadd.f32 %v3471, %v3489
    %3491 = vmatmul.bf16.gmra.mxu0 %v670
    %v3492 = vpop.f32.mrf.mxu0
    %v3493 = vadd.f32 %v3474, %v3492
    %v3494 = vpop.f32.mrf.mxu0
    %v3495 = vadd.f32 %v3476, %v3494
    %3496 = vdwg.mxu0
    %3497 = vmatpush.bf16.msra.mxu0 %v2603
    %3498 = vmatpush.bf16.msra.mxu0 %v2595
    %3499 = vmatpush.bf16.msra.mxu0 %v2587
    %3500 = vmatpush.bf16.msra.mxu0 %v2579
    %3501 = vmatpush.bf16.msra.mxu0 %v2571
    %3502 = vmatpush.bf16.msra.mxu0 %v2563
    %3503 = vmatpush.bf16.msra.mxu0 %v2555
    %3504 = vmatpush.bf16.msra.mxu0 %v2547
    %3505 = vmatmul.bf16.gmra.mxu0 %v663
    %v3506 = vpop.f32.mrf.mxu0
    %v3507 = vadd.f32 %v3488, %v3506
    %v3508 = vpop.f32.mrf.mxu0
    %v3509 = vadd.f32 %v3490, %v3508
    %3510 = vmatmul.bf16.gmra.mxu0 %v671
    %v3511 = vpop.f32.mrf.mxu0
    %v3512 = vadd.f32 %v3493, %v3511
    %v3513 = vpop.f32.mrf.mxu0
    %v3514 = vadd.f32 %v3495, %v3513
    %3515 = vdwg.mxu0
    %3516 = vmatpush.bf16.msra.mxu0 %v2667
    %3517 = vmatpush.bf16.msra.mxu0 %v2659
    %3518 = vmatpush.bf16.msra.mxu0 %v2651
    %3519 = vmatpush.bf16.msra.mxu0 %v2643
    %3520 = vmatpush.bf16.msra.mxu0 %v2635
    %3521 = vmatpush.bf16.msra.mxu0 %v2627
    %3522 = vmatpush.bf16.msra.mxu0 %v2619
    %3523 = vmatpush.bf16.msra.mxu0 %v2611
    %3524 = vmatmul.bf16.gmra.mxu0 %v664
    %v3525 = vpop.f32.mrf.mxu0
    %v3526 = vadd.f32 %v3507, %v3525
    %v3527 = vpop.f32.mrf.mxu0
    %v3528 = vadd.f32 %v3509, %v3527
    %3529 = vmatmul.bf16.gmra.mxu0 %v672
    %v3530 = vpop.f32.mrf.mxu0
    %v3531 = vadd.f32 %v3512, %v3530
    %v3532 = vpop.f32.mrf.mxu0
    %v3533 = vadd.f32 %v3514, %v3532
    %3534 = vdwg.mxu0
    %3535 = vmatpush.bf16.msra.mxu0 %v2731
    %3536 = vmatpush.bf16.msra.mxu0 %v2723
    %3537 = vmatpush.bf16.msra.mxu0 %v2715
    %3538 = vmatpush.bf16.msra.mxu0 %v2707
    %3539 = vmatpush.bf16.msra.mxu0 %v2699
    %3540 = vmatpush.bf16.msra.mxu0 %v2691
    %3541 = vmatpush.bf16.msra.mxu0 %v2683
    %3542 = vmatpush.bf16.msra.mxu0 %v2675
    %3543 = vmatmul.bf16.gmra.mxu0 %v665
    %v3544 = vpop.f32.mrf.mxu0
    %v3545 = vadd.f32 %v3526, %v3544
    %v3546 = vpop.f32.mrf.mxu0
    %v3547 = vadd.f32 %v3528, %v3546
    %3548 = vmatmul.bf16.gmra.mxu0 %v673
    %v3549 = vpop.f32.mrf.mxu0
    %v3550 = vadd.f32 %v3531, %v3549
    %v3551 = vpop.f32.mrf.mxu0
    %v3552 = vadd.f32 %v3533, %v3551
    %3553 = vdwg.mxu0
    %3554 = vmatpush.bf16.msra.mxu0 %v2284
    %3555 = vmatpush.bf16.msra.mxu0 %v2276
    %3556 = vmatpush.bf16.msra.mxu0 %v2268
    %3557 = vmatpush.bf16.msra.mxu0 %v2260
    %3558 = vmatpush.bf16.msra.mxu0 %v2252
    %3559 = vmatpush.bf16.msra.mxu0 %v2244
    %3560 = vmatpush.bf16.msra.mxu0 %v2236
    %3561 = vmatpush.bf16.msra.mxu0 %v2228
    %3562 = vmatmul.bf16.gmra.mxu0 %v658
    %v3563 = vpop.f32.mrf.mxu0
    %v3564 = vadd.f32 0.0, %v3563
    %v3565 = vpop.f32.mrf.mxu0
    %v3566 = vadd.f32 0.0, %v3565
    %3567 = vmatmul.bf16.gmra.mxu0 %v666
    %v3568 = vpop.f32.mrf.mxu0
    %v3569 = vadd.f32 0.0, %v3568
    %v3570 = vpop.f32.mrf.mxu0
    %v3571 = vadd.f32 0.0, %v3570
    %3572 = vdwg.mxu0
    %3573 = vmatpush.bf16.msra.mxu0 %v2348
    %3574 = vmatpush.bf16.msra.mxu0 %v2340
    %3575 = vmatpush.bf16.msra.mxu0 %v2332
    %3576 = vmatpush.bf16.msra.mxu0 %v2324
    %3577 = vmatpush.bf16.msra.mxu0 %v2316
    %3578 = vmatpush.bf16.msra.mxu0 %v2308
    %3579 = vmatpush.bf16.msra.mxu0 %v2300
    %3580 = vmatpush.bf16.msra.mxu0 %v2292
    %3581 = vmatmul.bf16.gmra.mxu0 %v659
    %v3582 = vpop.f32.mrf.mxu0
    %v3583 = vadd.f32 %v3564, %v3582
    %v3584 = vpop.f32.mrf.mxu0
    %v3585 = vadd.f32 %v3566, %v3584
    %3586 = vmatmul.bf16.gmra.mxu0 %v667
    %v3587 = vpop.f32.mrf.mxu0
    %v3588 = vadd.f32 %v3569, %v3587
    %v3589 = vpop.f32.mrf.mxu0
    %v3590 = vadd.f32 %v3571, %v3589
    %3591 = vdwg.mxu0
    %3592 = vmatpush.bf16.msra.mxu0 %v2412
    %3593 = vmatpush.bf16.msra.mxu0 %v2404
    %3594 = vmatpush.bf16.msra.mxu0 %v2396
    %3595 = vmatpush.bf16.msra.mxu0 %v2388
    %3596 = vmatpush.bf16.msra.mxu0 %v2380
    %3597 = vmatpush.bf16.msra.mxu0 %v2372
    %3598 = vmatpush.bf16.msra.mxu0 %v2364
    %3599 = vmatpush.bf16.msra.mxu0 %v2356
    %3600 = vmatmul.bf16.gmra.mxu0 %v660
    %v3601 = vpop.f32.mrf.mxu0
    %v3602 = vadd.f32 %v3583, %v3601
    %v3603 = vpop.f32.mrf.mxu0
    %v3604 = vadd.f32 %v3585, %v3603
    %3605 = vmatmul.bf16.gmra.mxu0 %v668
    %v3606 = vpop.f32.mrf.mxu0
    %v3607 = vadd.f32 %v3588, %v3606
    %v3608 = vpop.f32.mrf.mxu0
    %v3609 = vadd.f32 %v3590, %v3608
    %3610 = vdwg.mxu0
    %3611 = vmatpush.bf16.msra.mxu0 %v2476
    %3612 = vmatpush.bf16.msra.mxu0 %v2468
    %3613 = vmatpush.bf16.msra.mxu0 %v2460
    %3614 = vmatpush.bf16.msra.mxu0 %v2452
    %3615 = vmatpush.bf16.msra.mxu0 %v2444
    %3616 = vmatpush.bf16.msra.mxu0 %v2436
    %3617 = vmatpush.bf16.msra.mxu0 %v2428
    %3618 = vmatpush.bf16.msra.mxu0 %v2420
    %3619 = vmatmul.bf16.gmra.mxu0 %v661
    %v3620 = vpop.f32.mrf.mxu0
    %v3621 = vadd.f32 %v3602, %v3620
    %v3622 = vpop.f32.mrf.mxu0
    %v3623 = vadd.f32 %v3604, %v3622
    %3624 = vmatmul.bf16.gmra.mxu0 %v669
    %v3625 = vpop.f32.mrf.mxu0
    %v3626 = vadd.f32 %v3607, %v3625
    %v3627 = vpop.f32.mrf.mxu0
    %v3628 = vadd.f32 %v3609, %v3627
    %3629 = vdwg.mxu0
    %3630 = vmatpush.bf16.msra.mxu0 %v2540
    %3631 = vmatpush.bf16.msra.mxu0 %v2532
    %3632 = vmatpush.bf16.msra.mxu0 %v2524
    %3633 = vmatpush.bf16.msra.mxu0 %v2516
    %3634 = vmatpush.bf16.msra.mxu0 %v2508
    %3635 = vmatpush.bf16.msra.mxu0 %v2500
    %3636 = vmatpush.bf16.msra.mxu0 %v2492
    %3637 = vmatpush.bf16.msra.mxu0 %v2484
    %3638 = vmatmul.bf16.gmra.mxu0 %v662
    %v3639 = vpop.f32.mrf.mxu0
    %v3640 = vadd.f32 %v3621, %v3639
    %v3641 = vpop.f32.mrf.mxu0
    %v3642 = vadd.f32 %v3623, %v3641
    %3643 = vmatmul.bf16.gmra.mxu0 %v670
    %v3644 = vpop.f32.mrf.mxu0
    %v3645 = vadd.f32 %v3626, %v3644
    %v3646 = vpop.f32.mrf.mxu0
    %v3647 = vadd.f32 %v3628, %v3646
    %3648 = vdwg.mxu0
    %3649 = vmatpush.bf16.msra.mxu0 %v2604
    %3650 = vmatpush.bf16.msra.mxu0 %v2596
    %3651 = vmatpush.bf16.msra.mxu0 %v2588
    %3652 = vmatpush.bf16.msra.mxu0 %v2580
    %3653 = vmatpush.bf16.msra.mxu0 %v2572
    %3654 = vmatpush.bf16.msra.mxu0 %v2564
    %3655 = vmatpush.bf16.msra.mxu0 %v2556
    %3656 = vmatpush.bf16.msra.mxu0 %v2548
    %3657 = vmatmul.bf16.gmra.mxu0 %v663
    %v3658 = vpop.f32.mrf.mxu0
    %v3659 = vadd.f32 %v3640, %v3658
    %v3660 = vpop.f32.mrf.mxu0
    %v3661 = vadd.f32 %v3642, %v3660
    %3662 = vmatmul.bf16.gmra.mxu0 %v671
    %v3663 = vpop.f32.mrf.mxu0
    %v3664 = vadd.f32 %v3645, %v3663
    %v3665 = vpop.f32.mrf.mxu0
    %v3666 = vadd.f32 %v3647, %v3665
    %3667 = vdwg.mxu0
    %3668 = vmatpush.bf16.msra.mxu0 %v2668
    %3669 = vmatpush.bf16.msra.mxu0 %v2660
    %3670 = vmatpush.bf16.msra.mxu0 %v2652
    %3671 = vmatpush.bf16.msra.mxu0 %v2644
    %3672 = vmatpush.bf16.msra.mxu0 %v2636
    %3673 = vmatpush.bf16.msra.mxu0 %v2628
    %3674 = vmatpush.bf16.msra.mxu0 %v2620
    %3675 = vmatpush.bf16.msra.mxu0 %v2612
    %3676 = vmatmul.bf16.gmra.mxu0 %v664
    %v3677 = vpop.f32.mrf.mxu0
    %v3678 = vadd.f32 %v3659, %v3677
    %v3679 = vpop.f32.mrf.mxu0
    %v3680 = vadd.f32 %v3661, %v3679
    %3681 = vmatmul.bf16.gmra.mxu0 %v672
    %v3682 = vpop.f32.mrf.mxu0
    %v3683 = vadd.f32 %v3664, %v3682
    %v3684 = vpop.f32.mrf.mxu0
    %v3685 = vadd.f32 %v3666, %v3684
    %3686 = vdwg.mxu0
    %3687 = vmatpush.bf16.msra.mxu0 %v2732
    %3688 = vmatpush.bf16.msra.mxu0 %v2724
    %3689 = vmatpush.bf16.msra.mxu0 %v2716
    %3690 = vmatpush.bf16.msra.mxu0 %v2708
    %3691 = vmatpush.bf16.msra.mxu0 %v2700
    %3692 = vmatpush.bf16.msra.mxu0 %v2692
    %3693 = vmatpush.bf16.msra.mxu0 %v2684
    %3694 = vmatpush.bf16.msra.mxu0 %v2676
    %3695 = vmatmul.bf16.gmra.mxu0 %v665
    %v3696 = vpop.f32.mrf.mxu0
    %v3697 = vadd.f32 %v3678, %v3696
    %v3698 = vpop.f32.mrf.mxu0
    %v3699 = vadd.f32 %v3680, %v3698
    %3700 = vmatmul.bf16.gmra.mxu0 %v673
    %v3701 = vpop.f32.mrf.mxu0
    %v3702 = vadd.f32 %v3683, %v3701
    %v3703 = vpop.f32.mrf.mxu0
    %v3704 = vadd.f32 %v3685, %v3703
    %3705 = vdwg.mxu0
    %3706 = vmatpush.bf16.msra.mxu0 %v2285
    %3707 = vmatpush.bf16.msra.mxu0 %v2277
    %3708 = vmatpush.bf16.msra.mxu0 %v2269
    %3709 = vmatpush.bf16.msra.mxu0 %v2261
    %3710 = vmatpush.bf16.msra.mxu0 %v2253
    %3711 = vmatpush.bf16.msra.mxu0 %v2245
    %3712 = vmatpush.bf16.msra.mxu0 %v2237
    %3713 = vmatpush.bf16.msra.mxu0 %v2229
    %3714 = vmatmul.bf16.gmra.mxu0 %v658
    %v3715 = vpop.f32.mrf.mxu0
    %v3716 = vadd.f32 0.0, %v3715
    %v3717 = vpop.f32.mrf.mxu0
    %v3718 = vadd.f32 0.0, %v3717
    %3719 = vmatmul.bf16.gmra.mxu0 %v666
    %v3720 = vpop.f32.mrf.mxu0
    %v3721 = vadd.f32 0.0, %v3720
    %v3722 = vpop.f32.mrf.mxu0
    %v3723 = vadd.f32 0.0, %v3722
    %3724 = vdwg.mxu0
    %3725 = vmatpush.bf16.msra.mxu0 %v2349
    %3726 = vmatpush.bf16.msra.mxu0 %v2341
    %3727 = vmatpush.bf16.msra.mxu0 %v2333
    %3728 = vmatpush.bf16.msra.mxu0 %v2325
    %3729 = vmatpush.bf16.msra.mxu0 %v2317
    %3730 = vmatpush.bf16.msra.mxu0 %v2309
    %3731 = vmatpush.bf16.msra.mxu0 %v2301
    %3732 = vmatpush.bf16.msra.mxu0 %v2293
    %3733 = vmatmul.bf16.gmra.mxu0 %v659
    %v3734 = vpop.f32.mrf.mxu0
    %v3735 = vadd.f32 %v3716, %v3734
    %v3736 = vpop.f32.mrf.mxu0
    %v3737 = vadd.f32 %v3718, %v3736
    %3738 = vmatmul.bf16.gmra.mxu0 %v667
    %v3739 = vpop.f32.mrf.mxu0
    %v3740 = vadd.f32 %v3721, %v3739
    %v3741 = vpop.f32.mrf.mxu0
    %v3742 = vadd.f32 %v3723, %v3741
    %3743 = vdwg.mxu0
    %3744 = vmatpush.bf16.msra.mxu0 %v2413
    %3745 = vmatpush.bf16.msra.mxu0 %v2405
    %3746 = vmatpush.bf16.msra.mxu0 %v2397
    %3747 = vmatpush.bf16.msra.mxu0 %v2389
    %3748 = vmatpush.bf16.msra.mxu0 %v2381
    %3749 = vmatpush.bf16.msra.mxu0 %v2373
    %3750 = vmatpush.bf16.msra.mxu0 %v2365
    %3751 = vmatpush.bf16.msra.mxu0 %v2357
    %3752 = vmatmul.bf16.gmra.mxu0 %v660
    %v3753 = vpop.f32.mrf.mxu0
    %v3754 = vadd.f32 %v3735, %v3753
    %v3755 = vpop.f32.mrf.mxu0
    %v3756 = vadd.f32 %v3737, %v3755
    %3757 = vmatmul.bf16.gmra.mxu0 %v668
    %v3758 = vpop.f32.mrf.mxu0
    %v3759 = vadd.f32 %v3740, %v3758
    %v3760 = vpop.f32.mrf.mxu0
    %v3761 = vadd.f32 %v3742, %v3760
    %3762 = vdwg.mxu0
    %3763 = vmatpush.bf16.msra.mxu0 %v2477
    %3764 = vmatpush.bf16.msra.mxu0 %v2469
    %3765 = vmatpush.bf16.msra.mxu0 %v2461
    %3766 = vmatpush.bf16.msra.mxu0 %v2453
    %3767 = vmatpush.bf16.msra.mxu0 %v2445
    %3768 = vmatpush.bf16.msra.mxu0 %v2437
    %3769 = vmatpush.bf16.msra.mxu0 %v2429
    %3770 = vmatpush.bf16.msra.mxu0 %v2421
    %3771 = vmatmul.bf16.gmra.mxu0 %v661
    %v3772 = vpop.f32.mrf.mxu0
    %v3773 = vadd.f32 %v3754, %v3772
    %v3774 = vpop.f32.mrf.mxu0
    %v3775 = vadd.f32 %v3756, %v3774
    %3776 = vmatmul.bf16.gmra.mxu0 %v669
    %v3777 = vpop.f32.mrf.mxu0
    %v3778 = vadd.f32 %v3759, %v3777
    %v3779 = vpop.f32.mrf.mxu0
    %v3780 = vadd.f32 %v3761, %v3779
    %3781 = vdwg.mxu0
    %3782 = vmatpush.bf16.msra.mxu0 %v2541
    %3783 = vmatpush.bf16.msra.mxu0 %v2533
    %3784 = vmatpush.bf16.msra.mxu0 %v2525
    %3785 = vmatpush.bf16.msra.mxu0 %v2517
    %3786 = vmatpush.bf16.msra.mxu0 %v2509
    %3787 = vmatpush.bf16.msra.mxu0 %v2501
    %3788 = vmatpush.bf16.msra.mxu0 %v2493
    %3789 = vmatpush.bf16.msra.mxu0 %v2485
    %3790 = vmatmul.bf16.gmra.mxu0 %v662
    %v3791 = vpop.f32.mrf.mxu0
    %v3792 = vadd.f32 %v3773, %v3791
    %v3793 = vpop.f32.mrf.mxu0
    %v3794 = vadd.f32 %v3775, %v3793
    %3795 = vmatmul.bf16.gmra.mxu0 %v670
    %v3796 = vpop.f32.mrf.mxu0
    %v3797 = vadd.f32 %v3778, %v3796
    %v3798 = vpop.f32.mrf.mxu0
    %v3799 = vadd.f32 %v3780, %v3798
    %3800 = vdwg.mxu0
    %3801 = vmatpush.bf16.msra.mxu0 %v2605
    %3802 = vmatpush.bf16.msra.mxu0 %v2597
    %3803 = vmatpush.bf16.msra.mxu0 %v2589
    %3804 = vmatpush.bf16.msra.mxu0 %v2581
    %3805 = vmatpush.bf16.msra.mxu0 %v2573
    %3806 = vmatpush.bf16.msra.mxu0 %v2565
    %3807 = vmatpush.bf16.msra.mxu0 %v2557
    %3808 = vmatpush.bf16.msra.mxu0 %v2549
    %3809 = vmatmul.bf16.gmra.mxu0 %v663
    %v3810 = vpop.f32.mrf.mxu0
    %v3811 = vadd.f32 %v3792, %v3810
    %v3812 = vpop.f32.mrf.mxu0
    %v3813 = vadd.f32 %v3794, %v3812
    %3814 = vmatmul.bf16.gmra.mxu0 %v671
    %v3815 = vpop.f32.mrf.mxu0
    %v3816 = vadd.f32 %v3797, %v3815
    %v3817 = vpop.f32.mrf.mxu0
    %v3818 = vadd.f32 %v3799, %v3817
    %3819 = vdwg.mxu0
    %3820 = vmatpush.bf16.msra.mxu0 %v2669
    %3821 = vmatpush.bf16.msra.mxu0 %v2661
    %3822 = vmatpush.bf16.msra.mxu0 %v2653
    %3823 = vmatpush.bf16.msra.mxu0 %v2645
    %3824 = vmatpush.bf16.msra.mxu0 %v2637
    %3825 = vmatpush.bf16.msra.mxu0 %v2629
    %3826 = vmatpush.bf16.msra.mxu0 %v2621
    %3827 = vmatpush.bf16.msra.mxu0 %v2613
    %3828 = vmatmul.bf16.gmra.mxu0 %v664
    %v3829 = vpop.f32.mrf.mxu0
    %v3830 = vadd.f32 %v3811, %v3829
    %v3831 = vpop.f32.mrf.mxu0
    %v3832 = vadd.f32 %v3813, %v3831
    %3833 = vmatmul.bf16.gmra.mxu0 %v672
    %v3834 = vpop.f32.mrf.mxu0
    %v3835 = vadd.f32 %v3816, %v3834
    %v3836 = vpop.f32.mrf.mxu0
    %v3837 = vadd.f32 %v3818, %v3836
    %3838 = vdwg.mxu0
    %3839 = vmatpush.bf16.msra.mxu0 %v2733
    %3840 = vmatpush.bf16.msra.mxu0 %v2725
    %3841 = vmatpush.bf16.msra.mxu0 %v2717
    %3842 = vmatpush.bf16.msra.mxu0 %v2709
    %3843 = vmatpush.bf16.msra.mxu0 %v2701
    %3844 = vmatpush.bf16.msra.mxu0 %v2693
    %3845 = vmatpush.bf16.msra.mxu0 %v2685
    %3846 = vmatpush.bf16.msra.mxu0 %v2677
    %3847 = vmatmul.bf16.gmra.mxu0 %v665
    %v3848 = vpop.f32.mrf.mxu0
    %v3849 = vadd.f32 %v3830, %v3848
    %v3850 = vpop.f32.mrf.mxu0
    %v3851 = vadd.f32 %v3832, %v3850
    %3852 = vmatmul.bf16.gmra.mxu0 %v673
    %v3853 = vpop.f32.mrf.mxu0
    %v3854 = vadd.f32 %v3835, %v3853
    %v3855 = vpop.f32.mrf.mxu0
    %v3856 = vadd.f32 %v3837, %v3855
    %3857 = vdwg.mxu0
    %3858 = vmatpush.bf16.msra.mxu0 %v2286
    %3859 = vmatpush.bf16.msra.mxu0 %v2278
    %3860 = vmatpush.bf16.msra.mxu0 %v2270
    %3861 = vmatpush.bf16.msra.mxu0 %v2262
    %3862 = vmatpush.bf16.msra.mxu0 %v2254
    %3863 = vmatpush.bf16.msra.mxu0 %v2246
    %3864 = vmatpush.bf16.msra.mxu0 %v2238
    %3865 = vmatpush.bf16.msra.mxu0 %v2230
    %3866 = vmatmul.bf16.gmra.mxu0 %v658
    %v3867 = vpop.f32.mrf.mxu0
    %v3868 = vadd.f32 0.0, %v3867
    %v3869 = vpop.f32.mrf.mxu0
    %v3870 = vadd.f32 0.0, %v3869
    %3871 = vmatmul.bf16.gmra.mxu0 %v666
    %v3872 = vpop.f32.mrf.mxu0
    %v3873 = vadd.f32 0.0, %v3872
    %v3874 = vpop.f32.mrf.mxu0
    %v3875 = vadd.f32 0.0, %v3874
    %3876 = vdwg.mxu0
    %3877 = vmatpush.bf16.msra.mxu0 %v2350
    %3878 = vmatpush.bf16.msra.mxu0 %v2342
    %3879 = vmatpush.bf16.msra.mxu0 %v2334
    %3880 = vmatpush.bf16.msra.mxu0 %v2326
    %3881 = vmatpush.bf16.msra.mxu0 %v2318
    %3882 = vmatpush.bf16.msra.mxu0 %v2310
    %3883 = vmatpush.bf16.msra.mxu0 %v2302
    %3884 = vmatpush.bf16.msra.mxu0 %v2294
    %3885 = vmatmul.bf16.gmra.mxu0 %v659
    %v3886 = vpop.f32.mrf.mxu0
    %v3887 = vadd.f32 %v3868, %v3886
    %v3888 = vpop.f32.mrf.mxu0
    %v3889 = vadd.f32 %v3870, %v3888
    %3890 = vmatmul.bf16.gmra.mxu0 %v667
    %v3891 = vpop.f32.mrf.mxu0
    %v3892 = vadd.f32 %v3873, %v3891
    %v3893 = vpop.f32.mrf.mxu0
    %v3894 = vadd.f32 %v3875, %v3893
    %3895 = vdwg.mxu0
    %3896 = vmatpush.bf16.msra.mxu0 %v2414
    %3897 = vmatpush.bf16.msra.mxu0 %v2406
    %3898 = vmatpush.bf16.msra.mxu0 %v2398
    %3899 = vmatpush.bf16.msra.mxu0 %v2390
    %3900 = vmatpush.bf16.msra.mxu0 %v2382
    %3901 = vmatpush.bf16.msra.mxu0 %v2374
    %3902 = vmatpush.bf16.msra.mxu0 %v2366
    %3903 = vmatpush.bf16.msra.mxu0 %v2358
    %3904 = vmatmul.bf16.gmra.mxu0 %v660
    %v3905 = vpop.f32.mrf.mxu0
    %v3906 = vadd.f32 %v3887, %v3905
    %v3907 = vpop.f32.mrf.mxu0
    %v3908 = vadd.f32 %v3889, %v3907
    %3909 = vmatmul.bf16.gmra.mxu0 %v668
    %v3910 = vpop.f32.mrf.mxu0
    %v3911 = vadd.f32 %v3892, %v3910
    %v3912 = vpop.f32.mrf.mxu0
    %v3913 = vadd.f32 %v3894, %v3912
    %3914 = vdwg.mxu0
    %3915 = vmatpush.bf16.msra.mxu0 %v2478
    %3916 = vmatpush.bf16.msra.mxu0 %v2470
    %3917 = vmatpush.bf16.msra.mxu0 %v2462
    %3918 = vmatpush.bf16.msra.mxu0 %v2454
    %3919 = vmatpush.bf16.msra.mxu0 %v2446
    %3920 = vmatpush.bf16.msra.mxu0 %v2438
    %3921 = vmatpush.bf16.msra.mxu0 %v2430
    %3922 = vmatpush.bf16.msra.mxu0 %v2422
    %3923 = vmatmul.bf16.gmra.mxu0 %v661
    %v3924 = vpop.f32.mrf.mxu0
    %v3925 = vadd.f32 %v3906, %v3924
    %v3926 = vpop.f32.mrf.mxu0
    %v3927 = vadd.f32 %v3908, %v3926
    %3928 = vmatmul.bf16.gmra.mxu0 %v669
    %v3929 = vpop.f32.mrf.mxu0
    %v3930 = vadd.f32 %v3911, %v3929
    %v3931 = vpop.f32.mrf.mxu0
    %v3932 = vadd.f32 %v3913, %v3931
    %3933 = vdwg.mxu0
    %3934 = vmatpush.bf16.msra.mxu0 %v2542
    %3935 = vmatpush.bf16.msra.mxu0 %v2534
    %3936 = vmatpush.bf16.msra.mxu0 %v2526
    %3937 = vmatpush.bf16.msra.mxu0 %v2518
    %3938 = vmatpush.bf16.msra.mxu0 %v2510
    %3939 = vmatpush.bf16.msra.mxu0 %v2502
    %3940 = vmatpush.bf16.msra.mxu0 %v2494
    %3941 = vmatpush.bf16.msra.mxu0 %v2486
    %3942 = vmatmul.bf16.gmra.mxu0 %v662
    %v3943 = vpop.f32.mrf.mxu0
    %v3944 = vadd.f32 %v3925, %v3943
    %v3945 = vpop.f32.mrf.mxu0
    %v3946 = vadd.f32 %v3927, %v3945
    %3947 = vmatmul.bf16.gmra.mxu0 %v670
    %v3948 = vpop.f32.mrf.mxu0
    %v3949 = vadd.f32 %v3930, %v3948
    %v3950 = vpop.f32.mrf.mxu0
    %v3951 = vadd.f32 %v3932, %v3950
    %3952 = vdwg.mxu0
    %3953 = vmatpush.bf16.msra.mxu0 %v2606
    %3954 = vmatpush.bf16.msra.mxu0 %v2598
    %3955 = vmatpush.bf16.msra.mxu0 %v2590
    %3956 = vmatpush.bf16.msra.mxu0 %v2582
    %3957 = vmatpush.bf16.msra.mxu0 %v2574
    %3958 = vmatpush.bf16.msra.mxu0 %v2566
    %3959 = vmatpush.bf16.msra.mxu0 %v2558
    %3960 = vmatpush.bf16.msra.mxu0 %v2550
    %3961 = vmatmul.bf16.gmra.mxu0 %v663
    %v3962 = vpop.f32.mrf.mxu0
    %v3963 = vadd.f32 %v3944, %v3962
    %v3964 = vpop.f32.mrf.mxu0
    %v3965 = vadd.f32 %v3946, %v3964
    %3966 = vmatmul.bf16.gmra.mxu0 %v671
    %v3967 = vpop.f32.mrf.mxu0
    %v3968 = vadd.f32 %v3949, %v3967
    %v3969 = vpop.f32.mrf.mxu0
    %v3970 = vadd.f32 %v3951, %v3969
    %3971 = vdwg.mxu0
    %3972 = vmatpush.bf16.msra.mxu0 %v2670
    %3973 = vmatpush.bf16.msra.mxu0 %v2662
    %3974 = vmatpush.bf16.msra.mxu0 %v2654
    %3975 = vmatpush.bf16.msra.mxu0 %v2646
    %3976 = vmatpush.bf16.msra.mxu0 %v2638
    %3977 = vmatpush.bf16.msra.mxu0 %v2630
    %3978 = vmatpush.bf16.msra.mxu0 %v2622
    %3979 = vmatpush.bf16.msra.mxu0 %v2614
    %3980 = vmatmul.bf16.gmra.mxu0 %v664
    %v3981 = vpop.f32.mrf.mxu0
    %v3982 = vadd.f32 %v3963, %v3981
    %v3983 = vpop.f32.mrf.mxu0
    %v3984 = vadd.f32 %v3965, %v3983
    %3985 = vmatmul.bf16.gmra.mxu0 %v672
    %v3986 = vpop.f32.mrf.mxu0
    %v3987 = vadd.f32 %v3968, %v3986
    %v3988 = vpop.f32.mrf.mxu0
    %v3989 = vadd.f32 %v3970, %v3988
    %3990 = vdwg.mxu0
    %3991 = vmatpush.bf16.msra.mxu0 %v2734
    %3992 = vmatpush.bf16.msra.mxu0 %v2726
    %3993 = vmatpush.bf16.msra.mxu0 %v2718
    %3994 = vmatpush.bf16.msra.mxu0 %v2710
    %3995 = vmatpush.bf16.msra.mxu0 %v2702
    %3996 = vmatpush.bf16.msra.mxu0 %v2694
    %3997 = vmatpush.bf16.msra.mxu0 %v2686
    %3998 = vmatpush.bf16.msra.mxu0 %v2678
    %3999 = vmatmul.bf16.gmra.mxu0 %v665
    %v4000 = vpop.f32.mrf.mxu0
    %v4001 = vadd.f32 %v3982, %v4000
    %v4002 = vpop.f32.mrf.mxu0
    %v4003 = vadd.f32 %v3984, %v4002
    %4004 = vmatmul.bf16.gmra.mxu0 %v673
    %v4005 = vpop.f32.mrf.mxu0
    %v4006 = vadd.f32 %v3987, %v4005
    %v4007 = vpop.f32.mrf.mxu0
    %v4008 = vadd.f32 %v3989, %v4007
    %4009 = vdwg.mxu0
    %4010 = vmatpush.bf16.msra.mxu0 %v2287
    %4011 = vmatpush.bf16.msra.mxu0 %v2279
    %4012 = vmatpush.bf16.msra.mxu0 %v2271
    %4013 = vmatpush.bf16.msra.mxu0 %v2263
    %4014 = vmatpush.bf16.msra.mxu0 %v2255
    %4015 = vmatpush.bf16.msra.mxu0 %v2247
    %4016 = vmatpush.bf16.msra.mxu0 %v2239
    %4017 = vmatpush.bf16.msra.mxu0 %v2231
    %4018 = vmatmul.bf16.gmra.mxu0 %v658
    %v4019 = vpop.f32.mrf.mxu0
    %v4020 = vadd.f32 0.0, %v4019
    %v4021 = vpop.f32.mrf.mxu0
    %v4022 = vadd.f32 0.0, %v4021
    %4023 = vmatmul.bf16.gmra.mxu0 %v666
    %v4024 = vpop.f32.mrf.mxu0
    %v4025 = vadd.f32 0.0, %v4024
    %v4026 = vpop.f32.mrf.mxu0
    %v4027 = vadd.f32 0.0, %v4026
    %4028 = vdwg.mxu0
    %4029 = vmatpush.bf16.msra.mxu0 %v2351
    %4030 = vmatpush.bf16.msra.mxu0 %v2343
    %4031 = vmatpush.bf16.msra.mxu0 %v2335
    %4032 = vmatpush.bf16.msra.mxu0 %v2327
    %4033 = vmatpush.bf16.msra.mxu0 %v2319
    %4034 = vmatpush.bf16.msra.mxu0 %v2311
    %4035 = vmatpush.bf16.msra.mxu0 %v2303
    %4036 = vmatpush.bf16.msra.mxu0 %v2295
    %4037 = vmatmul.bf16.gmra.mxu0 %v659
    %v4038 = vpop.f32.mrf.mxu0
    %v4039 = vadd.f32 %v4020, %v4038
    %v4040 = vpop.f32.mrf.mxu0
    %v4041 = vadd.f32 %v4022, %v4040
    %4042 = vmatmul.bf16.gmra.mxu0 %v667
    %v4043 = vpop.f32.mrf.mxu0
    %v4044 = vadd.f32 %v4025, %v4043
    %v4045 = vpop.f32.mrf.mxu0
    %v4046 = vadd.f32 %v4027, %v4045
    %4047 = vdwg.mxu0
    %4048 = vmatpush.bf16.msra.mxu0 %v2415
    %4049 = vmatpush.bf16.msra.mxu0 %v2407
    %4050 = vmatpush.bf16.msra.mxu0 %v2399
    %4051 = vmatpush.bf16.msra.mxu0 %v2391
    %4052 = vmatpush.bf16.msra.mxu0 %v2383
    %4053 = vmatpush.bf16.msra.mxu0 %v2375
    %4054 = vmatpush.bf16.msra.mxu0 %v2367
    %4055 = vmatpush.bf16.msra.mxu0 %v2359
    %4056 = vmatmul.bf16.gmra.mxu0 %v660
    %v4057 = vpop.f32.mrf.mxu0
    %v4058 = vadd.f32 %v4039, %v4057
    %v4059 = vpop.f32.mrf.mxu0
    %v4060 = vadd.f32 %v4041, %v4059
    %4061 = vmatmul.bf16.gmra.mxu0 %v668
    %v4062 = vpop.f32.mrf.mxu0
    %v4063 = vadd.f32 %v4044, %v4062
    %v4064 = vpop.f32.mrf.mxu0
    %v4065 = vadd.f32 %v4046, %v4064
    %4066 = vdwg.mxu0
    %4067 = vmatpush.bf16.msra.mxu0 %v2479
    %4068 = vmatpush.bf16.msra.mxu0 %v2471
    %4069 = vmatpush.bf16.msra.mxu0 %v2463
    %4070 = vmatpush.bf16.msra.mxu0 %v2455
    %4071 = vmatpush.bf16.msra.mxu0 %v2447
    %4072 = vmatpush.bf16.msra.mxu0 %v2439
    %4073 = vmatpush.bf16.msra.mxu0 %v2431
    %4074 = vmatpush.bf16.msra.mxu0 %v2423
    %4075 = vmatmul.bf16.gmra.mxu0 %v661
    %v4076 = vpop.f32.mrf.mxu0
    %v4077 = vadd.f32 %v4058, %v4076
    %v4078 = vpop.f32.mrf.mxu0
    %v4079 = vadd.f32 %v4060, %v4078
    %4080 = vmatmul.bf16.gmra.mxu0 %v669
    %v4081 = vpop.f32.mrf.mxu0
    %v4082 = vadd.f32 %v4063, %v4081
    %v4083 = vpop.f32.mrf.mxu0
    %v4084 = vadd.f32 %v4065, %v4083
    %4085 = vdwg.mxu0
    %4086 = vmatpush.bf16.msra.mxu0 %v2543
    %4087 = vmatpush.bf16.msra.mxu0 %v2535
    %4088 = vmatpush.bf16.msra.mxu0 %v2527
    %4089 = vmatpush.bf16.msra.mxu0 %v2519
    %4090 = vmatpush.bf16.msra.mxu0 %v2511
    %4091 = vmatpush.bf16.msra.mxu0 %v2503
    %4092 = vmatpush.bf16.msra.mxu0 %v2495
    %4093 = vmatpush.bf16.msra.mxu0 %v2487
    %4094 = vmatmul.bf16.gmra.mxu0 %v662
    %v4095 = vpop.f32.mrf.mxu0
    %v4096 = vadd.f32 %v4077, %v4095
    %v4097 = vpop.f32.mrf.mxu0
    %v4098 = vadd.f32 %v4079, %v4097
    %4099 = vmatmul.bf16.gmra.mxu0 %v670
    %v4100 = vpop.f32.mrf.mxu0
    %v4101 = vadd.f32 %v4082, %v4100
    %v4102 = vpop.f32.mrf.mxu0
    %v4103 = vadd.f32 %v4084, %v4102
    %4104 = vdwg.mxu0
    %4105 = vmatpush.bf16.msra.mxu0 %v2607
    %4106 = vmatpush.bf16.msra.mxu0 %v2599
    %4107 = vmatpush.bf16.msra.mxu0 %v2591
    %4108 = vmatpush.bf16.msra.mxu0 %v2583
    %4109 = vmatpush.bf16.msra.mxu0 %v2575
    %4110 = vmatpush.bf16.msra.mxu0 %v2567
    %4111 = vmatpush.bf16.msra.mxu0 %v2559
    %4112 = vmatpush.bf16.msra.mxu0 %v2551
    %4113 = vmatmul.bf16.gmra.mxu0 %v663
    %v4114 = vpop.f32.mrf.mxu0
    %v4115 = vadd.f32 %v4096, %v4114
    %v4116 = vpop.f32.mrf.mxu0
    %v4117 = vadd.f32 %v4098, %v4116
    %4118 = vmatmul.bf16.gmra.mxu0 %v671
    %v4119 = vpop.f32.mrf.mxu0
    %v4120 = vadd.f32 %v4101, %v4119
    %v4121 = vpop.f32.mrf.mxu0
    %v4122 = vadd.f32 %v4103, %v4121
    %4123 = vdwg.mxu0
    %4124 = vmatpush.bf16.msra.mxu0 %v2671
    %4125 = vmatpush.bf16.msra.mxu0 %v2663
    %4126 = vmatpush.bf16.msra.mxu0 %v2655
    %4127 = vmatpush.bf16.msra.mxu0 %v2647
    %4128 = vmatpush.bf16.msra.mxu0 %v2639
    %4129 = vmatpush.bf16.msra.mxu0 %v2631
    %4130 = vmatpush.bf16.msra.mxu0 %v2623
    %4131 = vmatpush.bf16.msra.mxu0 %v2615
    %4132 = vmatmul.bf16.gmra.mxu0 %v664
    %v4133 = vpop.f32.mrf.mxu0
    %v4134 = vadd.f32 %v4115, %v4133
    %v4135 = vpop.f32.mrf.mxu0
    %v4136 = vadd.f32 %v4117, %v4135
    %4137 = vmatmul.bf16.gmra.mxu0 %v672
    %v4138 = vpop.f32.mrf.mxu0
    %v4139 = vadd.f32 %v4120, %v4138
    %v4140 = vpop.f32.mrf.mxu0
    %v4141 = vadd.f32 %v4122, %v4140
    %4142 = vdwg.mxu0
    %4143 = vmatpush.bf16.msra.mxu0 %v2735
    %4144 = vmatpush.bf16.msra.mxu0 %v2727
    %4145 = vmatpush.bf16.msra.mxu0 %v2719
    %4146 = vmatpush.bf16.msra.mxu0 %v2711
    %4147 = vmatpush.bf16.msra.mxu0 %v2703
    %4148 = vmatpush.bf16.msra.mxu0 %v2695
    %4149 = vmatpush.bf16.msra.mxu0 %v2687
    %4150 = vmatpush.bf16.msra.mxu0 %v2679
    %4151 = vmatmul.bf16.gmra.mxu0 %v665
    %v4152 = vpop.f32.mrf.mxu0
    %v4153 = vadd.f32 %v4134, %v4152
    %v4154 = vpop.f32.mrf.mxu0
    %v4155 = vadd.f32 %v4136, %v4154
    %4156 = vmatmul.bf16.gmra.mxu0 %v673
    %v4157 = vpop.f32.mrf.mxu0
    %v4158 = vadd.f32 %v4139, %v4157
    %v4159 = vpop.f32.mrf.mxu0
    %v4160 = vadd.f32 %v4141, %v4159
    %4161 = vdwg.mxu0
    %4162 = vmatpush.bf16.msra.mxu0 %v2288
    %4163 = vmatpush.bf16.msra.mxu0 %v2280
    %4164 = vmatpush.bf16.msra.mxu0 %v2272
    %4165 = vmatpush.bf16.msra.mxu0 %v2264
    %4166 = vmatpush.bf16.msra.mxu0 %v2256
    %4167 = vmatpush.bf16.msra.mxu0 %v2248
    %4168 = vmatpush.bf16.msra.mxu0 %v2240
    %4169 = vmatpush.bf16.msra.mxu0 %v2232
    %4170 = vmatmul.bf16.gmra.mxu0 %v658
    %v4171 = vpop.f32.mrf.mxu0
    %v4172 = vadd.f32 0.0, %v4171
    %v4173 = vpop.f32.mrf.mxu0
    %v4174 = vadd.f32 0.0, %v4173
    %4175 = vmatmul.bf16.gmra.mxu0 %v666
    %v4176 = vpop.f32.mrf.mxu0
    %v4177 = vadd.f32 0.0, %v4176
    %v4178 = vpop.f32.mrf.mxu0
    %v4179 = vadd.f32 0.0, %v4178
    %4180 = vdwg.mxu0
    %4181 = vmatpush.bf16.msra.mxu0 %v2352
    %4182 = vmatpush.bf16.msra.mxu0 %v2344
    %4183 = vmatpush.bf16.msra.mxu0 %v2336
    %4184 = vmatpush.bf16.msra.mxu0 %v2328
    %4185 = vmatpush.bf16.msra.mxu0 %v2320
    %4186 = vmatpush.bf16.msra.mxu0 %v2312
    %4187 = vmatpush.bf16.msra.mxu0 %v2304
    %4188 = vmatpush.bf16.msra.mxu0 %v2296
    %4189 = vmatmul.bf16.gmra.mxu0 %v659
    %v4190 = vpop.f32.mrf.mxu0
    %v4191 = vadd.f32 %v4172, %v4190
    %v4192 = vpop.f32.mrf.mxu0
    %v4193 = vadd.f32 %v4174, %v4192
    %4194 = vmatmul.bf16.gmra.mxu0 %v667
    %v4195 = vpop.f32.mrf.mxu0
    %v4196 = vadd.f32 %v4177, %v4195
    %v4197 = vpop.f32.mrf.mxu0
    %v4198 = vadd.f32 %v4179, %v4197
    %4199 = vdwg.mxu0
    %4200 = vmatpush.bf16.msra.mxu0 %v2416
    %4201 = vmatpush.bf16.msra.mxu0 %v2408
    %4202 = vmatpush.bf16.msra.mxu0 %v2400
    %4203 = vmatpush.bf16.msra.mxu0 %v2392
    %4204 = vmatpush.bf16.msra.mxu0 %v2384
    %4205 = vmatpush.bf16.msra.mxu0 %v2376
    %4206 = vmatpush.bf16.msra.mxu0 %v2368
    %4207 = vmatpush.bf16.msra.mxu0 %v2360
    %4208 = vmatmul.bf16.gmra.mxu0 %v660
    %v4209 = vpop.f32.mrf.mxu0
    %v4210 = vadd.f32 %v4191, %v4209
    %v4211 = vpop.f32.mrf.mxu0
    %v4212 = vadd.f32 %v4193, %v4211
    %4213 = vmatmul.bf16.gmra.mxu0 %v668
    %v4214 = vpop.f32.mrf.mxu0
    %v4215 = vadd.f32 %v4196, %v4214
    %v4216 = vpop.f32.mrf.mxu0
    %v4217 = vadd.f32 %v4198, %v4216
    %4218 = vdwg.mxu0
    %4219 = vmatpush.bf16.msra.mxu0 %v2480
    %4220 = vmatpush.bf16.msra.mxu0 %v2472
    %4221 = vmatpush.bf16.msra.mxu0 %v2464
    %4222 = vmatpush.bf16.msra.mxu0 %v2456
    %4223 = vmatpush.bf16.msra.mxu0 %v2448
    %4224 = vmatpush.bf16.msra.mxu0 %v2440
    %4225 = vmatpush.bf16.msra.mxu0 %v2432
    %4226 = vmatpush.bf16.msra.mxu0 %v2424
    %4227 = vmatmul.bf16.gmra.mxu0 %v661
    %v4228 = vpop.f32.mrf.mxu0
    %v4229 = vadd.f32 %v4210, %v4228
    %v4230 = vpop.f32.mrf.mxu0
    %v4231 = vadd.f32 %v4212, %v4230
    %4232 = vmatmul.bf16.gmra.mxu0 %v669
    %v4233 = vpop.f32.mrf.mxu0
    %v4234 = vadd.f32 %v4215, %v4233
    %v4235 = vpop.f32.mrf.mxu0
    %v4236 = vadd.f32 %v4217, %v4235
    %4237 = vdwg.mxu0
    %4238 = vmatpush.bf16.msra.mxu0 %v2544
    %4239 = vmatpush.bf16.msra.mxu0 %v2536
    %4240 = vmatpush.bf16.msra.mxu0 %v2528
    %4241 = vmatpush.bf16.msra.mxu0 %v2520
    %4242 = vmatpush.bf16.msra.mxu0 %v2512
    %4243 = vmatpush.bf16.msra.mxu0 %v2504
    %4244 = vmatpush.bf16.msra.mxu0 %v2496
    %4245 = vmatpush.bf16.msra.mxu0 %v2488
    %4246 = vmatmul.bf16.gmra.mxu0 %v662
    %v4247 = vpop.f32.mrf.mxu0
    %v4248 = vadd.f32 %v4229, %v4247
    %v4249 = vpop.f32.mrf.mxu0
    %v4250 = vadd.f32 %v4231, %v4249
    %4251 = vmatmul.bf16.gmra.mxu0 %v670
    %v4252 = vpop.f32.mrf.mxu0
    %v4253 = vadd.f32 %v4234, %v4252
    %v4254 = vpop.f32.mrf.mxu0
    %v4255 = vadd.f32 %v4236, %v4254
    %4256 = vdwg.mxu0
    %4257 = vmatpush.bf16.msra.mxu0 %v2608
    %4258 = vmatpush.bf16.msra.mxu0 %v2600
    %4259 = vmatpush.bf16.msra.mxu0 %v2592
    %4260 = vmatpush.bf16.msra.mxu0 %v2584
    %4261 = vmatpush.bf16.msra.mxu0 %v2576
    %4262 = vmatpush.bf16.msra.mxu0 %v2568
    %4263 = vmatpush.bf16.msra.mxu0 %v2560
    %4264 = vmatpush.bf16.msra.mxu0 %v2552
    %4265 = vmatmul.bf16.gmra.mxu0 %v663
    %v4266 = vpop.f32.mrf.mxu0
    %v4267 = vadd.f32 %v4248, %v4266
    %v4268 = vpop.f32.mrf.mxu0
    %v4269 = vadd.f32 %v4250, %v4268
    %4270 = vmatmul.bf16.gmra.mxu0 %v671
    %v4271 = vpop.f32.mrf.mxu0
    %v4272 = vadd.f32 %v4253, %v4271
    %v4273 = vpop.f32.mrf.mxu0
    %v4274 = vadd.f32 %v4255, %v4273
    %4275 = vdwg.mxu0
    %4276 = vmatpush.bf16.msra.mxu0 %v2672
    %4277 = vmatpush.bf16.msra.mxu0 %v2664
    %4278 = vmatpush.bf16.msra.mxu0 %v2656
    %4279 = vmatpush.bf16.msra.mxu0 %v2648
    %4280 = vmatpush.bf16.msra.mxu0 %v2640
    %4281 = vmatpush.bf16.msra.mxu0 %v2632
    %4282 = vmatpush.bf16.msra.mxu0 %v2624
    %4283 = vmatpush.bf16.msra.mxu0 %v2616
    %4284 = vmatmul.bf16.gmra.mxu0 %v664
    %v4285 = vpop.f32.mrf.mxu0
    %v4286 = vadd.f32 %v4267, %v4285
    %v4287 = vpop.f32.mrf.mxu0
    %v4288 = vadd.f32 %v4269, %v4287
    %4289 = vmatmul.bf16.gmra.mxu0 %v672
    %v4290 = vpop.f32.mrf.mxu0
    %v4291 = vadd.f32 %v4272, %v4290
    %v4292 = vpop.f32.mrf.mxu0
    %v4293 = vadd.f32 %v4274, %v4292
    %4294 = vdwg.mxu0
    %4295 = vmatpush.bf16.msra.mxu0 %v2736
    %4296 = vmatpush.bf16.msra.mxu0 %v2728
    %4297 = vmatpush.bf16.msra.mxu0 %v2720
    %4298 = vmatpush.bf16.msra.mxu0 %v2712
    %4299 = vmatpush.bf16.msra.mxu0 %v2704
    %4300 = vmatpush.bf16.msra.mxu0 %v2696
    %4301 = vmatpush.bf16.msra.mxu0 %v2688
    %4302 = vmatpush.bf16.msra.mxu0 %v2680
    %4303 = vmatmul.bf16.gmra.mxu0 %v665
    %v4304 = vpop.f32.mrf.mxu0
    %v4305 = vadd.f32 %v4286, %v4304
    %v4306 = vpop.f32.mrf.mxu0
    %v4307 = vadd.f32 %v4288, %v4306
    %4308 = vmatmul.bf16.gmra.mxu0 %v673
    %v4309 = vpop.f32.mrf.mxu0
    %v4310 = vadd.f32 %v4291, %v4309
    %v4311 = vpop.f32.mrf.mxu0
    %v4312 = vadd.f32 %v4293, %v4311
    %4313 = vdwg.mxu0
    %4314 = vmatpush.bf16.msra.mxu0 %v2289
    %4315 = vmatpush.bf16.msra.mxu0 %v2281
    %4316 = vmatpush.bf16.msra.mxu0 %v2273
    %4317 = vmatpush.bf16.msra.mxu0 %v2265
    %4318 = vmatpush.bf16.msra.mxu0 %v2257
    %4319 = vmatpush.bf16.msra.mxu0 %v2249
    %4320 = vmatpush.bf16.msra.mxu0 %v2241
    %4321 = vmatpush.bf16.msra.mxu0 %v2233
    %4322 = vmatmul.bf16.gmra.mxu0 %v658
    %v4323 = vpop.f32.mrf.mxu0
    %v4324 = vadd.f32 0.0, %v4323
    %v4325 = vpop.f32.mrf.mxu0
    %v4326 = vadd.f32 0.0, %v4325
    %4327 = vmatmul.bf16.gmra.mxu0 %v666
    %v4328 = vpop.f32.mrf.mxu0
    %v4329 = vadd.f32 0.0, %v4328
    %v4330 = vpop.f32.mrf.mxu0
    %v4331 = vadd.f32 0.0, %v4330
    %4332 = vdwg.mxu0
    %4333 = vmatpush.bf16.msra.mxu0 %v2353
    %4334 = vmatpush.bf16.msra.mxu0 %v2345
    %4335 = vmatpush.bf16.msra.mxu0 %v2337
    %4336 = vmatpush.bf16.msra.mxu0 %v2329
    %4337 = vmatpush.bf16.msra.mxu0 %v2321
    %4338 = vmatpush.bf16.msra.mxu0 %v2313
    %4339 = vmatpush.bf16.msra.mxu0 %v2305
    %4340 = vmatpush.bf16.msra.mxu0 %v2297
    %4341 = vmatmul.bf16.gmra.mxu0 %v659
    %v4342 = vpop.f32.mrf.mxu0
    %v4343 = vadd.f32 %v4324, %v4342
    %v4344 = vpop.f32.mrf.mxu0
    %v4345 = vadd.f32 %v4326, %v4344
    %4346 = vmatmul.bf16.gmra.mxu0 %v667
    %v4347 = vpop.f32.mrf.mxu0
    %v4348 = vadd.f32 %v4329, %v4347
    %v4349 = vpop.f32.mrf.mxu0
    %v4350 = vadd.f32 %v4331, %v4349
    %4351 = vdwg.mxu0
    %4352 = vmatpush.bf16.msra.mxu0 %v2417
    %4353 = vmatpush.bf16.msra.mxu0 %v2409
    %4354 = vmatpush.bf16.msra.mxu0 %v2401
    %4355 = vmatpush.bf16.msra.mxu0 %v2393
    %4356 = vmatpush.bf16.msra.mxu0 %v2385
    %4357 = vmatpush.bf16.msra.mxu0 %v2377
    %4358 = vmatpush.bf16.msra.mxu0 %v2369
    %4359 = vmatpush.bf16.msra.mxu0 %v2361
    %4360 = vmatmul.bf16.gmra.mxu0 %v660
    %v4361 = vpop.f32.mrf.mxu0
    %v4362 = vadd.f32 %v4343, %v4361
    %v4363 = vpop.f32.mrf.mxu0
    %v4364 = vadd.f32 %v4345, %v4363
    %4365 = vmatmul.bf16.gmra.mxu0 %v668
    %v4366 = vpop.f32.mrf.mxu0
    %v4367 = vadd.f32 %v4348, %v4366
    %v4368 = vpop.f32.mrf.mxu0
    %v4369 = vadd.f32 %v4350, %v4368
    %4370 = vdwg.mxu0
    %4371 = vmatpush.bf16.msra.mxu0 %v2481
    %4372 = vmatpush.bf16.msra.mxu0 %v2473
    %4373 = vmatpush.bf16.msra.mxu0 %v2465
    %4374 = vmatpush.bf16.msra.mxu0 %v2457
    %4375 = vmatpush.bf16.msra.mxu0 %v2449
    %4376 = vmatpush.bf16.msra.mxu0 %v2441
    %4377 = vmatpush.bf16.msra.mxu0 %v2433
    %4378 = vmatpush.bf16.msra.mxu0 %v2425
    %4379 = vmatmul.bf16.gmra.mxu0 %v661
    %v4380 = vpop.f32.mrf.mxu0
    %v4381 = vadd.f32 %v4362, %v4380
    %v4382 = vpop.f32.mrf.mxu0
    %v4383 = vadd.f32 %v4364, %v4382
    %4384 = vmatmul.bf16.gmra.mxu0 %v669
    %v4385 = vpop.f32.mrf.mxu0
    %v4386 = vadd.f32 %v4367, %v4385
    %v4387 = vpop.f32.mrf.mxu0
    %v4388 = vadd.f32 %v4369, %v4387
    %4389 = vdwg.mxu0
    %4390 = vmatpush.bf16.msra.mxu0 %v2545
    %4391 = vmatpush.bf16.msra.mxu0 %v2537
    %4392 = vmatpush.bf16.msra.mxu0 %v2529
    %4393 = vmatpush.bf16.msra.mxu0 %v2521
    %4394 = vmatpush.bf16.msra.mxu0 %v2513
    %4395 = vmatpush.bf16.msra.mxu0 %v2505
    %4396 = vmatpush.bf16.msra.mxu0 %v2497
    %4397 = vmatpush.bf16.msra.mxu0 %v2489
    %4398 = vmatmul.bf16.gmra.mxu0 %v662
    %v4399 = vpop.f32.mrf.mxu0
    %v4400 = vadd.f32 %v4381, %v4399
    %v4401 = vpop.f32.mrf.mxu0
    %v4402 = vadd.f32 %v4383, %v4401
    %4403 = vmatmul.bf16.gmra.mxu0 %v670
    %v4404 = vpop.f32.mrf.mxu0
    %v4405 = vadd.f32 %v4386, %v4404
    %v4406 = vpop.f32.mrf.mxu0
    %v4407 = vadd.f32 %v4388, %v4406
    %4408 = vdwg.mxu0
    %4409 = vmatpush.bf16.msra.mxu0 %v2609
    %4410 = vmatpush.bf16.msra.mxu0 %v2601
    %4411 = vmatpush.bf16.msra.mxu0 %v2593
    %4412 = vmatpush.bf16.msra.mxu0 %v2585
    %4413 = vmatpush.bf16.msra.mxu0 %v2577
    %4414 = vmatpush.bf16.msra.mxu0 %v2569
    %4415 = vmatpush.bf16.msra.mxu0 %v2561
    %4416 = vmatpush.bf16.msra.mxu0 %v2553
    %4417 = vmatmul.bf16.gmra.mxu0 %v663
    %v4418 = vpop.f32.mrf.mxu0
    %v4419 = vadd.f32 %v4400, %v4418
    %v4420 = vpop.f32.mrf.mxu0
    %v4421 = vadd.f32 %v4402, %v4420
    %4422 = vmatmul.bf16.gmra.mxu0 %v671
    %v4423 = vpop.f32.mrf.mxu0
    %v4424 = vadd.f32 %v4405, %v4423
    %v4425 = vpop.f32.mrf.mxu0
    %v4426 = vadd.f32 %v4407, %v4425
    %4427 = vdwg.mxu0
    %4428 = vmatpush.bf16.msra.mxu0 %v2673
    %4429 = vmatpush.bf16.msra.mxu0 %v2665
    %4430 = vmatpush.bf16.msra.mxu0 %v2657
    %4431 = vmatpush.bf16.msra.mxu0 %v2649
    %4432 = vmatpush.bf16.msra.mxu0 %v2641
    %4433 = vmatpush.bf16.msra.mxu0 %v2633
    %4434 = vmatpush.bf16.msra.mxu0 %v2625
    %4435 = vmatpush.bf16.msra.mxu0 %v2617
    %4436 = vmatmul.bf16.gmra.mxu0 %v664
    %v4437 = vpop.f32.mrf.mxu0
    %v4438 = vadd.f32 %v4419, %v4437
    %v4439 = vpop.f32.mrf.mxu0
    %v4440 = vadd.f32 %v4421, %v4439
    %4441 = vmatmul.bf16.gmra.mxu0 %v672
    %v4442 = vpop.f32.mrf.mxu0
    %v4443 = vadd.f32 %v4424, %v4442
    %v4444 = vpop.f32.mrf.mxu0
    %v4445 = vadd.f32 %v4426, %v4444
    %4446 = vdwg.mxu0
    %4447 = vmatpush.bf16.msra.mxu0 %v2737
    %4448 = vmatpush.bf16.msra.mxu0 %v2729
    %4449 = vmatpush.bf16.msra.mxu0 %v2721
    %4450 = vmatpush.bf16.msra.mxu0 %v2713
    %4451 = vmatpush.bf16.msra.mxu0 %v2705
    %4452 = vmatpush.bf16.msra.mxu0 %v2697
    %4453 = vmatpush.bf16.msra.mxu0 %v2689
    %4454 = vmatpush.bf16.msra.mxu0 %v2681
    %4455 = vmatmul.bf16.gmra.mxu0 %v665
    %v4456 = vpop.f32.mrf.mxu0
    %v4457 = vadd.f32 %v4438, %v4456
    %v4458 = vpop.f32.mrf.mxu0
    %v4459 = vadd.f32 %v4440, %v4458
    %4460 = vmatmul.bf16.gmra.mxu0 %v673
    %v4461 = vpop.f32.mrf.mxu0
    %v4462 = vadd.f32 %v4443, %v4461
    %v4463 = vpop.f32.mrf.mxu0
    %v4464 = vadd.f32 %v4445, %v4463
    %4465 = vdwg.mxu0
    %v4466 = vld [vmem:[#allocation8] sm:$0xff]
    %v4468 = vperm.slane %v4466, 0
    %v4469 = vperm.slane %v4466, 1
    %v4470 = vperm.slane %v4466, 2
    %v4471 = vperm.slane %v4466, 3
    %v4472 = vperm.slane %v4466, 4
    %v4473 = vperm.slane %v4466, 5
    %v4474 = vperm.slane %v4466, 6
    %v4475 = vperm.slane %v4466, 7
    %v4484 = vmul.f32 %v3393, %v4468
    %v4485 = vmul.f32 %v3545, %v4469
    %v4486 = vmul.f32 %v3697, %v4470
    %v4487 = vmul.f32 %v3849, %v4471
    %v4488 = vmul.f32 %v4001, %v4472
    %v4489 = vmul.f32 %v4153, %v4473
    %v4490 = vmul.f32 %v4305, %v4474
    %v4491 = vmul.f32 %v4457, %v4475
    %v4492 = vmul.f32 %v3395, %v4468
    %v4493 = vmul.f32 %v3547, %v4469
    %v4494 = vmul.f32 %v3699, %v4470
    %v4495 = vmul.f32 %v3851, %v4471
    %v4496 = vmul.f32 %v4003, %v4472
    %v4497 = vmul.f32 %v4155, %v4473
    %v4498 = vmul.f32 %v4307, %v4474
    %v4499 = vmul.f32 %v4459, %v4475
    %v4500 = vmul.f32 %v3398, %v4468
    %v4501 = vmul.f32 %v3550, %v4469
    %v4502 = vmul.f32 %v3702, %v4470
    %v4503 = vmul.f32 %v3854, %v4471
    %v4504 = vmul.f32 %v4006, %v4472
    %v4505 = vmul.f32 %v4158, %v4473
    %v4506 = vmul.f32 %v4310, %v4474
    %v4507 = vmul.f32 %v4462, %v4475
    %v4508 = vmul.f32 %v3400, %v4468
    %v4509 = vmul.f32 %v3552, %v4469
    %v4510 = vmul.f32 %v3704, %v4470
    %v4511 = vmul.f32 %v3856, %v4471
    %v4512 = vmul.f32 %v4008, %v4472
    %v4513 = vmul.f32 %v4160, %v4473
    %v4514 = vmul.f32 %v4312, %v4474
    %v4515 = vmul.f32 %v4464, %v4475
    %v4516 = vld [vmem:[#allocation9] sm:$0xff]
    %v4518 = vperm.slane %v4516, 0
    %v4519 = vperm.slane %v4516, 1
    %v4520 = vperm.slane %v4516, 2
    %v4521 = vperm.slane %v4516, 3
    %v4522 = vperm.slane %v4516, 4
    %v4523 = vperm.slane %v4516, 5
    %v4524 = vperm.slane %v4516, 6
    %v4525 = vperm.slane %v4516, 7
    %v4534 = vadd.f32 %v4484, %v4518
    %v4535 = vadd.f32 %v4485, %v4519
    %v4536 = vadd.f32 %v4486, %v4520
    %v4537 = vadd.f32 %v4487, %v4521
    %v4538 = vadd.f32 %v4488, %v4522
    %v4539 = vadd.f32 %v4489, %v4523
    %v4540 = vadd.f32 %v4490, %v4524
    %v4541 = vadd.f32 %v4491, %v4525
    %v4542 = vadd.f32 %v4492, %v4518
    %v4543 = vadd.f32 %v4493, %v4519
    %v4544 = vadd.f32 %v4494, %v4520
    %v4545 = vadd.f32 %v4495, %v4521
    %v4546 = vadd.f32 %v4496, %v4522
    %v4547 = vadd.f32 %v4497, %v4523
    %v4548 = vadd.f32 %v4498, %v4524
    %v4549 = vadd.f32 %v4499, %v4525
    %v4550 = vadd.f32 %v4500, %v4518
    %v4551 = vadd.f32 %v4501, %v4519
    %v4552 = vadd.f32 %v4502, %v4520
    %v4553 = vadd.f32 %v4503, %v4521
    %v4554 = vadd.f32 %v4504, %v4522
    %v4555 = vadd.f32 %v4505, %v4523
    %v4556 = vadd.f32 %v4506, %v4524
    %v4557 = vadd.f32 %v4507, %v4525
    %v4558 = vadd.f32 %v4508, %v4518
    %v4559 = vadd.f32 %v4509, %v4519
    %v4560 = vadd.f32 %v4510, %v4520
    %v4561 = vadd.f32 %v4511, %v4521
    %v4562 = vadd.f32 %v4512, %v4522
    %v4563 = vadd.f32 %v4513, %v4523
    %v4564 = vadd.f32 %v4514, %v4524
    %v4565 = vadd.f32 %v4515, %v4525
    %v4566 = vld [vmem:[#allocation2] sm:$0x1]
    %vm4567 = vcmp.ge.f32.partialorder %v4534, 0.0
    %vm4568 = vcmp.ge.f32.partialorder %v4535, 0.0
    %vm4569 = vcmp.ge.f32.partialorder %v4536, 0.0
    %vm4570 = vcmp.ge.f32.partialorder %v4537, 0.0
    %vm4571 = vcmp.ge.f32.partialorder %v4538, 0.0
    %vm4572 = vcmp.ge.f32.partialorder %v4539, 0.0
    %vm4573 = vcmp.ge.f32.partialorder %v4540, 0.0
    %vm4574 = vcmp.ge.f32.partialorder %v4541, 0.0
    %vm4575 = vcmp.ge.f32.partialorder %v4542, 0.0
    %vm4576 = vcmp.ge.f32.partialorder %v4543, 0.0
    %vm4577 = vcmp.ge.f32.partialorder %v4544, 0.0
    %vm4578 = vcmp.ge.f32.partialorder %v4545, 0.0
    %vm4579 = vcmp.ge.f32.partialorder %v4546, 0.0
    %vm4580 = vcmp.ge.f32.partialorder %v4547, 0.0
    %vm4581 = vcmp.ge.f32.partialorder %v4548, 0.0
    %vm4582 = vcmp.ge.f32.partialorder %v4549, 0.0
    %vm4583 = vcmp.ge.f32.partialorder %v4550, 0.0
    %vm4584 = vcmp.ge.f32.partialorder %v4551, 0.0
    %vm4585 = vcmp.ge.f32.partialorder %v4552, 0.0
    %vm4586 = vcmp.ge.f32.partialorder %v4553, 0.0
    %vm4587 = vcmp.ge.f32.partialorder %v4554, 0.0
    %vm4588 = vcmp.ge.f32.partialorder %v4555, 0.0
    %vm4589 = vcmp.ge.f32.partialorder %v4556, 0.0
    %vm4590 = vcmp.ge.f32.partialorder %v4557, 0.0
    %vm4591 = vcmp.ge.f32.partialorder %v4558, 0.0
    %vm4592 = vcmp.ge.f32.partialorder %v4559, 0.0
    %vm4593 = vcmp.ge.f32.partialorder %v4560, 0.0
    %vm4594 = vcmp.ge.f32.partialorder %v4561, 0.0
    %vm4595 = vcmp.ge.f32.partialorder %v4562, 0.0
    %vm4596 = vcmp.ge.f32.partialorder %v4563, 0.0
    %vm4597 = vcmp.ge.f32.partialorder %v4564, 0.0
    %vm4598 = vcmp.ge.f32.partialorder %v4565, 0.0
    %v4600 = vperm.slane %v4566, 0
    %4601 = vset.pattern.permute.xlu0 0
    %4602 = vperm.xlu0 %4601, %v4600
    %v4603 = vpop.permute.xlu0 %4602
    %v4605 = vmul.f32 %v4603, %v4534
    %v4606 = vmul.f32 %v4603, %v4535
    %v4607 = vmul.f32 %v4603, %v4536
    %v4608 = vmul.f32 %v4603, %v4537
    %v4609 = vmul.f32 %v4603, %v4538
    %v4610 = vmul.f32 %v4603, %v4539
    %v4611 = vmul.f32 %v4603, %v4540
    %v4612 = vmul.f32 %v4603, %v4541
    %v4613 = vmul.f32 %v4603, %v4542
    %v4614 = vmul.f32 %v4603, %v4543
    %v4615 = vmul.f32 %v4603, %v4544
    %v4616 = vmul.f32 %v4603, %v4545
    %v4617 = vmul.f32 %v4603, %v4546
    %v4618 = vmul.f32 %v4603, %v4547
    %v4619 = vmul.f32 %v4603, %v4548
    %v4620 = vmul.f32 %v4603, %v4549
    %v4621 = vmul.f32 %v4603, %v4550
    %v4622 = vmul.f32 %v4603, %v4551
    %v4623 = vmul.f32 %v4603, %v4552
    %v4624 = vmul.f32 %v4603, %v4553
    %v4625 = vmul.f32 %v4603, %v4554
    %v4626 = vmul.f32 %v4603, %v4555
    %v4627 = vmul.f32 %v4603, %v4556
    %v4628 = vmul.f32 %v4603, %v4557
    %v4629 = vmul.f32 %v4603, %v4558
    %v4630 = vmul.f32 %v4603, %v4559
    %v4631 = vmul.f32 %v4603, %v4560
    %v4632 = vmul.f32 %v4603, %v4561
    %v4633 = vmul.f32 %v4603, %v4562
    %v4634 = vmul.f32 %v4603, %v4563
    %v4635 = vmul.f32 %v4603, %v4564
    %v4636 = vmul.f32 %v4603, %v4565
    %v4637 = vsel %vm4567, %v4534, %v4605
    %v4638 = vsel %vm4568, %v4535, %v4606
    %v4639 = vsel %vm4569, %v4536, %v4607
    %v4640 = vsel %vm4570, %v4537, %v4608
    %v4641 = vsel %vm4571, %v4538, %v4609
    %v4642 = vsel %vm4572, %v4539, %v4610
    %v4643 = vsel %vm4573, %v4540, %v4611
    %v4644 = vsel %vm4574, %v4541, %v4612
    %v4645 = vsel %vm4575, %v4542, %v4613
    %v4646 = vsel %vm4576, %v4543, %v4614
    %v4647 = vsel %vm4577, %v4544, %v4615
    %v4648 = vsel %vm4578, %v4545, %v4616
    %v4649 = vsel %vm4579, %v4546, %v4617
    %v4650 = vsel %vm4580, %v4547, %v4618
    %v4651 = vsel %vm4581, %v4548, %v4619
    %v4652 = vsel %vm4582, %v4549, %v4620
    %v4653 = vsel %vm4583, %v4550, %v4621
    %v4654 = vsel %vm4584, %v4551, %v4622
    %v4655 = vsel %vm4585, %v4552, %v4623
    %v4656 = vsel %vm4586, %v4553, %v4624
    %v4657 = vsel %vm4587, %v4554, %v4625
    %v4658 = vsel %vm4588, %v4555, %v4626
    %v4659 = vsel %vm4589, %v4556, %v4627
    %v4660 = vsel %vm4590, %v4557, %v4628
    %v4661 = vsel %vm4591, %v4558, %v4629
    %v4662 = vsel %vm4592, %v4559, %v4630
    %v4663 = vsel %vm4593, %v4560, %v4631
    %v4664 = vsel %vm4594, %v4561, %v4632
    %v4665 = vsel %vm4595, %v4562, %v4633
    %v4666 = vsel %vm4596, %v4563, %v4634
    %v4667 = vsel %vm4597, %v4564, %v4635
    %v4668 = vsel %vm4598, %v4565, %v4636
    %v4669 = vpack.c.bf16 %v4638, %v4637
    %v4670 = vpack.c.bf16 %v4640, %v4639
    %v4671 = vpack.c.bf16 %v4642, %v4641
    %v4672 = vpack.c.bf16 %v4644, %v4643
    %v4673 = vpack.c.bf16 %v4646, %v4645
    %v4674 = vpack.c.bf16 %v4648, %v4647
    %v4675 = vpack.c.bf16 %v4650, %v4649
    %v4676 = vpack.c.bf16 %v4652, %v4651
    %v4677 = vpack.c.bf16 %v4654, %v4653
    %v4678 = vpack.c.bf16 %v4656, %v4655
    %v4679 = vpack.c.bf16 %v4658, %v4657
    %v4680 = vpack.c.bf16 %v4660, %v4659
    %v4681 = vpack.c.bf16 %v4662, %v4661
    %v4682 = vpack.c.bf16 %v4664, %v4663
    %v4683 = vpack.c.bf16 %v4666, %v4665
    %v4684 = vpack.c.bf16 %v4668, %v4667
    %4685 = vst [vmem:[#allocation11] sm:$0xff] %v4669
    %4686 = vst [vmem:[#allocation11 + $0x8] sm:$0xff] %v4670
    %4687 = vst [vmem:[#allocation11 + $0x10] sm:$0xff] %v4671
    %4688 = vst [vmem:[#allocation11 + $0x18] sm:$0xff] %v4672
    %4689 = vst [vmem:[#allocation11 + $0x20] sm:$0xff] %v4673
    %4690 = vst [vmem:[#allocation11 + $0x28] sm:$0xff] %v4674
    %4691 = vst [vmem:[#allocation11 + $0x30] sm:$0xff] %v4675
    %4692 = vst [vmem:[#allocation11 + $0x38] sm:$0xff] %v4676
    %4693 = vst [vmem:[#allocation11 + $0x40] sm:$0xff] %v4677
    %4694 = vst [vmem:[#allocation11 + $0x48] sm:$0xff] %v4678
    %4695 = vst [vmem:[#allocation11 + $0x50] sm:$0xff] %v4679
    %4696 = vst [vmem:[#allocation11 + $0x58] sm:$0xff] %v4680
    %4697 = vst [vmem:[#allocation11 + $0x60] sm:$0xff] %v4681
    %4698 = vst [vmem:[#allocation11 + $0x68] sm:$0xff] %v4682
    %4699 = vst [vmem:[#allocation11 + $0x70] sm:$0xff] %v4683
    %4700 = vst [vmem:[#allocation11 + $0x78] sm:$0xff] %v4684
    // Predicated region
    $region38: #{tpu_custom_call.1} parent=1 // pred_check
      _
    $region39: #{tpu_custom_call.1} parent=1 // pred_check_branch
      %4702 = sbr.rel (0) target = $region41
    $region40: #{tpu_custom_call.1} parent=1 // pred_region
      %4704 = vsyncadd [#allocation5], 0
      %s4705 = sshll.u32 [#allocation11], 4
      %s4706 = int_to_ptr.vmem [resolvable:$true] %s4705
      %s4707 = sshll.u32 %s5, 4
      %s4708 = int_to_ptr.hbm [resolvable:$true] %s4707
      %4713 = dma.vmem_to_hbm [thread:$0]  %s4706, 2048, %s4708, [#allocation5], 512, 512, 32
    $region41: #{tpu_custom_call.1} parent=1 // pred_fallthru
      _
    // Predicated region
    $region42: #{tpu_custom_call.1} parent=1 // pred_check
      _
    $region43: #{tpu_custom_call.1} parent=1 // pred_check_branch
      %4715 = sbr.rel (0) target = $region45
    $region44: #{tpu_custom_call.1} parent=1 // pred_region
      %4717 = dma.done [#allocation5], 2048
    $region45: #{tpu_custom_call.1} parent=1 // pred_fallthru
      _
    %4718 = vsyncpa [#allocation4], 1
    %4719 = vsyncpa [#allocation7], 1
    %4720 = vsyncpa [#allocation10], 1
    %4721 = vsyncpa [#allocation5], 1

</llo_original>
